<compile_context>
chip_gen: v7x
topology: tpu7x:2x2x1
jax: 0.10.0
libtpu: 0.0.40
codegen_flags: <defaults>
</compile_context>

<pallas_src>
import functools

import jax
import jax.numpy as jnp
from jax import lax
from jax.experimental import pallas as pl
from jax.experimental.pallas import tpu as pltpu


def _decomp_conv3d_kernel(*refs, Dblk, K, H, W, Cout):
    """Produces Dblk output D-planes per grid step (grid = (N, D // Dblk)).

    refs = plane_0 .. plane_{Dblk+K-2}, w_ref, b_ref, o_ref
      plane_j : (Hp*W, Cin) bf16   padded plane at depth (db*Dblk + j)
      w_ref   : (3*K, Cin, Cout) bf16  BN-folded per-tap weights
                (branch order: D taps, H taps, W taps)
      b_ref   : (1, Cout) f32      total BN-folded bias
      o_ref   : (Dblk, H*W, Cout) f32  output planes
    """
    n_planes = Dblk + K - 1
    plane_refs = refs[:n_planes]
    w_ref = refs[n_planes]
    b_ref = refs[n_planes + 1]
    o_ref = refs[n_planes + 2]

    p = K // 2
    HW = H * W

    # w-coordinate of each merged (h*W + w) row — hoisted, used by the W branch
    # to emulate the conv's zero padding along W (W is deliberately NOT padded).
    wcoord = lax.broadcasted_iota(jnp.int32, (HW, 1), 0) % W

    # Bias-initialized accumulator template (f32), hoisted out of the loops.
    bias_bc = jnp.broadcast_to(b_ref[...], (HW, Cout))

    for dd in range(Dblk):
        centre_plane = plane_refs[dd + p]
        acc = bias_bc

        centre_win = None
        # --- D branch (c1): tap t reads the centre-H window of plane dd + t.
        #     Row offset p*W is 8-aligned when W % 8 == 0 -> layout-free read.
        for t in range(K):
            win = plane_refs[dd + t][pl.ds(p * W, HW), :]
            if t == p:
                centre_win = win  # reuse for the H/W centre taps
            acc = acc + jnp.dot(win, w_ref[t],
                                preferred_element_type=jnp.float32)

        # --- H branch (c2): tap t reads an H-shifted (aligned) row window.
        for t in range(K):
            win = centre_win if t == p else centre_plane[pl.ds(t * W, HW), :]
            acc = acc + jnp.dot(win, w_ref[K + t],
                                preferred_element_type=jnp.float32)

        # --- W branch (c3): a W-shift is a row shift of the merged (h*W + w)
        #     index; rows whose shift crosses a W boundary are masked to zero.
        for t in range(K):
            s = t - p
            if s == 0:
                win = centre_win
            else:
                win = centre_plane[pl.ds(p * W + s, HW), :]
                valid = jnp.logical_and(wcoord + s >= 0, wcoord + s < W)
                win = jnp.where(valid, win, jnp.zeros_like(win))
            acc = acc + jnp.dot(win, w_ref[2 * K + t],
                                preferred_element_type=jnp.float32)

        o_ref[dd] = acc.astype(o_ref.dtype)


def decomp_conv3d(x_ncdhw, params, *, kernel_size, act=None, d_block=4):
    """Forward pass of DecompConv3D (stride=1, groups=1, norm=True, inference BN).

    x_ncdhw: (N, Cin, D, H, W) float32
    params : dict with per-branch conv weights/bias + BN params (see init_params).
    """
    N, Cin, D, H, W = x_ncdhw.shape
    K = kernel_size
    p = K // 2
    eps = 1e-5

    Cout = params["c1_w"].shape[0]

    # ---- fold BatchNorm (inference) into conv weight & bias (plain JAX glue)
    folded_w = []
    total_bias = jnp.zeros((Cout,), jnp.float32)
    for name, axis in (("c1", 0), ("c2", 1), ("c3", 2)):
        w = params[f"{name}_w"].astype(jnp.float32)   # (Cout, Cin, kD, kH, kW)
        b = params[f"{name}_b"].astype(jnp.float32)   # (Cout,)
        gamma = params[f"{name}_gamma"]
        beta = params[f"{name}_beta"]
        rm = params[f"{name}_rm"]
        rv = params[f"{name}_rv"]
        scale = gamma / jnp.sqrt(rv + eps)            # (Cout,)
        shift = beta - rm * scale
        w_k = jnp.squeeze(w, axis=tuple(d for d in (2, 3, 4) if d != 2 + axis))
        w_k = jnp.transpose(w_k, (2, 1, 0))           # (K, Cin, Cout)
        folded_w.append(w_k * scale[None, None, :])
        total_bias = total_bias + (b * scale + shift)

    # ---- pack per-tap weights (no channel padding): (3*K, Cin, Cout), bf16.
    w_packed = (jnp.stack(folded_w, axis=0)
                .reshape(3 * K, Cin, Cout).astype(jnp.bfloat16))
    bias = total_bias.reshape(1, Cout).astype(jnp.float32)

    # ---- channels-last, bf16, pad D and H by p (NOT W — its zero padding is
    #      done by masking in-kernel), merge (H, W) into 2D row planes.
    x = jnp.transpose(x_ncdhw, (0, 2, 3, 4, 1)).astype(jnp.bfloat16)  # (N,D,H,W,Cin)
    x = jnp.pad(x, ((0, 0), (p, p), (p, p), (0, 0), (0, 0)))
    Dp, Hp = D + 2 * p, H + 2 * p
    x_m = x.reshape(N, Dp, Hp * W, Cin)

    # ---- D-axis blocking: Dblk output planes per grid step (largest divisor
    #      of D that is <= d_block).  Needs Dblk + K - 1 input planes per step.
    Dblk = max(db for db in range(min(d_block, D), 0, -1) if D % db == 0)
    n_planes = Dblk + K - 1

    kernel = functools.partial(_decomp_conv3d_kernel,
                               Dblk=Dblk, K=K, H=H, W=W, Cout=Cout)

    plane_specs = [
        pl.BlockSpec((pl.Squeezed(), pl.Squeezed(), Hp * W, Cin),
                     lambda n, db, _j=j: (n, db * Dblk + _j, 0, 0))
        for j in range(n_planes)
    ]
    in_specs = plane_specs + [
        pl.BlockSpec((3 * K, Cin, Cout), lambda n, db: (0, 0, 0)),
        pl.BlockSpec((1, Cout), lambda n, db: (0, 0)),
    ]
    out_spec = pl.BlockSpec((pl.Squeezed(), Dblk, H * W, Cout),
                            lambda n, db: (n, db, 0, 0))

    # ---- per-step VMEM estimate (double-buffered inputs/outputs + weights);
    #      cap well below v7x's 64 MiB physical VMEM.
    step_bytes = (n_planes * Hp * W * Cin * 2 * 2          # input plane buffers
                  + 3 * K * Cin * Cout * 2 * 2             # weights
                  + Cout * 4 * 2                           # bias
                  + Dblk * H * W * Cout * 4 * 2)           # output buffers
    vmem_limit = int(min(56 * 1024 * 1024,
                         max(16 * 1024 * 1024, 4 * step_bytes)))

    out_m = pl.pallas_call(
        kernel,
        out_shape=jax.ShapeDtypeStruct((N, D, H * W, Cout), jnp.float32),
        grid_spec=pltpu.PrefetchScalarGridSpec(
            num_scalar_prefetch=0,
            grid=(N, D // Dblk),
            in_specs=in_specs,
            out_specs=out_spec,
        ),
        compiler_params=pltpu.CompilerParams(
            dimension_semantics=("parallel", "parallel"),
            vmem_limit_bytes=vmem_limit,
        ),
    )(*([x_m] * n_planes), w_packed, bias)

    out = out_m.reshape(N, D, H, W, Cout)
    out = jnp.transpose(out, (0, 4, 1, 2, 3))              # back to NCDHW
    if act is not None:
        out = act(out)
    return out


def init_params(key, in_dim, out_dim, kernel_size):
    """Deterministic parameter init mimicking the shapes of DecompConv3D.__init__."""
    K = kernel_size
    kshapes = {
        "c1": (out_dim, in_dim, K, 1, 1),
        "c2": (out_dim, in_dim, 1, K, 1),
        "c3": (out_dim, in_dim, 1, 1, K),
    }
    params = {}
    for name, shp in kshapes.items():
        key, k1, k2, k3, k4, k5, k6 = jax.random.split(key, 7)
        params[f"{name}_w"] = 0.1 * jax.random.normal(k1, shp, jnp.float32)
        params[f"{name}_b"] = 0.1 * jax.random.normal(k2, (out_dim,), jnp.float32)
        params[f"{name}_gamma"] = 1.0 + 0.1 * jax.random.normal(k3, (out_dim,), jnp.float32)
        params[f"{name}_beta"] = 0.1 * jax.random.normal(k4, (out_dim,), jnp.float32)
        params[f"{name}_rm"] = 0.1 * jax.random.normal(k5, (out_dim,), jnp.float32)
        params[f"{name}_rv"] = 0.5 + jnp.abs(jax.random.normal(k6, (out_dim,), jnp.float32))
    return params


def reference_forward(x_ncdhw, params, kernel_size):
    """Pure-JAX f32 reference (lax.conv) for correctness checking."""
    K = kernel_size
    p = K // 2
    eps = 1e-5
    pads = {"c1": [(p, p), (0, 0), (0, 0)],
            "c2": [(0, 0), (p, p), (0, 0)],
            "c3": [(0, 0), (0, 0), (p, p)]}
    out = None
    for name in ("c1", "c2", "c3"):
        y = lax.conv_general_dilated(
            x_ncdhw, params[f"{name}_w"],
            window_strides=(1, 1, 1), padding=pads[name],
            dimension_numbers=("NCDHW", "OIDHW", "NCDHW"))
        y = y + params[f"{name}_b"][None, :, None, None, None]
        scale = params[f"{name}_gamma"] / jnp.sqrt(params[f"{name}_rv"] + eps)
        shift = params[f"{name}_beta"] - params[f"{name}_rm"] * scale
        y = y * scale[None, :, None, None, None] + shift[None, :, None, None, None]
        out = y if out is None else out + y
    return out


if __name__ == "__main__":
    N, Cin, Cout, D, H, W, K = 2, 4, 8, 8, 8, 8, 3

    key = jax.random.PRNGKey(0)
    key, kx = jax.random.split(key)
    x = jax.random.normal(kx, (N, Cin, D, H, W), jnp.float32)
    params = init_params(key, Cin, Cout, K)

    out = decomp_conv3d(x, params, kernel_size=K, act=None)
    out = jax.block_until_ready(out)

    ref = jax.block_until_ready(reference_forward(x, params, K))
    assert out.shape == (N, Cout, D, H, W)
    # bf16 inputs/weights with f32 accumulation vs a pure-f32 reference.
    max_err = float(jnp.max(jnp.abs(out - ref)))
    assert max_err < 5e-2, f"mismatch vs reference: {max_err}"

    print("KERNEL_OK")
</pallas_src>

<mosaic_0001>
module attributes {stable_mosaic.version = 11 : i64} {
  func.func @_decomp_conv3d_kernel(%arg0: i32, %arg1: i32, %arg2: memref<1x1x80x4xbf16, #tpu.memory_space<vmem>>, %arg3: memref<1x1x80x4xbf16, #tpu.memory_space<vmem>>, %arg4: memref<1x1x80x4xbf16, #tpu.memory_space<vmem>>, %arg5: memref<1x1x80x4xbf16, #tpu.memory_space<vmem>>, %arg6: memref<1x1x80x4xbf16, #tpu.memory_space<vmem>>, %arg7: memref<1x1x80x4xbf16, #tpu.memory_space<vmem>>, %arg8: memref<9x4x8xbf16, #tpu.memory_space<vmem>>, %arg9: memref<1x8xf32, #tpu.memory_space<vmem>>, %arg10: memref<1x4x64x8xf32, #tpu.memory_space<vmem>>) attributes {dimension_semantics = [#tpu.dimension_semantics<parallel>, #tpu.dimension_semantics<parallel>], iteration_bounds = array<i64: 2, 2>, scalar_prefetch = 0 : i64, scratch_operands = 0 : i64, tpu.core_type = #tpu.core_type<tc>, window_params = [{transform_indices = @transform_0, window_bounds = array<i64: 1, 1, 80, 4>}, {transform_indices = @transform_1, window_bounds = array<i64: 1, 1, 80, 4>}, {transform_indices = @transform_2, window_bounds = array<i64: 1, 1, 80, 4>}, {transform_indices = @transform_3, window_bounds = array<i64: 1, 1, 80, 4>}, {transform_indices = @transform_4, window_bounds = array<i64: 1, 1, 80, 4>}, {transform_indices = @transform_5, window_bounds = array<i64: 1, 1, 80, 4>}, {pipeline_mode = #tpu.pipeline_mode<synchronous>, transform_indices = @transform_6, window_bounds = array<i64: 9, 4, 8>}, {pipeline_mode = #tpu.pipeline_mode<synchronous>, transform_indices = @transform_7, window_bounds = array<i64: 1, 8>}, {transform_indices = @transform_8, window_bounds = array<i64: 1, 4, 64, 8>}]} {
    %0 = tpu.iota {dimensions = array<i32: 0>} : vector<64x1xi32>
    %c8_i32 = arith.constant 8 : i32
    %c0_i32 = arith.constant 0 : i32
    %1 = arith.cmpi eq, %c8_i32, %c0_i32 : i32
    %c1_i32 = arith.constant 1 : i32
    %2 = arith.select %1, %c1_i32, %c8_i32 : i32
    %3 = vector.broadcast %2 : i32 to vector<64x1xi32>
    %4 = arith.remsi %0, %3 : vector<64x1xi32>
    %c0_i32_0 = arith.constant 0 : i32
    %5 = vector.broadcast %c0_i32_0 : i32 to vector<64x1xi32>
    %6 = arith.cmpi ne, %4, %5 : vector<64x1xi32>
    %c0_i32_1 = arith.constant 0 : i32
    %7 = vector.broadcast %c0_i32_1 : i32 to vector<64x1xi32>
    %8 = arith.cmpi slt, %4, %7 : vector<64x1xi32>
    %c0_i32_2 = arith.constant 0 : i32
    %9 = arith.cmpi slt, %2, %c0_i32_2 : i32
    %10 = vector.broadcast %9 : i1 to vector<64x1xi1>
    %11 = vector.broadcast %10 : vector<64x1xi1> to vector<64x1xi1>
    %12 = arith.xori %8, %11 : vector<64x1xi1>
    %13 = arith.andi %12, %6 : vector<64x1xi1>
    %14 = vector.broadcast %2 : i32 to vector<64x1xi32>
    %15 = arith.addi %4, %14 : vector<64x1xi32>
    %16 = arith.select %13, %15, %4 : vector<64x1xi1>, vector<64x1xi32>
    %c0 = arith.constant 0 : index
    %c0_3 = arith.constant 0 : index
    %17 = vector.load %arg9[%c0, %c0_3] : memref<1x8xf32, #tpu.memory_space<vmem>>, vector<1x8xf32>
    %18 = vector.shape_cast %17 : vector<1x8xf32> to vector<1x8xf32>
    %19 = vector.broadcast %18 : vector<1x8xf32> to vector<64x8xf32>
    %c0_4 = arith.constant 0 : index
    %c0_5 = arith.constant 0 : index
    %c8 = arith.constant 8 : index
    %c0_6 = arith.constant 0 : index
    %20 = vector.load %arg2[%c0_4, %c0_5, %c8, %c0_6] : memref<1x1x80x4xbf16, #tpu.memory_space<vmem>>, vector<1x1x64x4xbf16>
    %21 = vector.shape_cast %20 : vector<1x1x64x4xbf16> to vector<64x4xbf16>
    %c0_7 = arith.constant 0 : index
    %c0_8 = arith.constant 0 : index
    %c0_9 = arith.constant 0 : index
    %22 = vector.load %arg8[%c0_7, %c0_8, %c0_9] : memref<9x4x8xbf16, #tpu.memory_space<vmem>>, vector<1x4x8xbf16>
    %23 = vector.shape_cast %22 : vector<1x4x8xbf16> to vector<4x8xbf16>
    %cst = arith.constant dense<0.000000e+00> : vector<64x8xf32>
    %24 = tpu.matmul %21, %23, %cst {dimension_numbers = #tpu.dot_dimension_numbers<[1], [0], [0], [1], [0, 0, 1, 1], [], []>} : vector<64x4xbf16>, vector<4x8xbf16>, vector<64x8xf32> -> vector<64x8xf32>
    %25 = arith.addf %19, %24 : vector<64x8xf32>
    %c0_10 = arith.constant 0 : index
    %c0_11 = arith.constant 0 : index
    %c8_12 = arith.constant 8 : index
    %c0_13 = arith.constant 0 : index
    %26 = vector.load %arg3[%c0_10, %c0_11, %c8_12, %c0_13] : memref<1x1x80x4xbf16, #tpu.memory_space<vmem>>, vector<1x1x64x4xbf16>
    %27 = vector.shape_cast %26 : vector<1x1x64x4xbf16> to vector<64x4xbf16>
    %c1 = arith.constant 1 : index
    %c0_14 = arith.constant 0 : index
    %c0_15 = arith.constant 0 : index
    %28 = vector.load %arg8[%c1, %c0_14, %c0_15] : memref<9x4x8xbf16, #tpu.memory_space<vmem>>, vector<1x4x8xbf16>
    %29 = vector.shape_cast %28 : vector<1x4x8xbf16> to vector<4x8xbf16>
    %cst_16 = arith.constant dense<0.000000e+00> : vector<64x8xf32>
    %30 = tpu.matmul %27, %29, %cst_16 {dimension_numbers = #tpu.dot_dimension_numbers<[1], [0], [0], [1], [0, 0, 1, 1], [], []>} : vector<64x4xbf16>, vector<4x8xbf16>, vector<64x8xf32> -> vector<64x8xf32>
    %31 = arith.addf %25, %30 : vector<64x8xf32>
    %c0_17 = arith.constant 0 : index
    %c0_18 = arith.constant 0 : index
    %c8_19 = arith.constant 8 : index
    %c0_20 = arith.constant 0 : index
    %32 = vector.load %arg4[%c0_17, %c0_18, %c8_19, %c0_20] : memref<1x1x80x4xbf16, #tpu.memory_space<vmem>>, vector<1x1x64x4xbf16>
    %33 = vector.shape_cast %32 : vector<1x1x64x4xbf16> to vector<64x4xbf16>
    %c2 = arith.constant 2 : index
    %c0_21 = arith.constant 0 : index
    %c0_22 = arith.constant 0 : index
    %34 = vector.load %arg8[%c2, %c0_21, %c0_22] : memref<9x4x8xbf16, #tpu.memory_space<vmem>>, vector<1x4x8xbf16>
    %35 = vector.shape_cast %34 : vector<1x4x8xbf16> to vector<4x8xbf16>
    %cst_23 = arith.constant dense<0.000000e+00> : vector<64x8xf32>
    %36 = tpu.matmul %33, %35, %cst_23 {dimension_numbers = #tpu.dot_dimension_numbers<[1], [0], [0], [1], [0, 0, 1, 1], [], []>} : vector<64x4xbf16>, vector<4x8xbf16>, vector<64x8xf32> -> vector<64x8xf32>
    %37 = arith.addf %31, %36 : vector<64x8xf32>
    %c0_24 = arith.constant 0 : index
    %c0_25 = arith.constant 0 : index
    %c0_26 = arith.constant 0 : index
    %c0_27 = arith.constant 0 : index
    %38 = vector.load %arg3[%c0_24, %c0_25, %c0_26, %c0_27] : memref<1x1x80x4xbf16, #tpu.memory_space<vmem>>, vector<1x1x64x4xbf16>
    %39 = vector.shape_cast %38 : vector<1x1x64x4xbf16> to vector<64x4xbf16>
    %c3 = arith.constant 3 : index
    %c0_28 = arith.constant 0 : index
    %c0_29 = arith.constant 0 : index
    %40 = vector.load %arg8[%c3, %c0_28, %c0_29] : memref<9x4x8xbf16, #tpu.memory_space<vmem>>, vector<1x4x8xbf16>
    %41 = vector.shape_cast %40 : vector<1x4x8xbf16> to vector<4x8xbf16>
    %cst_30 = arith.constant dense<0.000000e+00> : vector<64x8xf32>
    %42 = tpu.matmul %39, %41, %cst_30 {dimension_numbers = #tpu.dot_dimension_numbers<[1], [0], [0], [1], [0, 0, 1, 1], [], []>} : vector<64x4xbf16>, vector<4x8xbf16>, vector<64x8xf32> -> vector<64x8xf32>
    %43 = arith.addf %37, %42 : vector<64x8xf32>
    %c4 = arith.constant 4 : index
    %c0_31 = arith.constant 0 : index
    %c0_32 = arith.constant 0 : index
    %44 = vector.load %arg8[%c4, %c0_31, %c0_32] : memref<9x4x8xbf16, #tpu.memory_space<vmem>>, vector<1x4x8xbf16>
    %45 = vector.shape_cast %44 : vector<1x4x8xbf16> to vector<4x8xbf16>
    %cst_33 = arith.constant dense<0.000000e+00> : vector<64x8xf32>
    %46 = tpu.matmul %27, %45, %cst_33 {dimension_numbers = #tpu.dot_dimension_numbers<[1], [0], [0], [1], [0, 0, 1, 1], [], []>} : vector<64x4xbf16>, vector<4x8xbf16>, vector<64x8xf32> -> vector<64x8xf32>
    %47 = arith.addf %43, %46 : vector<64x8xf32>
    %c0_34 = arith.constant 0 : index
    %c0_35 = arith.constant 0 : index
    %c16 = arith.constant 16 : index
    %c0_36 = arith.constant 0 : index
    %48 = vector.load %arg3[%c0_34, %c0_35, %c16, %c0_36] : memref<1x1x80x4xbf16, #tpu.memory_space<vmem>>, vector<1x1x64x4xbf16>
    %49 = vector.shape_cast %48 : vector<1x1x64x4xbf16> to vector<64x4xbf16>
    %c5 = arith.constant 5 : index
    %c0_37 = arith.constant 0 : index
    %c0_38 = arith.constant 0 : index
    %50 = vector.load %arg8[%c5, %c0_37, %c0_38] : memref<9x4x8xbf16, #tpu.memory_space<vmem>>, vector<1x4x8xbf16>
    %51 = vector.shape_cast %50 : vector<1x4x8xbf16> to vector<4x8xbf16>
    %cst_39 = arith.constant dense<0.000000e+00> : vector<64x8xf32>
    %52 = tpu.matmul %49, %51, %cst_39 {dimension_numbers = #tpu.dot_dimension_numbers<[1], [0], [0], [1], [0, 0, 1, 1], [], []>} : vector<64x4xbf16>, vector<4x8xbf16>, vector<64x8xf32> -> vector<64x8xf32>
    %53 = arith.addf %47, %52 : vector<64x8xf32>
    %c0_40 = arith.constant 0 : index
    %c0_41 = arith.constant 0 : index
    %c7 = arith.constant 7 : index
    %c0_42 = arith.constant 0 : index
    %54 = vector.load %arg3[%c0_40, %c0_41, %c7, %c0_42] : memref<1x1x80x4xbf16, #tpu.memory_space<vmem>>, vector<1x1x64x4xbf16>
    %55 = vector.shape_cast %54 : vector<1x1x64x4xbf16> to vector<64x4xbf16>
    %c-1_i32 = arith.constant -1 : i32
    %56 = vector.broadcast %c-1_i32 : i32 to vector<64x1xi32>
    %57 = arith.addi %16, %56 : vector<64x1xi32>
    %c0_i32_43 = arith.constant 0 : i32
    %58 = vector.broadcast %c0_i32_43 : i32 to vector<64x1xi32>
    %59 = arith.cmpi sge, %57, %58 : vector<64x1xi32>
    %c-1_i32_44 = arith.constant -1 : i32
    %60 = vector.broadcast %c-1_i32_44 : i32 to vector<64x1xi32>
    %61 = arith.addi %16, %60 : vector<64x1xi32>
    %c8_i32_45 = arith.constant 8 : i32
    %62 = vector.broadcast %c8_i32_45 : i32 to vector<64x1xi32>
    %63 = arith.cmpi slt, %61, %62 : vector<64x1xi32>
    %64 = arith.andi %59, %63 : vector<64x1xi1>
    %cst_46 = arith.constant 0.000000e+00 : bf16
    %65 = vector.broadcast %cst_46 : bf16 to vector<64x4xbf16>
    %66 = vector.shape_cast %64 : vector<64x1xi1> to vector<64x1xi1>
    %67 = vector.broadcast %66 : vector<64x1xi1> to vector<64x4xi1>
    %68 = arith.select %67, %55, %65 : vector<64x4xi1>, vector<64x4xbf16>
    %c6 = arith.constant 6 : index
    %c0_47 = arith.constant 0 : index
    %c0_48 = arith.constant 0 : index
    %69 = vector.load %arg8[%c6, %c0_47, %c0_48] : memref<9x4x8xbf16, #tpu.memory_space<vmem>>, vector<1x4x8xbf16>
    %70 = vector.shape_cast %69 : vector<1x4x8xbf16> to vector<4x8xbf16>
    %cst_49 = arith.constant dense<0.000000e+00> : vector<64x8xf32>
    %71 = tpu.matmul %68, %70, %cst_49 {dimension_numbers = #tpu.dot_dimension_numbers<[1], [0], [0], [1], [0, 0, 1, 1], [], []>} : vector<64x4xbf16>, vector<4x8xbf16>, vector<64x8xf32> -> vector<64x8xf32>
    %72 = arith.addf %53, %71 : vector<64x8xf32>
    %c7_50 = arith.constant 7 : index
    %c0_51 = arith.constant 0 : index
    %c0_52 = arith.constant 0 : index
    %73 = vector.load %arg8[%c7_50, %c0_51, %c0_52] : memref<9x4x8xbf16, #tpu.memory_space<vmem>>, vector<1x4x8xbf16>
    %74 = vector.shape_cast %73 : vector<1x4x8xbf16> to vector<4x8xbf16>
    %cst_53 = arith.constant dense<0.000000e+00> : vector<64x8xf32>
    %75 = tpu.matmul %27, %74, %cst_53 {dimension_numbers = #tpu.dot_dimension_numbers<[1], [0], [0], [1], [0, 0, 1, 1], [], []>} : vector<64x4xbf16>, vector<4x8xbf16>, vector<64x8xf32> -> vector<64x8xf32>
    %76 = arith.addf %72, %75 : vector<64x8xf32>
    %c0_54 = arith.constant 0 : index
    %c0_55 = arith.constant 0 : index
    %c9 = arith.constant 9 : index
    %c0_56 = arith.constant 0 : index
    %77 = vector.load %arg3[%c0_54, %c0_55, %c9, %c0_56] : memref<1x1x80x4xbf16, #tpu.memory_space<vmem>>, vector<1x1x64x4xbf16>
    %78 = vector.shape_cast %77 : vector<1x1x64x4xbf16> to vector<64x4xbf16>
    %c1_i32_57 = arith.constant 1 : i32
    %79 = vector.broadcast %c1_i32_57 : i32 to vector<64x1xi32>
    %80 = arith.addi %16, %79 : vector<64x1xi32>
    %c0_i32_58 = arith.constant 0 : i32
    %81 = vector.broadcast %c0_i32_58 : i32 to vector<64x1xi32>
    %82 = arith.cmpi sge, %80, %81 : vector<64x1xi32>
    %c1_i32_59 = arith.constant 1 : i32
    %83 = vector.broadcast %c1_i32_59 : i32 to vector<64x1xi32>
    %84 = arith.addi %16, %83 : vector<64x1xi32>
    %c8_i32_60 = arith.constant 8 : i32
    %85 = vector.broadcast %c8_i32_60 : i32 to vector<64x1xi32>
    %86 = arith.cmpi slt, %84, %85 : vector<64x1xi32>
    %87 = arith.andi %82, %86 : vector<64x1xi1>
    %cst_61 = arith.constant 0.000000e+00 : bf16
    %88 = vector.broadcast %cst_61 : bf16 to vector<64x4xbf16>
    %89 = vector.shape_cast %87 : vector<64x1xi1> to vector<64x1xi1>
    %90 = vector.broadcast %89 : vector<64x1xi1> to vector<64x4xi1>
    %91 = arith.select %90, %78, %88 : vector<64x4xi1>, vector<64x4xbf16>
    %c8_62 = arith.constant 8 : index
    %c0_63 = arith.constant 0 : index
    %c0_64 = arith.constant 0 : index
    %92 = vector.load %arg8[%c8_62, %c0_63, %c0_64] : memref<9x4x8xbf16, #tpu.memory_space<vmem>>, vector<1x4x8xbf16>
    %93 = vector.shape_cast %92 : vector<1x4x8xbf16> to vector<4x8xbf16>
    %cst_65 = arith.constant dense<0.000000e+00> : vector<64x8xf32>
    %94 = tpu.matmul %91, %93, %cst_65 {dimension_numbers = #tpu.dot_dimension_numbers<[1], [0], [0], [1], [0, 0, 1, 1], [], []>} : vector<64x4xbf16>, vector<4x8xbf16>, vector<64x8xf32> -> vector<64x8xf32>
    %95 = arith.addf %76, %94 : vector<64x8xf32>
    %c0_66 = arith.constant 0 : index
    %c0_67 = arith.constant 0 : index
    %c0_68 = arith.constant 0 : index
    %c0_69 = arith.constant 0 : index
    %96 = vector.load %arg10[%c0_66, %c0_67, %c0_68, %c0_69] : memref<1x4x64x8xf32, #tpu.memory_space<vmem>>, vector<1x1x64x8xf32>
    %97 = vector.shape_cast %96 : vector<1x1x64x8xf32> to vector<64x8xf32>
    %98 = vector.shape_cast %95 : vector<64x8xf32> to vector<1x1x64x8xf32>
    tpu.vector_store %arg10[%c0_66, %c0_67, %c0_68, %c0_69], %98 {strides = array<i32>} : memref<1x4x64x8xf32, #tpu.memory_space<vmem>>, vector<1x1x64x8xf32>,
    %c0_70 = arith.constant 0 : index
    %c0_71 = arith.constant 0 : index
    %c8_72 = arith.constant 8 : index
    %c0_73 = arith.constant 0 : index
    %99 = vector.load %arg3[%c0_70, %c0_71, %c8_72, %c0_73] : memref<1x1x80x4xbf16, #tpu.memory_space<vmem>>, vector<1x1x64x4xbf16>
    %100 = vector.shape_cast %99 : vector<1x1x64x4xbf16> to vector<64x4xbf16>
    %c0_74 = arith.constant 0 : index
    %c0_75 = arith.constant 0 : index
    %c0_76 = arith.constant 0 : index
    %101 = vector.load %arg8[%c0_74, %c0_75, %c0_76] : memref<9x4x8xbf16, #tpu.memory_space<vmem>>, vector<1x4x8xbf16>
    %102 = vector.shape_cast %101 : vector<1x4x8xbf16> to vector<4x8xbf16>
    %cst_77 = arith.constant dense<0.000000e+00> : vector<64x8xf32>
    %103 = tpu.matmul %100, %102, %cst_77 {dimension_numbers = #tpu.dot_dimension_numbers<[1], [0], [0], [1], [0, 0, 1, 1], [], []>} : vector<64x4xbf16>, vector<4x8xbf16>, vector<64x8xf32> -> vector<64x8xf32>
    %104 = arith.addf %19, %103 : vector<64x8xf32>
    %c0_78 = arith.constant 0 : index
    %c0_79 = arith.constant 0 : index
    %c8_80 = arith.constant 8 : index
    %c0_81 = arith.constant 0 : index
    %105 = vector.load %arg4[%c0_78, %c0_79, %c8_80, %c0_81] : memref<1x1x80x4xbf16, #tpu.memory_space<vmem>>, vector<1x1x64x4xbf16>
    %106 = vector.shape_cast %105 : vector<1x1x64x4xbf16> to vector<64x4xbf16>
    %c1_82 = arith.constant 1 : index
    %c0_83 = arith.constant 0 : index
    %c0_84 = arith.constant 0 : index
    %107 = vector.load %arg8[%c1_82, %c0_83, %c0_84] : memref<9x4x8xbf16, #tpu.memory_space<vmem>>, vector<1x4x8xbf16>
    %108 = vector.shape_cast %107 : vector<1x4x8xbf16> to vector<4x8xbf16>
    %cst_85 = arith.constant dense<0.000000e+00> : vector<64x8xf32>
    %109 = tpu.matmul %106, %108, %cst_85 {dimension_numbers = #tpu.dot_dimension_numbers<[1], [0], [0], [1], [0, 0, 1, 1], [], []>} : vector<64x4xbf16>, vector<4x8xbf16>, vector<64x8xf32> -> vector<64x8xf32>
    %110 = arith.addf %104, %109 : vector<64x8xf32>
    %c0_86 = arith.constant 0 : index
    %c0_87 = arith.constant 0 : index
    %c8_88 = arith.constant 8 : index
    %c0_89 = arith.constant 0 : index
    %111 = vector.load %arg5[%c0_86, %c0_87, %c8_88, %c0_89] : memref<1x1x80x4xbf16, #tpu.memory_space<vmem>>, vector<1x1x64x4xbf16>
    %112 = vector.shape_cast %111 : vector<1x1x64x4xbf16> to vector<64x4xbf16>
    %c2_90 = arith.constant 2 : index
    %c0_91 = arith.constant 0 : index
    %c0_92 = arith.constant 0 : index
    %113 = vector.load %arg8[%c2_90, %c0_91, %c0_92] : memref<9x4x8xbf16, #tpu.memory_space<vmem>>, vector<1x4x8xbf16>
    %114 = vector.shape_cast %113 : vector<1x4x8xbf16> to vector<4x8xbf16>
    %cst_93 = arith.constant dense<0.000000e+00> : vector<64x8xf32>
    %115 = tpu.matmul %112, %114, %cst_93 {dimension_numbers = #tpu.dot_dimension_numbers<[1], [0], [0], [1], [0, 0, 1, 1], [], []>} : vector<64x4xbf16>, vector<4x8xbf16>, vector<64x8xf32> -> vector<64x8xf32>
    %116 = arith.addf %110, %115 : vector<64x8xf32>
    %c0_94 = arith.constant 0 : index
    %c0_95 = arith.constant 0 : index
    %c0_96 = arith.constant 0 : index
    %c0_97 = arith.constant 0 : index
    %117 = vector.load %arg4[%c0_94, %c0_95, %c0_96, %c0_97] : memref<1x1x80x4xbf16, #tpu.memory_space<vmem>>, vector<1x1x64x4xbf16>
    %118 = vector.shape_cast %117 : vector<1x1x64x4xbf16> to vector<64x4xbf16>
    %c3_98 = arith.constant 3 : index
    %c0_99 = arith.constant 0 : index
    %c0_100 = arith.constant 0 : index
    %119 = vector.load %arg8[%c3_98, %c0_99, %c0_100] : memref<9x4x8xbf16, #tpu.memory_space<vmem>>, vector<1x4x8xbf16>
    %120 = vector.shape_cast %119 : vector<1x4x8xbf16> to vector<4x8xbf16>
    %cst_101 = arith.constant dense<0.000000e+00> : vector<64x8xf32>
    %121 = tpu.matmul %118, %120, %cst_101 {dimension_numbers = #tpu.dot_dimension_numbers<[1], [0], [0], [1], [0, 0, 1, 1], [], []>} : vector<64x4xbf16>, vector<4x8xbf16>, vector<64x8xf32> -> vector<64x8xf32>
    %122 = arith.addf %116, %121 : vector<64x8xf32>
    %c4_102 = arith.constant 4 : index
    %c0_103 = arith.constant 0 : index
    %c0_104 = arith.constant 0 : index
    %123 = vector.load %arg8[%c4_102, %c0_103, %c0_104] : memref<9x4x8xbf16, #tpu.memory_space<vmem>>, vector<1x4x8xbf16>
    %124 = vector.shape_cast %123 : vector<1x4x8xbf16> to vector<4x8xbf16>
    %cst_105 = arith.constant dense<0.000000e+00> : vector<64x8xf32>
    %125 = tpu.matmul %106, %124, %cst_105 {dimension_numbers = #tpu.dot_dimension_numbers<[1], [0], [0], [1], [0, 0, 1, 1], [], []>} : vector<64x4xbf16>, vector<4x8xbf16>, vector<64x8xf32> -> vector<64x8xf32>
    %126 = arith.addf %122, %125 : vector<64x8xf32>
    %c0_106 = arith.constant 0 : index
    %c0_107 = arith.constant 0 : index
    %c16_108 = arith.constant 16 : index
    %c0_109 = arith.constant 0 : index
    %127 = vector.load %arg4[%c0_106, %c0_107, %c16_108, %c0_109] : memref<1x1x80x4xbf16, #tpu.memory_space<vmem>>, vector<1x1x64x4xbf16>
    %128 = vector.shape_cast %127 : vector<1x1x64x4xbf16> to vector<64x4xbf16>
    %c5_110 = arith.constant 5 : index
    %c0_111 = arith.constant 0 : index
    %c0_112 = arith.constant 0 : index
    %129 = vector.load %arg8[%c5_110, %c0_111, %c0_112] : memref<9x4x8xbf16, #tpu.memory_space<vmem>>, vector<1x4x8xbf16>
    %130 = vector.shape_cast %129 : vector<1x4x8xbf16> to vector<4x8xbf16>
    %cst_113 = arith.constant dense<0.000000e+00> : vector<64x8xf32>
    %131 = tpu.matmul %128, %130, %cst_113 {dimension_numbers = #tpu.dot_dimension_numbers<[1], [0], [0], [1], [0, 0, 1, 1], [], []>} : vector<64x4xbf16>, vector<4x8xbf16>, vector<64x8xf32> -> vector<64x8xf32>
    %132 = arith.addf %126, %131 : vector<64x8xf32>
    %c0_114 = arith.constant 0 : index
    %c0_115 = arith.constant 0 : index
    %c7_116 = arith.constant 7 : index
    %c0_117 = arith.constant 0 : index
    %133 = vector.load %arg4[%c0_114, %c0_115, %c7_116, %c0_117] : memref<1x1x80x4xbf16, #tpu.memory_space<vmem>>, vector<1x1x64x4xbf16>
    %134 = vector.shape_cast %133 : vector<1x1x64x4xbf16> to vector<64x4xbf16>
    %c-1_i32_118 = arith.constant -1 : i32
    %135 = vector.broadcast %c-1_i32_118 : i32 to vector<64x1xi32>
    %136 = arith.addi %16, %135 : vector<64x1xi32>
    %c0_i32_119 = arith.constant 0 : i32
    %137 = vector.broadcast %c0_i32_119 : i32 to vector<64x1xi32>
    %138 = arith.cmpi sge, %136, %137 : vector<64x1xi32>
    %c-1_i32_120 = arith.constant -1 : i32
    %139 = vector.broadcast %c-1_i32_120 : i32 to vector<64x1xi32>
    %140 = arith.addi %16, %139 : vector<64x1xi32>
    %c8_i32_121 = arith.constant 8 : i32
    %141 = vector.broadcast %c8_i32_121 : i32 to vector<64x1xi32>
    %142 = arith.cmpi slt, %140, %141 : vector<64x1xi32>
    %143 = arith.andi %138, %142 : vector<64x1xi1>
    %cst_122 = arith.constant 0.000000e+00 : bf16
    %144 = vector.broadcast %cst_122 : bf16 to vector<64x4xbf16>
    %145 = vector.shape_cast %143 : vector<64x1xi1> to vector<64x1xi1>
    %146 = vector.broadcast %145 : vector<64x1xi1> to vector<64x4xi1>
    %147 = arith.select %146, %134, %144 : vector<64x4xi1>, vector<64x4xbf16>
    %c6_123 = arith.constant 6 : index
    %c0_124 = arith.constant 0 : index
    %c0_125 = arith.constant 0 : index
    %148 = vector.load %arg8[%c6_123, %c0_124, %c0_125] : memref<9x4x8xbf16, #tpu.memory_space<vmem>>, vector<1x4x8xbf16>
    %149 = vector.shape_cast %148 : vector<1x4x8xbf16> to vector<4x8xbf16>
    %cst_126 = arith.constant dense<0.000000e+00> : vector<64x8xf32>
    %150 = tpu.matmul %147, %149, %cst_126 {dimension_numbers = #tpu.dot_dimension_numbers<[1], [0], [0], [1], [0, 0, 1, 1], [], []>} : vector<64x4xbf16>, vector<4x8xbf16>, vector<64x8xf32> -> vector<64x8xf32>
    %151 = arith.addf %132, %150 : vector<64x8xf32>
    %c7_127 = arith.constant 7 : index
    %c0_128 = arith.constant 0 : index
    %c0_129 = arith.constant 0 : index
    %152 = vector.load %arg8[%c7_127, %c0_128, %c0_129] : memref<9x4x8xbf16, #tpu.memory_space<vmem>>, vector<1x4x8xbf16>
    %153 = vector.shape_cast %152 : vector<1x4x8xbf16> to vector<4x8xbf16>
    %cst_130 = arith.constant dense<0.000000e+00> : vector<64x8xf32>
    %154 = tpu.matmul %106, %153, %cst_130 {dimension_numbers = #tpu.dot_dimension_numbers<[1], [0], [0], [1], [0, 0, 1, 1], [], []>} : vector<64x4xbf16>, vector<4x8xbf16>, vector<64x8xf32> -> vector<64x8xf32>
    %155 = arith.addf %151, %154 : vector<64x8xf32>
    %c0_131 = arith.constant 0 : index
    %c0_132 = arith.constant 0 : index
    %c9_133 = arith.constant 9 : index
    %c0_134 = arith.constant 0 : index
    %156 = vector.load %arg4[%c0_131, %c0_132, %c9_133, %c0_134] : memref<1x1x80x4xbf16, #tpu.memory_space<vmem>>, vector<1x1x64x4xbf16>
    %157 = vector.shape_cast %156 : vector<1x1x64x4xbf16> to vector<64x4xbf16>
    %c1_i32_135 = arith.constant 1 : i32
    %158 = vector.broadcast %c1_i32_135 : i32 to vector<64x1xi32>
    %159 = arith.addi %16, %158 : vector<64x1xi32>
    %c0_i32_136 = arith.constant 0 : i32
    %160 = vector.broadcast %c0_i32_136 : i32 to vector<64x1xi32>
    %161 = arith.cmpi sge, %159, %160 : vector<64x1xi32>
    %c1_i32_137 = arith.constant 1 : i32
    %162 = vector.broadcast %c1_i32_137 : i32 to vector<64x1xi32>
    %163 = arith.addi %16, %162 : vector<64x1xi32>
    %c8_i32_138 = arith.constant 8 : i32
    %164 = vector.broadcast %c8_i32_138 : i32 to vector<64x1xi32>
    %165 = arith.cmpi slt, %163, %164 : vector<64x1xi32>
    %166 = arith.andi %161, %165 : vector<64x1xi1>
    %cst_139 = arith.constant 0.000000e+00 : bf16
    %167 = vector.broadcast %cst_139 : bf16 to vector<64x4xbf16>
    %168 = vector.shape_cast %166 : vector<64x1xi1> to vector<64x1xi1>
    %169 = vector.broadcast %168 : vector<64x1xi1> to vector<64x4xi1>
    %170 = arith.select %169, %157, %167 : vector<64x4xi1>, vector<64x4xbf16>
    %c8_140 = arith.constant 8 : index
    %c0_141 = arith.constant 0 : index
    %c0_142 = arith.constant 0 : index
    %171 = vector.load %arg8[%c8_140, %c0_141, %c0_142] : memref<9x4x8xbf16, #tpu.memory_space<vmem>>, vector<1x4x8xbf16>
    %172 = vector.shape_cast %171 : vector<1x4x8xbf16> to vector<4x8xbf16>
    %cst_143 = arith.constant dense<0.000000e+00> : vector<64x8xf32>
    %173 = tpu.matmul %170, %172, %cst_143 {dimension_numbers = #tpu.dot_dimension_numbers<[1], [0], [0], [1], [0, 0, 1, 1], [], []>} : vector<64x4xbf16>, vector<4x8xbf16>, vector<64x8xf32> -> vector<64x8xf32>
    %174 = arith.addf %155, %173 : vector<64x8xf32>
    %c0_144 = arith.constant 0 : index
    %c1_145 = arith.constant 1 : index
    %c0_146 = arith.constant 0 : index
    %c0_147 = arith.constant 0 : index
    %175 = vector.load %arg10[%c0_144, %c1_145, %c0_146, %c0_147] : memref<1x4x64x8xf32, #tpu.memory_space<vmem>>, vector<1x1x64x8xf32>
    %176 = vector.shape_cast %175 : vector<1x1x64x8xf32> to vector<64x8xf32>
    %177 = vector.shape_cast %174 : vector<64x8xf32> to vector<1x1x64x8xf32>
    tpu.vector_store %arg10[%c0_144, %c1_145, %c0_146, %c0_147], %177 {strides = array<i32>} : memref<1x4x64x8xf32, #tpu.memory_space<vmem>>, vector<1x1x64x8xf32>,
    %c0_148 = arith.constant 0 : index
    %c0_149 = arith.constant 0 : index
    %c8_150 = arith.constant 8 : index
    %c0_151 = arith.constant 0 : index
    %178 = vector.load %arg4[%c0_148, %c0_149, %c8_150, %c0_151] : memref<1x1x80x4xbf16, #tpu.memory_space<vmem>>, vector<1x1x64x4xbf16>
    %179 = vector.shape_cast %178 : vector<1x1x64x4xbf16> to vector<64x4xbf16>
    %c0_152 = arith.constant 0 : index
    %c0_153 = arith.constant 0 : index
    %c0_154 = arith.constant 0 : index
    %180 = vector.load %arg8[%c0_152, %c0_153, %c0_154] : memref<9x4x8xbf16, #tpu.memory_space<vmem>>, vector<1x4x8xbf16>
    %181 = vector.shape_cast %180 : vector<1x4x8xbf16> to vector<4x8xbf16>
    %cst_155 = arith.constant dense<0.000000e+00> : vector<64x8xf32>
    %182 = tpu.matmul %179, %181, %cst_155 {dimension_numbers = #tpu.dot_dimension_numbers<[1], [0], [0], [1], [0, 0, 1, 1], [], []>} : vector<64x4xbf16>, vector<4x8xbf16>, vector<64x8xf32> -> vector<64x8xf32>
    %183 = arith.addf %19, %182 : vector<64x8xf32>
    %c0_156 = arith.constant 0 : index
    %c0_157 = arith.constant 0 : index
    %c8_158 = arith.constant 8 : index
    %c0_159 = arith.constant 0 : index
    %184 = vector.load %arg5[%c0_156, %c0_157, %c8_158, %c0_159] : memref<1x1x80x4xbf16, #tpu.memory_space<vmem>>, vector<1x1x64x4xbf16>
    %185 = vector.shape_cast %184 : vector<1x1x64x4xbf16> to vector<64x4xbf16>
    %c1_160 = arith.constant 1 : index
    %c0_161 = arith.constant 0 : index
    %c0_162 = arith.constant 0 : index
    %186 = vector.load %arg8[%c1_160, %c0_161, %c0_162] : memref<9x4x8xbf16, #tpu.memory_space<vmem>>, vector<1x4x8xbf16>
    %187 = vector.shape_cast %186 : vector<1x4x8xbf16> to vector<4x8xbf16>
    %cst_163 = arith.constant dense<0.000000e+00> : vector<64x8xf32>
    %188 = tpu.matmul %185, %187, %cst_163 {dimension_numbers = #tpu.dot_dimension_numbers<[1], [0], [0], [1], [0, 0, 1, 1], [], []>} : vector<64x4xbf16>, vector<4x8xbf16>, vector<64x8xf32> -> vector<64x8xf32>
    %189 = arith.addf %183, %188 : vector<64x8xf32>
    %c0_164 = arith.constant 0 : index
    %c0_165 = arith.constant 0 : index
    %c8_166 = arith.constant 8 : index
    %c0_167 = arith.constant 0 : index
    %190 = vector.load %arg6[%c0_164, %c0_165, %c8_166, %c0_167] : memref<1x1x80x4xbf16, #tpu.memory_space<vmem>>, vector<1x1x64x4xbf16>
    %191 = vector.shape_cast %190 : vector<1x1x64x4xbf16> to vector<64x4xbf16>
    %c2_168 = arith.constant 2 : index
    %c0_169 = arith.constant 0 : index
    %c0_170 = arith.constant 0 : index
    %192 = vector.load %arg8[%c2_168, %c0_169, %c0_170] : memref<9x4x8xbf16, #tpu.memory_space<vmem>>, vector<1x4x8xbf16>
    %193 = vector.shape_cast %192 : vector<1x4x8xbf16> to vector<4x8xbf16>
    %cst_171 = arith.constant dense<0.000000e+00> : vector<64x8xf32>
    %194 = tpu.matmul %191, %193, %cst_171 {dimension_numbers = #tpu.dot_dimension_numbers<[1], [0], [0], [1], [0, 0, 1, 1], [], []>} : vector<64x4xbf16>, vector<4x8xbf16>, vector<64x8xf32> -> vector<64x8xf32>
    %195 = arith.addf %189, %194 : vector<64x8xf32>
    %c0_172 = arith.constant 0 : index
    %c0_173 = arith.constant 0 : index
    %c0_174 = arith.constant 0 : index
    %c0_175 = arith.constant 0 : index
    %196 = vector.load %arg5[%c0_172, %c0_173, %c0_174, %c0_175] : memref<1x1x80x4xbf16, #tpu.memory_space<vmem>>, vector<1x1x64x4xbf16>
    %197 = vector.shape_cast %196 : vector<1x1x64x4xbf16> to vector<64x4xbf16>
    %c3_176 = arith.constant 3 : index
    %c0_177 = arith.constant 0 : index
    %c0_178 = arith.constant 0 : index
    %198 = vector.load %arg8[%c3_176, %c0_177, %c0_178] : memref<9x4x8xbf16, #tpu.memory_space<vmem>>, vector<1x4x8xbf16>
    %199 = vector.shape_cast %198 : vector<1x4x8xbf16> to vector<4x8xbf16>
    %cst_179 = arith.constant dense<0.000000e+00> : vector<64x8xf32>
    %200 = tpu.matmul %197, %199, %cst_179 {dimension_numbers = #tpu.dot_dimension_numbers<[1], [0], [0], [1], [0, 0, 1, 1], [], []>} : vector<64x4xbf16>, vector<4x8xbf16>, vector<64x8xf32> -> vector<64x8xf32>
    %201 = arith.addf %195, %200 : vector<64x8xf32>
    %c4_180 = arith.constant 4 : index
    %c0_181 = arith.constant 0 : index
    %c0_182 = arith.constant 0 : index
    %202 = vector.load %arg8[%c4_180, %c0_181, %c0_182] : memref<9x4x8xbf16, #tpu.memory_space<vmem>>, vector<1x4x8xbf16>
    %203 = vector.shape_cast %202 : vector<1x4x8xbf16> to vector<4x8xbf16>
    %cst_183 = arith.constant dense<0.000000e+00> : vector<64x8xf32>
    %204 = tpu.matmul %185, %203, %cst_183 {dimension_numbers = #tpu.dot_dimension_numbers<[1], [0], [0], [1], [0, 0, 1, 1], [], []>} : vector<64x4xbf16>, vector<4x8xbf16>, vector<64x8xf32> -> vector<64x8xf32>
    %205 = arith.addf %201, %204 : vector<64x8xf32>
    %c0_184 = arith.constant 0 : index
    %c0_185 = arith.constant 0 : index
    %c16_186 = arith.constant 16 : index
    %c0_187 = arith.constant 0 : index
    %206 = vector.load %arg5[%c0_184, %c0_185, %c16_186, %c0_187] : memref<1x1x80x4xbf16, #tpu.memory_space<vmem>>, vector<1x1x64x4xbf16>
    %207 = vector.shape_cast %206 : vector<1x1x64x4xbf16> to vector<64x4xbf16>
    %c5_188 = arith.constant 5 : index
    %c0_189 = arith.constant 0 : index
    %c0_190 = arith.constant 0 : index
    %208 = vector.load %arg8[%c5_188, %c0_189, %c0_190] : memref<9x4x8xbf16, #tpu.memory_space<vmem>>, vector<1x4x8xbf16>
    %209 = vector.shape_cast %208 : vector<1x4x8xbf16> to vector<4x8xbf16>
    %cst_191 = arith.constant dense<0.000000e+00> : vector<64x8xf32>
    %210 = tpu.matmul %207, %209, %cst_191 {dimension_numbers = #tpu.dot_dimension_numbers<[1], [0], [0], [1], [0, 0, 1, 1], [], []>} : vector<64x4xbf16>, vector<4x8xbf16>, vector<64x8xf32> -> vector<64x8xf32>
    %211 = arith.addf %205, %210 : vector<64x8xf32>
    %c0_192 = arith.constant 0 : index
    %c0_193 = arith.constant 0 : index
    %c7_194 = arith.constant 7 : index
    %c0_195 = arith.constant 0 : index
    %212 = vector.load %arg5[%c0_192, %c0_193, %c7_194, %c0_195] : memref<1x1x80x4xbf16, #tpu.memory_space<vmem>>, vector<1x1x64x4xbf16>
    %213 = vector.shape_cast %212 : vector<1x1x64x4xbf16> to vector<64x4xbf16>
    %c-1_i32_196 = arith.constant -1 : i32
    %214 = vector.broadcast %c-1_i32_196 : i32 to vector<64x1xi32>
    %215 = arith.addi %16, %214 : vector<64x1xi32>
    %c0_i32_197 = arith.constant 0 : i32
    %216 = vector.broadcast %c0_i32_197 : i32 to vector<64x1xi32>
    %217 = arith.cmpi sge, %215, %216 : vector<64x1xi32>
    %c-1_i32_198 = arith.constant -1 : i32
    %218 = vector.broadcast %c-1_i32_198 : i32 to vector<64x1xi32>
    %219 = arith.addi %16, %218 : vector<64x1xi32>
    %c8_i32_199 = arith.constant 8 : i32
    %220 = vector.broadcast %c8_i32_199 : i32 to vector<64x1xi32>
    %221 = arith.cmpi slt, %219, %220 : vector<64x1xi32>
    %222 = arith.andi %217, %221 : vector<64x1xi1>
    %cst_200 = arith.constant 0.000000e+00 : bf16
    %223 = vector.broadcast %cst_200 : bf16 to vector<64x4xbf16>
    %224 = vector.shape_cast %222 : vector<64x1xi1> to vector<64x1xi1>
    %225 = vector.broadcast %224 : vector<64x1xi1> to vector<64x4xi1>
    %226 = arith.select %225, %213, %223 : vector<64x4xi1>, vector<64x4xbf16>
    %c6_201 = arith.constant 6 : index
    %c0_202 = arith.constant 0 : index
    %c0_203 = arith.constant 0 : index
    %227 = vector.load %arg8[%c6_201, %c0_202, %c0_203] : memref<9x4x8xbf16, #tpu.memory_space<vmem>>, vector<1x4x8xbf16>
    %228 = vector.shape_cast %227 : vector<1x4x8xbf16> to vector<4x8xbf16>
    %cst_204 = arith.constant dense<0.000000e+00> : vector<64x8xf32>
    %229 = tpu.matmul %226, %228, %cst_204 {dimension_numbers = #tpu.dot_dimension_numbers<[1], [0], [0], [1], [0, 0, 1, 1], [], []>} : vector<64x4xbf16>, vector<4x8xbf16>, vector<64x8xf32> -> vector<64x8xf32>
    %230 = arith.addf %211, %229 : vector<64x8xf32>
    %c7_205 = arith.constant 7 : index
    %c0_206 = arith.constant 0 : index
    %c0_207 = arith.constant 0 : index
    %231 = vector.load %arg8[%c7_205, %c0_206, %c0_207] : memref<9x4x8xbf16, #tpu.memory_space<vmem>>, vector<1x4x8xbf16>
    %232 = vector.shape_cast %231 : vector<1x4x8xbf16> to vector<4x8xbf16>
    %cst_208 = arith.constant dense<0.000000e+00> : vector<64x8xf32>
    %233 = tpu.matmul %185, %232, %cst_208 {dimension_numbers = #tpu.dot_dimension_numbers<[1], [0], [0], [1], [0, 0, 1, 1], [], []>} : vector<64x4xbf16>, vector<4x8xbf16>, vector<64x8xf32> -> vector<64x8xf32>
    %234 = arith.addf %230, %233 : vector<64x8xf32>
    %c0_209 = arith.constant 0 : index
    %c0_210 = arith.constant 0 : index
    %c9_211 = arith.constant 9 : index
    %c0_212 = arith.constant 0 : index
    %235 = vector.load %arg5[%c0_209, %c0_210, %c9_211, %c0_212] : memref<1x1x80x4xbf16, #tpu.memory_space<vmem>>, vector<1x1x64x4xbf16>
    %236 = vector.shape_cast %235 : vector<1x1x64x4xbf16> to vector<64x4xbf16>
    %c1_i32_213 = arith.constant 1 : i32
    %237 = vector.broadcast %c1_i32_213 : i32 to vector<64x1xi32>
    %238 = arith.addi %16, %237 : vector<64x1xi32>
    %c0_i32_214 = arith.constant 0 : i32
    %239 = vector.broadcast %c0_i32_214 : i32 to vector<64x1xi32>
    %240 = arith.cmpi sge, %238, %239 : vector<64x1xi32>
    %c1_i32_215 = arith.constant 1 : i32
    %241 = vector.broadcast %c1_i32_215 : i32 to vector<64x1xi32>
    %242 = arith.addi %16, %241 : vector<64x1xi32>
    %c8_i32_216 = arith.constant 8 : i32
    %243 = vector.broadcast %c8_i32_216 : i32 to vector<64x1xi32>
    %244 = arith.cmpi slt, %242, %243 : vector<64x1xi32>
    %245 = arith.andi %240, %244 : vector<64x1xi1>
    %cst_217 = arith.constant 0.000000e+00 : bf16
    %246 = vector.broadcast %cst_217 : bf16 to vector<64x4xbf16>
    %247 = vector.shape_cast %245 : vector<64x1xi1> to vector<64x1xi1>
    %248 = vector.broadcast %247 : vector<64x1xi1> to vector<64x4xi1>
    %249 = arith.select %248, %236, %246 : vector<64x4xi1>, vector<64x4xbf16>
    %c8_218 = arith.constant 8 : index
    %c0_219 = arith.constant 0 : index
    %c0_220 = arith.constant 0 : index
    %250 = vector.load %arg8[%c8_218, %c0_219, %c0_220] : memref<9x4x8xbf16, #tpu.memory_space<vmem>>, vector<1x4x8xbf16>
    %251 = vector.shape_cast %250 : vector<1x4x8xbf16> to vector<4x8xbf16>
    %cst_221 = arith.constant dense<0.000000e+00> : vector<64x8xf32>
    %252 = tpu.matmul %249, %251, %cst_221 {dimension_numbers = #tpu.dot_dimension_numbers<[1], [0], [0], [1], [0, 0, 1, 1], [], []>} : vector<64x4xbf16>, vector<4x8xbf16>, vector<64x8xf32> -> vector<64x8xf32>
    %253 = arith.addf %234, %252 : vector<64x8xf32>
    %c0_222 = arith.constant 0 : index
    %c2_223 = arith.constant 2 : index
    %c0_224 = arith.constant 0 : index
    %c0_225 = arith.constant 0 : index
    %254 = vector.load %arg10[%c0_222, %c2_223, %c0_224, %c0_225] : memref<1x4x64x8xf32, #tpu.memory_space<vmem>>, vector<1x1x64x8xf32>
    %255 = vector.shape_cast %254 : vector<1x1x64x8xf32> to vector<64x8xf32>
    %256 = vector.shape_cast %253 : vector<64x8xf32> to vector<1x1x64x8xf32>
    tpu.vector_store %arg10[%c0_222, %c2_223, %c0_224, %c0_225], %256 {strides = array<i32>} : memref<1x4x64x8xf32, #tpu.memory_space<vmem>>, vector<1x1x64x8xf32>,
    %c0_226 = arith.constant 0 : index
    %c0_227 = arith.constant 0 : index
    %c8_228 = arith.constant 8 : index
    %c0_229 = arith.constant 0 : index
    %257 = vector.load %arg5[%c0_226, %c0_227, %c8_228, %c0_229] : memref<1x1x80x4xbf16, #tpu.memory_space<vmem>>, vector<1x1x64x4xbf16>
    %258 = vector.shape_cast %257 : vector<1x1x64x4xbf16> to vector<64x4xbf16>
    %c0_230 = arith.constant 0 : index
    %c0_231 = arith.constant 0 : index
    %c0_232 = arith.constant 0 : index
    %259 = vector.load %arg8[%c0_230, %c0_231, %c0_232] : memref<9x4x8xbf16, #tpu.memory_space<vmem>>, vector<1x4x8xbf16>
    %260 = vector.shape_cast %259 : vector<1x4x8xbf16> to vector<4x8xbf16>
    %cst_233 = arith.constant dense<0.000000e+00> : vector<64x8xf32>
    %261 = tpu.matmul %258, %260, %cst_233 {dimension_numbers = #tpu.dot_dimension_numbers<[1], [0], [0], [1], [0, 0, 1, 1], [], []>} : vector<64x4xbf16>, vector<4x8xbf16>, vector<64x8xf32> -> vector<64x8xf32>
    %262 = arith.addf %19, %261 : vector<64x8xf32>
    %c0_234 = arith.constant 0 : index
    %c0_235 = arith.constant 0 : index
    %c8_236 = arith.constant 8 : index
    %c0_237 = arith.constant 0 : index
    %263 = vector.load %arg6[%c0_234, %c0_235, %c8_236, %c0_237] : memref<1x1x80x4xbf16, #tpu.memory_space<vmem>>, vector<1x1x64x4xbf16>
    %264 = vector.shape_cast %263 : vector<1x1x64x4xbf16> to vector<64x4xbf16>
    %c1_238 = arith.constant 1 : index
    %c0_239 = arith.constant 0 : index
    %c0_240 = arith.constant 0 : index
    %265 = vector.load %arg8[%c1_238, %c0_239, %c0_240] : memref<9x4x8xbf16, #tpu.memory_space<vmem>>, vector<1x4x8xbf16>
    %266 = vector.shape_cast %265 : vector<1x4x8xbf16> to vector<4x8xbf16>
    %cst_241 = arith.constant dense<0.000000e+00> : vector<64x8xf32>
    %267 = tpu.matmul %264, %266, %cst_241 {dimension_numbers = #tpu.dot_dimension_numbers<[1], [0], [0], [1], [0, 0, 1, 1], [], []>} : vector<64x4xbf16>, vector<4x8xbf16>, vector<64x8xf32> -> vector<64x8xf32>
    %268 = arith.addf %262, %267 : vector<64x8xf32>
    %c0_242 = arith.constant 0 : index
    %c0_243 = arith.constant 0 : index
    %c8_244 = arith.constant 8 : index
    %c0_245 = arith.constant 0 : index
    %269 = vector.load %arg7[%c0_242, %c0_243, %c8_244, %c0_245] : memref<1x1x80x4xbf16, #tpu.memory_space<vmem>>, vector<1x1x64x4xbf16>
    %270 = vector.shape_cast %269 : vector<1x1x64x4xbf16> to vector<64x4xbf16>
    %c2_246 = arith.constant 2 : index
    %c0_247 = arith.constant 0 : index
    %c0_248 = arith.constant 0 : index
    %271 = vector.load %arg8[%c2_246, %c0_247, %c0_248] : memref<9x4x8xbf16, #tpu.memory_space<vmem>>, vector<1x4x8xbf16>
    %272 = vector.shape_cast %271 : vector<1x4x8xbf16> to vector<4x8xbf16>
    %cst_249 = arith.constant dense<0.000000e+00> : vector<64x8xf32>
    %273 = tpu.matmul %270, %272, %cst_249 {dimension_numbers = #tpu.dot_dimension_numbers<[1], [0], [0], [1], [0, 0, 1, 1], [], []>} : vector<64x4xbf16>, vector<4x8xbf16>, vector<64x8xf32> -> vector<64x8xf32>
    %274 = arith.addf %268, %273 : vector<64x8xf32>
    %c0_250 = arith.constant 0 : index
    %c0_251 = arith.constant 0 : index
    %c0_252 = arith.constant 0 : index
    %c0_253 = arith.constant 0 : index
    %275 = vector.load %arg6[%c0_250, %c0_251, %c0_252, %c0_253] : memref<1x1x80x4xbf16, #tpu.memory_space<vmem>>, vector<1x1x64x4xbf16>
    %276 = vector.shape_cast %275 : vector<1x1x64x4xbf16> to vector<64x4xbf16>
    %c3_254 = arith.constant 3 : index
    %c0_255 = arith.constant 0 : index
    %c0_256 = arith.constant 0 : index
    %277 = vector.load %arg8[%c3_254, %c0_255, %c0_256] : memref<9x4x8xbf16, #tpu.memory_space<vmem>>, vector<1x4x8xbf16>
    %278 = vector.shape_cast %277 : vector<1x4x8xbf16> to vector<4x8xbf16>
    %cst_257 = arith.constant dense<0.000000e+00> : vector<64x8xf32>
    %279 = tpu.matmul %276, %278, %cst_257 {dimension_numbers = #tpu.dot_dimension_numbers<[1], [0], [0], [1], [0, 0, 1, 1], [], []>} : vector<64x4xbf16>, vector<4x8xbf16>, vector<64x8xf32> -> vector<64x8xf32>
    %280 = arith.addf %274, %279 : vector<64x8xf32>
    %c4_258 = arith.constant 4 : index
    %c0_259 = arith.constant 0 : index
    %c0_260 = arith.constant 0 : index
    %281 = vector.load %arg8[%c4_258, %c0_259, %c0_260] : memref<9x4x8xbf16, #tpu.memory_space<vmem>>, vector<1x4x8xbf16>
    %282 = vector.shape_cast %281 : vector<1x4x8xbf16> to vector<4x8xbf16>
    %cst_261 = arith.constant dense<0.000000e+00> : vector<64x8xf32>
    %283 = tpu.matmul %264, %282, %cst_261 {dimension_numbers = #tpu.dot_dimension_numbers<[1], [0], [0], [1], [0, 0, 1, 1], [], []>} : vector<64x4xbf16>, vector<4x8xbf16>, vector<64x8xf32> -> vector<64x8xf32>
    %284 = arith.addf %280, %283 : vector<64x8xf32>
    %c0_262 = arith.constant 0 : index
    %c0_263 = arith.constant 0 : index
    %c16_264 = arith.constant 16 : index
    %c0_265 = arith.constant 0 : index
    %285 = vector.load %arg6[%c0_262, %c0_263, %c16_264, %c0_265] : memref<1x1x80x4xbf16, #tpu.memory_space<vmem>>, vector<1x1x64x4xbf16>
    %286 = vector.shape_cast %285 : vector<1x1x64x4xbf16> to vector<64x4xbf16>
    %c5_266 = arith.constant 5 : index
    %c0_267 = arith.constant 0 : index
    %c0_268 = arith.constant 0 : index
    %287 = vector.load %arg8[%c5_266, %c0_267, %c0_268] : memref<9x4x8xbf16, #tpu.memory_space<vmem>>, vector<1x4x8xbf16>
    %288 = vector.shape_cast %287 : vector<1x4x8xbf16> to vector<4x8xbf16>
    %cst_269 = arith.constant dense<0.000000e+00> : vector<64x8xf32>
    %289 = tpu.matmul %286, %288, %cst_269 {dimension_numbers = #tpu.dot_dimension_numbers<[1], [0], [0], [1], [0, 0, 1, 1], [], []>} : vector<64x4xbf16>, vector<4x8xbf16>, vector<64x8xf32> -> vector<64x8xf32>
    %290 = arith.addf %284, %289 : vector<64x8xf32>
    %c0_270 = arith.constant 0 : index
    %c0_271 = arith.constant 0 : index
    %c7_272 = arith.constant 7 : index
    %c0_273 = arith.constant 0 : index
    %291 = vector.load %arg6[%c0_270, %c0_271, %c7_272, %c0_273] : memref<1x1x80x4xbf16, #tpu.memory_space<vmem>>, vector<1x1x64x4xbf16>
    %292 = vector.shape_cast %291 : vector<1x1x64x4xbf16> to vector<64x4xbf16>
    %c-1_i32_274 = arith.constant -1 : i32
    %293 = vector.broadcast %c-1_i32_274 : i32 to vector<64x1xi32>
    %294 = arith.addi %16, %293 : vector<64x1xi32>
    %c0_i32_275 = arith.constant 0 : i32
    %295 = vector.broadcast %c0_i32_275 : i32 to vector<64x1xi32>
    %296 = arith.cmpi sge, %294, %295 : vector<64x1xi32>
    %c-1_i32_276 = arith.constant -1 : i32
    %297 = vector.broadcast %c-1_i32_276 : i32 to vector<64x1xi32>
    %298 = arith.addi %16, %297 : vector<64x1xi32>
    %c8_i32_277 = arith.constant 8 : i32
    %299 = vector.broadcast %c8_i32_277 : i32 to vector<64x1xi32>
    %300 = arith.cmpi slt, %298, %299 : vector<64x1xi32>
    %301 = arith.andi %296, %300 : vector<64x1xi1>
    %cst_278 = arith.constant 0.000000e+00 : bf16
    %302 = vector.broadcast %cst_278 : bf16 to vector<64x4xbf16>
    %303 = vector.shape_cast %301 : vector<64x1xi1> to vector<64x1xi1>
    %304 = vector.broadcast %303 : vector<64x1xi1> to vector<64x4xi1>
    %305 = arith.select %304, %292, %302 : vector<64x4xi1>, vector<64x4xbf16>
    %c6_279 = arith.constant 6 : index
    %c0_280 = arith.constant 0 : index
    %c0_281 = arith.constant 0 : index
    %306 = vector.load %arg8[%c6_279, %c0_280, %c0_281] : memref<9x4x8xbf16, #tpu.memory_space<vmem>>, vector<1x4x8xbf16>
    %307 = vector.shape_cast %306 : vector<1x4x8xbf16> to vector<4x8xbf16>
    %cst_282 = arith.constant dense<0.000000e+00> : vector<64x8xf32>
    %308 = tpu.matmul %305, %307, %cst_282 {dimension_numbers = #tpu.dot_dimension_numbers<[1], [0], [0], [1], [0, 0, 1, 1], [], []>} : vector<64x4xbf16>, vector<4x8xbf16>, vector<64x8xf32> -> vector<64x8xf32>
    %309 = arith.addf %290, %308 : vector<64x8xf32>
    %c7_283 = arith.constant 7 : index
    %c0_284 = arith.constant 0 : index
    %c0_285 = arith.constant 0 : index
    %310 = vector.load %arg8[%c7_283, %c0_284, %c0_285] : memref<9x4x8xbf16, #tpu.memory_space<vmem>>, vector<1x4x8xbf16>
    %311 = vector.shape_cast %310 : vector<1x4x8xbf16> to vector<4x8xbf16>
    %cst_286 = arith.constant dense<0.000000e+00> : vector<64x8xf32>
    %312 = tpu.matmul %264, %311, %cst_286 {dimension_numbers = #tpu.dot_dimension_numbers<[1], [0], [0], [1], [0, 0, 1, 1], [], []>} : vector<64x4xbf16>, vector<4x8xbf16>, vector<64x8xf32> -> vector<64x8xf32>
    %313 = arith.addf %309, %312 : vector<64x8xf32>
    %c0_287 = arith.constant 0 : index
    %c0_288 = arith.constant 0 : index
    %c9_289 = arith.constant 9 : index
    %c0_290 = arith.constant 0 : index
    %314 = vector.load %arg6[%c0_287, %c0_288, %c9_289, %c0_290] : memref<1x1x80x4xbf16, #tpu.memory_space<vmem>>, vector<1x1x64x4xbf16>
    %315 = vector.shape_cast %314 : vector<1x1x64x4xbf16> to vector<64x4xbf16>
    %c1_i32_291 = arith.constant 1 : i32
    %316 = vector.broadcast %c1_i32_291 : i32 to vector<64x1xi32>
    %317 = arith.addi %16, %316 : vector<64x1xi32>
    %c0_i32_292 = arith.constant 0 : i32
    %318 = vector.broadcast %c0_i32_292 : i32 to vector<64x1xi32>
    %319 = arith.cmpi sge, %317, %318 : vector<64x1xi32>
    %c1_i32_293 = arith.constant 1 : i32
    %320 = vector.broadcast %c1_i32_293 : i32 to vector<64x1xi32>
    %321 = arith.addi %16, %320 : vector<64x1xi32>
    %c8_i32_294 = arith.constant 8 : i32
    %322 = vector.broadcast %c8_i32_294 : i32 to vector<64x1xi32>
    %323 = arith.cmpi slt, %321, %322 : vector<64x1xi32>
    %324 = arith.andi %319, %323 : vector<64x1xi1>
    %cst_295 = arith.constant 0.000000e+00 : bf16
    %325 = vector.broadcast %cst_295 : bf16 to vector<64x4xbf16>
    %326 = vector.shape_cast %324 : vector<64x1xi1> to vector<64x1xi1>
    %327 = vector.broadcast %326 : vector<64x1xi1> to vector<64x4xi1>
    %328 = arith.select %327, %315, %325 : vector<64x4xi1>, vector<64x4xbf16>
    %c8_296 = arith.constant 8 : index
    %c0_297 = arith.constant 0 : index
    %c0_298 = arith.constant 0 : index
    %329 = vector.load %arg8[%c8_296, %c0_297, %c0_298] : memref<9x4x8xbf16, #tpu.memory_space<vmem>>, vector<1x4x8xbf16>
    %330 = vector.shape_cast %329 : vector<1x4x8xbf16> to vector<4x8xbf16>
    %cst_299 = arith.constant dense<0.000000e+00> : vector<64x8xf32>
    %331 = tpu.matmul %328, %330, %cst_299 {dimension_numbers = #tpu.dot_dimension_numbers<[1], [0], [0], [1], [0, 0, 1, 1], [], []>} : vector<64x4xbf16>, vector<4x8xbf16>, vector<64x8xf32> -> vector<64x8xf32>
    %332 = arith.addf %313, %331 : vector<64x8xf32>
    %c0_300 = arith.constant 0 : index
    %c3_301 = arith.constant 3 : index
    %c0_302 = arith.constant 0 : index
    %c0_303 = arith.constant 0 : index
    %333 = vector.load %arg10[%c0_300, %c3_301, %c0_302, %c0_303] : memref<1x4x64x8xf32, #tpu.memory_space<vmem>>, vector<1x1x64x8xf32>
    %334 = vector.shape_cast %333 : vector<1x1x64x8xf32> to vector<64x8xf32>
    %335 = vector.shape_cast %332 : vector<64x8xf32> to vector<1x1x64x8xf32>
    tpu.vector_store %arg10[%c0_300, %c3_301, %c0_302, %c0_303], %335 {strides = array<i32>} : memref<1x4x64x8xf32, #tpu.memory_space<vmem>>, vector<1x1x64x8xf32>,
    return
  }
  func.func @transform_0(%arg0: i32, %arg1: i32) -> (i32, i32, i32, i32) {
    %c4_i32 = arith.constant 4 : i32
    %0 = arith.muli %arg1, %c4_i32 : i32
    %c0_i32 = arith.constant 0 : i32
    %1 = arith.addi %0, %c0_i32 : i32
    %c0_i32_0 = arith.constant 0 : i32
    %c0_i32_1 = arith.constant 0 : i32
    %c0_i32_2 = arith.constant 0 : i32
    return %arg0, %1, %c0_i32_0, %c0_i32_1 : i32, i32, i32, i32
  }
  func.func @transform_1(%arg0: i32, %arg1: i32) -> (i32, i32, i32, i32) {
    %c4_i32 = arith.constant 4 : i32
    %0 = arith.muli %arg1, %c4_i32 : i32
    %c1_i32 = arith.constant 1 : i32
    %1 = arith.addi %0, %c1_i32 : i32
    %c0_i32 = arith.constant 0 : i32
    %c0_i32_0 = arith.constant 0 : i32
    %c0_i32_1 = arith.constant 0 : i32
    return %arg0, %1, %c0_i32, %c0_i32_0 : i32, i32, i32, i32
  }
  func.func @transform_2(%arg0: i32, %arg1: i32) -> (i32, i32, i32, i32) {
    %c4_i32 = arith.constant 4 : i32
    %0 = arith.muli %arg1, %c4_i32 : i32
    %c2_i32 = arith.constant 2 : i32
    %1 = arith.addi %0, %c2_i32 : i32
    %c0_i32 = arith.constant 0 : i32
    %c0_i32_0 = arith.constant 0 : i32
    %c0_i32_1 = arith.constant 0 : i32
    return %arg0, %1, %c0_i32, %c0_i32_0 : i32, i32, i32, i32
  }
  func.func @transform_3(%arg0: i32, %arg1: i32) -> (i32, i32, i32, i32) {
    %c4_i32 = arith.constant 4 : i32
    %0 = arith.muli %arg1, %c4_i32 : i32
    %c3_i32 = arith.constant 3 : i32
    %1 = arith.addi %0, %c3_i32 : i32
    %c0_i32 = arith.constant 0 : i32
    %c0_i32_0 = arith.constant 0 : i32
    %c0_i32_1 = arith.constant 0 : i32
    return %arg0, %1, %c0_i32, %c0_i32_0 : i32, i32, i32, i32
  }
  func.func @transform_4(%arg0: i32, %arg1: i32) -> (i32, i32, i32, i32) {
    %c4_i32 = arith.constant 4 : i32
    %0 = arith.muli %arg1, %c4_i32 : i32
    %c4_i32_0 = arith.constant 4 : i32
    %1 = arith.addi %0, %c4_i32_0 : i32
    %c0_i32 = arith.constant 0 : i32
    %c0_i32_1 = arith.constant 0 : i32
    %c0_i32_2 = arith.constant 0 : i32
    return %arg0, %1, %c0_i32, %c0_i32_1 : i32, i32, i32, i32
  }
  func.func @transform_5(%arg0: i32, %arg1: i32) -> (i32, i32, i32, i32) {
    %c4_i32 = arith.constant 4 : i32
    %0 = arith.muli %arg1, %c4_i32 : i32
    %c5_i32 = arith.constant 5 : i32
    %1 = arith.addi %0, %c5_i32 : i32
    %c0_i32 = arith.constant 0 : i32
    %c0_i32_0 = arith.constant 0 : i32
    %c0_i32_1 = arith.constant 0 : i32
    return %arg0, %1, %c0_i32, %c0_i32_0 : i32, i32, i32, i32
  }
  func.func @transform_6(%arg0: i32, %arg1: i32) -> (i32, i32, i32) {
    %c0_i32 = arith.constant 0 : i32
    %c0_i32_0 = arith.constant 0 : i32
    %c0_i32_1 = arith.constant 0 : i32
    %c0_i32_2 = arith.constant 0 : i32
    return %c0_i32, %c0_i32_0, %c0_i32_1 : i32, i32, i32
  }
  func.func @transform_7(%arg0: i32, %arg1: i32) -> (i32, i32) {
    %c0_i32 = arith.constant 0 : i32
    %c0_i32_0 = arith.constant 0 : i32
    %c0_i32_1 = arith.constant 0 : i32
    return %c0_i32, %c0_i32_0 : i32, i32
  }
  func.func @transform_8(%arg0: i32, %arg1: i32) -> (i32, i32, i32, i32) {
    %c0_i32 = arith.constant 0 : i32
    %c0_i32_0 = arith.constant 0 : i32
    %c0_i32_1 = arith.constant 0 : i32
    return %arg0, %arg1, %c0_i32, %c0_i32_0 : i32, i32, i32, i32
  }
}

</mosaic_0001>

<llo_original>
// kernel: tpu_custom_call.1
$region0: #{tpu_custom_call.1}
  #allocation0 [shape = 'u32[]', space=smem, size = 0x4, offset = 0x4, fixed_abs, tag = 'smem constant byte address 0x4 - core index']
  #allocation1 [shape = 'u32[144,128]{1,0:T(1,128)}', space=vmem, size = 0x12000, scoped, tag = 'internal scratch']
  %s0 = inlined_call_operand.vmem [shape: bf16[2,10,80,4], index: 0, kind: input, shape index: {}]
  %s1 = inlined_call_operand.vmem [shape: bf16[2,10,80,4], index: 1, kind: input, shape index: {}]
  %s2 = inlined_call_operand.vmem [shape: bf16[2,10,80,4], index: 2, kind: input, shape index: {}]
  %s3 = inlined_call_operand.vmem [shape: bf16[2,10,80,4], index: 3, kind: input, shape index: {}]
  %s4 = inlined_call_operand.vmem [shape: bf16[2,10,80,4], index: 4, kind: input, shape index: {}]
  %s5 = inlined_call_operand.vmem [shape: bf16[2,10,80,4], index: 5, kind: input, shape index: {}]
  %s6 = inlined_call_operand.vmem [shape: bf16[9,4,8], index: 6, kind: input, shape index: {}]
  %s7 = inlined_call_operand.vmem [shape: f32[1,8], index: 7, kind: input, shape index: {}]
  %s8 = inlined_call_operand.vmem [shape: f32[2,8,64,8], index: 8, kind: output, shape index: {}]
  %s9 = sld [smem:[#allocation0]]
  $region65: #{tpu_custom_call.1} parent=0
    _
  %s11 = ssub.s32 1, %s9
  %s12 = scalar_select 0, %s11, %s9
  loop: start=0, step=1, limit=6
  $region2: #{tpu_custom_call.1} parent=0 // loop_pre_header
    _
  $region3: #{tpu_custom_call.1} parent=0 // loop_header
    %s14 = sphi 0, %s18
    %p15 = scmp.ge.s32.totalorder %s14, 6
    %s21 = sphi 0, %s33
    %s22 = sphi 0, %s29
    %s23 = sphi 0, %s21
    %s24 = sphi 0, %s22
    %s25 = sphi 0, %s23
    %s26 = sphi 0, %s24
    %s40 = sphi 0, %s42
    %s43 = sphi 0, %s40
    %s44 = sphi 0, %s43
    %s60 = sphi 0, %s44
    %s72 = sphi 0, %s74
    %s75 = sphi 0, %s72
    %s76 = sphi 0, %s75
    %s92 = sphi 0, %s76
    %s104 = sphi 0, %s106
    %s107 = sphi 0, %s104
    %s108 = sphi 0, %s107
    %s124 = sphi 0, %s108
    %s136 = sphi 0, %s138
    %s139 = sphi 0, %s136
    %s140 = sphi 0, %s139
    %s156 = sphi 0, %s140
    %s168 = sphi 0, %s170
    %s171 = sphi 0, %s168
    %s172 = sphi 0, %s171
    %s188 = sphi 0, %s172
    %s200 = sphi 0, %s202
    %s203 = sphi 0, %s200
    %s204 = sphi 0, %s203
    %s220 = sphi 0, %s204
    %s224 = sphi 0, %s224
    %s226 = sphi 0, %s224
    %s227 = sphi 0, %s226
    %s241 = sphi 0, %s227
    %s245 = sphi 0, %s245
    %s247 = sphi 0, %s245
    %s248 = sphi 0, %s247
    %s262 = sphi 0, %s248
    %s270 = sphi 0, %s272
    %s273 = sphi 0, %s270
    %s274 = sphi 0, %s273
    %s290 = sphi 0, %s274
  $region4: #{tpu_custom_call.1} parent=0 // loop_header_branch
    %17 = sbr.rel (%p15) target = $region8
  $region5: #{tpu_custom_call.1} parent=0 // loop_body
    %s19 = ssub.s32 %s14, 1
    %s20 = ssub.s32 %s14, 2
    %s27 = sadd.s32 1, %s22
    %p28 = scmp.ge.s32.totalorder %s27, 2
    %s29 = scalar_select %p28, 0, %s27
    %s30 = sadd.s32 1, %s21
    %s31 = scalar_select %p28, %s30, %s21
    %p32 = scmp.ge.s32.totalorder %s31, 2
    %s33 = scalar_select %p32, 0, %s31
    %s34 = smul.u32 %s22, 4
    %s35 = smul.u32 %s29, 4
    %s36 = ssub.s32 %s21, %s33
    %s37 = ssub.s32 %s34, %s35
    %s38 = sor.u32 %s36, %s37
    %p39 = scmp.eq.s32.totalorder %s38, 0
    %s41 = sadd.s32 %s40, 1
    %s42 = scalar_select %p39, %s40, %s41
    %p45 = pneg %p39
    %p46 = scmp.eq.s32.totalorder %s14, 3
    %p47 = por %p45, %p46
    %p48 = scmp.ne.s32.totalorder %s40, %s43
    %p49 = scmp.eq.s32.totalorder %s14, 0
    %p50 = por %p48, %p49
    %p51 = scmp.ne.s32.totalorder %s40, %s43
    %p52 = scmp.eq.s32.totalorder %s19, 3
    %p53 = por %p51, %p52
    %p54 = scmp.ne.s32.totalorder %s43, %s44
    %p55 = scmp.eq.s32.totalorder %s19, 0
    %p56 = por %p54, %p55
    %p57 = scmp.ne.s32.totalorder %s43, %s44
    %p58 = scmp.eq.s32.totalorder %s20, 3
    %p59 = por %p57, %p58
    %p61 = scmp.ne.s32.totalorder %s44, %s60
    %p62 = scmp.eq.s32.totalorder %s20, 0
    %p63 = por %p61, %p62
    %s64 = smul.u32 %s22, 4
    %s65 = sadd.s32 %s64, 1
    %s66 = smul.u32 %s29, 4
    %s67 = sadd.s32 %s66, 1
    %s68 = ssub.s32 %s21, %s33
    %s69 = ssub.s32 %s65, %s67
    %s70 = sor.u32 %s68, %s69
    %p71 = scmp.eq.s32.totalorder %s70, 0
    %s73 = sadd.s32 %s72, 1
    %s74 = scalar_select %p71, %s72, %s73
    %p77 = pneg %p71
    %p78 = scmp.eq.s32.totalorder %s14, 3
    %p79 = por %p77, %p78
    %p80 = scmp.ne.s32.totalorder %s72, %s75
    %p81 = scmp.eq.s32.totalorder %s14, 0
    %p82 = por %p80, %p81
    %p83 = scmp.ne.s32.totalorder %s72, %s75
    %p84 = scmp.eq.s32.totalorder %s19, 3
    %p85 = por %p83, %p84
    %p86 = scmp.ne.s32.totalorder %s75, %s76
    %p87 = scmp.eq.s32.totalorder %s19, 0
    %p88 = por %p86, %p87
    %p89 = scmp.ne.s32.totalorder %s75, %s76
    %p90 = scmp.eq.s32.totalorder %s20, 3
    %p91 = por %p89, %p90
    %p93 = scmp.ne.s32.totalorder %s76, %s92
    %p94 = scmp.eq.s32.totalorder %s20, 0
    %p95 = por %p93, %p94
    %s96 = smul.u32 %s22, 4
    %s97 = sadd.s32 %s96, 2
    %s98 = smul.u32 %s29, 4
    %s99 = sadd.s32 %s98, 2
    %s100 = ssub.s32 %s21, %s33
    %s101 = ssub.s32 %s97, %s99
    %s102 = sor.u32 %s100, %s101
    %p103 = scmp.eq.s32.totalorder %s102, 0
    %s105 = sadd.s32 %s104, 1
    %s106 = scalar_select %p103, %s104, %s105
    %p109 = pneg %p103
    %p110 = scmp.eq.s32.totalorder %s14, 3
    %p111 = por %p109, %p110
    %p112 = scmp.ne.s32.totalorder %s104, %s107
    %p113 = scmp.eq.s32.totalorder %s14, 0
    %p114 = por %p112, %p113
    %p115 = scmp.ne.s32.totalorder %s104, %s107
    %p116 = scmp.eq.s32.totalorder %s19, 3
    %p117 = por %p115, %p116
    %p118 = scmp.ne.s32.totalorder %s107, %s108
    %p119 = scmp.eq.s32.totalorder %s19, 0
    %p120 = por %p118, %p119
    %p121 = scmp.ne.s32.totalorder %s107, %s108
    %p122 = scmp.eq.s32.totalorder %s20, 3
    %p123 = por %p121, %p122
    %p125 = scmp.ne.s32.totalorder %s108, %s124
    %p126 = scmp.eq.s32.totalorder %s20, 0
    %p127 = por %p125, %p126
    %s128 = smul.u32 %s22, 4
    %s129 = sadd.s32 %s128, 3
    %s130 = smul.u32 %s29, 4
    %s131 = sadd.s32 %s130, 3
    %s132 = ssub.s32 %s21, %s33
    %s133 = ssub.s32 %s129, %s131
    %s134 = sor.u32 %s132, %s133
    %p135 = scmp.eq.s32.totalorder %s134, 0
    %s137 = sadd.s32 %s136, 1
    %s138 = scalar_select %p135, %s136, %s137
    %p141 = pneg %p135
    %p142 = scmp.eq.s32.totalorder %s14, 3
    %p143 = por %p141, %p142
    %p144 = scmp.ne.s32.totalorder %s136, %s139
    %p145 = scmp.eq.s32.totalorder %s14, 0
    %p146 = por %p144, %p145
    %p147 = scmp.ne.s32.totalorder %s136, %s139
    %p148 = scmp.eq.s32.totalorder %s19, 3
    %p149 = por %p147, %p148
    %p150 = scmp.ne.s32.totalorder %s139, %s140
    %p151 = scmp.eq.s32.totalorder %s19, 0
    %p152 = por %p150, %p151
    %p153 = scmp.ne.s32.totalorder %s139, %s140
    %p154 = scmp.eq.s32.totalorder %s20, 3
    %p155 = por %p153, %p154
    %p157 = scmp.ne.s32.totalorder %s140, %s156
    %p158 = scmp.eq.s32.totalorder %s20, 0
    %p159 = por %p157, %p158
    %s160 = smul.u32 %s22, 4
    %s161 = sadd.s32 %s160, 4
    %s162 = smul.u32 %s29, 4
    %s163 = sadd.s32 %s162, 4
    %s164 = ssub.s32 %s21, %s33
    %s165 = ssub.s32 %s161, %s163
    %s166 = sor.u32 %s164, %s165
    %p167 = scmp.eq.s32.totalorder %s166, 0
    %s169 = sadd.s32 %s168, 1
    %s170 = scalar_select %p167, %s168, %s169
    %p173 = pneg %p167
    %p174 = scmp.eq.s32.totalorder %s14, 3
    %p175 = por %p173, %p174
    %p176 = scmp.ne.s32.totalorder %s168, %s171
    %p177 = scmp.eq.s32.totalorder %s14, 0
    %p178 = por %p176, %p177
    %p179 = scmp.ne.s32.totalorder %s168, %s171
    %p180 = scmp.eq.s32.totalorder %s19, 3
    %p181 = por %p179, %p180
    %p182 = scmp.ne.s32.totalorder %s171, %s172
    %p183 = scmp.eq.s32.totalorder %s19, 0
    %p184 = por %p182, %p183
    %p185 = scmp.ne.s32.totalorder %s171, %s172
    %p186 = scmp.eq.s32.totalorder %s20, 3
    %p187 = por %p185, %p186
    %p189 = scmp.ne.s32.totalorder %s172, %s188
    %p190 = scmp.eq.s32.totalorder %s20, 0
    %p191 = por %p189, %p190
    %s192 = smul.u32 %s22, 4
    %s193 = sadd.s32 %s192, 5
    %s194 = smul.u32 %s29, 4
    %s195 = sadd.s32 %s194, 5
    %s196 = ssub.s32 %s21, %s33
    %s197 = ssub.s32 %s193, %s195
    %s198 = sor.u32 %s196, %s197
    %p199 = scmp.eq.s32.totalorder %s198, 0
    %s201 = sadd.s32 %s200, 1
    %s202 = scalar_select %p199, %s200, %s201
    %p205 = pneg %p199
    %p206 = scmp.eq.s32.totalorder %s14, 3
    %p207 = por %p205, %p206
    %p208 = scmp.ne.s32.totalorder %s200, %s203
    %p209 = scmp.eq.s32.totalorder %s14, 0
    %p210 = por %p208, %p209
    %p211 = scmp.ne.s32.totalorder %s200, %s203
    %p212 = scmp.eq.s32.totalorder %s19, 3
    %p213 = por %p211, %p212
    %p214 = scmp.ne.s32.totalorder %s203, %s204
    %p215 = scmp.eq.s32.totalorder %s19, 0
    %p216 = por %p214, %p215
    %p217 = scmp.ne.s32.totalorder %s203, %s204
    %p218 = scmp.eq.s32.totalorder %s20, 3
    %p219 = por %p217, %p218
    %p221 = scmp.ne.s32.totalorder %s204, %s220
    %p222 = scmp.eq.s32.totalorder %s20, 0
    %p223 = por %p221, %p222
    %s225 = sadd.s32 %s224, 1
    %p228 = scmp.eq.s32.totalorder %s14, 3
    %p229 = scmp.ne.s32.totalorder %s224, %s226
    %p230 = scmp.eq.s32.totalorder %s14, 0
    %p231 = por %p229, %p230
    %p232 = scmp.ne.s32.totalorder %s224, %s226
    %p233 = scmp.eq.s32.totalorder %s19, 3
    %p234 = por %p232, %p233
    %p235 = scmp.ne.s32.totalorder %s226, %s227
    %p236 = scmp.eq.s32.totalorder %s19, 0
    %p237 = por %p235, %p236
    %p238 = scmp.ne.s32.totalorder %s226, %s227
    %p239 = scmp.eq.s32.totalorder %s20, 3
    %p240 = por %p238, %p239
    %p242 = scmp.ne.s32.totalorder %s227, %s241
    %p243 = scmp.eq.s32.totalorder %s20, 0
    %p244 = por %p242, %p243
    %s246 = sadd.s32 %s245, 1
    %p249 = scmp.eq.s32.totalorder %s14, 3
    %p250 = scmp.ne.s32.totalorder %s245, %s247
    %p251 = scmp.eq.s32.totalorder %s14, 0
    %p252 = por %p250, %p251
    %p253 = scmp.ne.s32.totalorder %s245, %s247
    %p254 = scmp.eq.s32.totalorder %s19, 3
    %p255 = por %p253, %p254
    %p256 = scmp.ne.s32.totalorder %s247, %s248
    %p257 = scmp.eq.s32.totalorder %s19, 0
    %p258 = por %p256, %p257
    %p259 = scmp.ne.s32.totalorder %s247, %s248
    %p260 = scmp.eq.s32.totalorder %s20, 3
    %p261 = por %p259, %p260
    %p263 = scmp.ne.s32.totalorder %s248, %s262
    %p264 = scmp.eq.s32.totalorder %s20, 0
    %p265 = por %p263, %p264
    %s266 = ssub.s32 %s21, %s33
    %s267 = ssub.s32 %s22, %s29
    %s268 = sor.u32 %s266, %s267
    %p269 = scmp.eq.s32.totalorder %s268, 0
    %s271 = sadd.s32 %s270, 1
    %s272 = scalar_select %p269, %s270, %s271
    %p275 = pneg %p269
    %p276 = scmp.eq.s32.totalorder %s14, 3
    %p277 = por %p275, %p276
    %p278 = scmp.ne.s32.totalorder %s270, %s273
    %p279 = scmp.eq.s32.totalorder %s14, 0
    %p280 = por %p278, %p279
    %p281 = scmp.ne.s32.totalorder %s270, %s273
    %p282 = scmp.eq.s32.totalorder %s19, 3
    %p283 = por %p281, %p282
    %p284 = scmp.ne.s32.totalorder %s273, %s274
    %p285 = scmp.eq.s32.totalorder %s19, 0
    %p286 = por %p284, %p285
    %p287 = scmp.ne.s32.totalorder %s273, %s274
    %p288 = scmp.eq.s32.totalorder %s20, 3
    %p289 = por %p287, %p288
    %p291 = scmp.ne.s32.totalorder %s274, %s290
    %p292 = scmp.eq.s32.totalorder %s20, 0
    %p293 = por %p291, %p292
    %p294 = scmp.le.s32.totalorder 1, %s14
    %p295 = scmp.lt.s32.totalorder %s14, 5
    %p296 = pnand %p294, %p295
    %p297 = pneg %p296
    // Predicated region
    $region9: #{tpu_custom_call.1} parent=5 // pred_check
      _
    $region10: #{tpu_custom_call.1} parent=5 // pred_check_branch
      %299 = sbr.rel (%p296) target = $region12
    $region11: #{tpu_custom_call.1} parent=5 // pred_region
      %s300 = ssub.s32 %s14, 1
      // Predicated region
      $region13: #{tpu_custom_call.1} parent=11 // pred_check
        %p301 = pneg %p237
      $region14: #{tpu_custom_call.1} parent=11 // pred_check_branch
        %303 = sbr.rel (%p301) target = $region16
      $region15: #{tpu_custom_call.1} parent=11 // pred_region
        _
      $region16: #{tpu_custom_call.1} parent=11 // pred_fallthru
        _
      // Predicated region
      $region17: #{tpu_custom_call.1} parent=11 // pred_check
        %p304 = pneg %p258
      $region18: #{tpu_custom_call.1} parent=11 // pred_check_branch
        %306 = sbr.rel (%p304) target = $region20
      $region19: #{tpu_custom_call.1} parent=11 // pred_region
        _
      $region20: #{tpu_custom_call.1} parent=11 // pred_fallthru
        _
    $region12: #{tpu_custom_call.1} parent=5 // pred_fallthru
      _
    %p307 = scmp.lt.s32.totalorder %s14, 4
    // Predicated region
    $region21: #{tpu_custom_call.1} parent=5 // pred_check
      %p308 = pneg %p307
    $region22: #{tpu_custom_call.1} parent=5 // pred_check_branch
      %310 = sbr.rel (%p308) target = $region24
    $region23: #{tpu_custom_call.1} parent=5 // pred_region
      // Predicated region
      $region25: #{tpu_custom_call.1} parent=23 // pred_check
        %p311 = pneg %p50
      $region26: #{tpu_custom_call.1} parent=23 // pred_check_branch
        %313 = sbr.rel (%p311) target = $region28
      $region27: #{tpu_custom_call.1} parent=23 // pred_region
        %s314 = smul.u32 %s22, 4
        %p315 = scmp.lt.s32.totalorder %s21, 1
        %s316 = scalar_select %p315, %s21, 1
        %p317 = scmp.lt.s32.totalorder %s314, 9
        %s318 = scalar_select %p317, %s314, 9
        %s319 = smul.addr %s318, 10
        %s320 = smul.addr %s316, 100
        %s321 = sadd.s32 %s319, %s320
        %s322 = smul.addr %s321, 4
        %s323 = scalar_lea.vmem %s0, %s322
        %s324 = smul.u32 %s22, 4
      $region28: #{tpu_custom_call.1} parent=23 // pred_fallthru
        _
      // Predicated region
      $region29: #{tpu_custom_call.1} parent=23 // pred_check
        %p325 = pneg %p82
      $region30: #{tpu_custom_call.1} parent=23 // pred_check_branch
        %327 = sbr.rel (%p325) target = $region32
      $region31: #{tpu_custom_call.1} parent=23 // pred_region
        %s328 = smul.u32 %s22, 4
        %s329 = sadd.s32 %s328, 1
        %p330 = scmp.lt.s32.totalorder %s21, 1
        %s331 = scalar_select %p330, %s21, 1
        %p332 = scmp.lt.s32.totalorder %s329, 9
        %s333 = scalar_select %p332, %s329, 9
        %s334 = smul.addr %s333, 10
        %s335 = smul.addr %s331, 100
        %s336 = sadd.s32 %s334, %s335
        %s337 = smul.addr %s336, 4
        %s338 = scalar_lea.vmem %s1, %s337
        %s339 = smul.u32 %s22, 4
        %s340 = sadd.s32 %s339, 1
      $region32: #{tpu_custom_call.1} parent=23 // pred_fallthru
        _
      // Predicated region
      $region33: #{tpu_custom_call.1} parent=23 // pred_check
        %p341 = pneg %p114
      $region34: #{tpu_custom_call.1} parent=23 // pred_check_branch
        %343 = sbr.rel (%p341) target = $region36
      $region35: #{tpu_custom_call.1} parent=23 // pred_region
        %s344 = smul.u32 %s22, 4
        %s345 = sadd.s32 %s344, 2
        %p346 = scmp.lt.s32.totalorder %s21, 1
        %s347 = scalar_select %p346, %s21, 1
        %p348 = scmp.lt.s32.totalorder %s345, 9
        %s349 = scalar_select %p348, %s345, 9
        %s350 = smul.addr %s349, 10
        %s351 = smul.addr %s347, 100
        %s352 = sadd.s32 %s350, %s351
        %s353 = smul.addr %s352, 4
        %s354 = scalar_lea.vmem %s2, %s353
        %s355 = smul.u32 %s22, 4
        %s356 = sadd.s32 %s355, 2
      $region36: #{tpu_custom_call.1} parent=23 // pred_fallthru
        _
      // Predicated region
      $region37: #{tpu_custom_call.1} parent=23 // pred_check
        %p357 = pneg %p146
      $region38: #{tpu_custom_call.1} parent=23 // pred_check_branch
        %359 = sbr.rel (%p357) target = $region40
      $region39: #{tpu_custom_call.1} parent=23 // pred_region
        %s360 = smul.u32 %s22, 4
        %s361 = sadd.s32 %s360, 3
        %p362 = scmp.lt.s32.totalorder %s21, 1
        %s363 = scalar_select %p362, %s21, 1
        %p364 = scmp.lt.s32.totalorder %s361, 9
        %s365 = scalar_select %p364, %s361, 9
        %s366 = smul.addr %s365, 10
        %s367 = smul.addr %s363, 100
        %s368 = sadd.s32 %s366, %s367
        %s369 = smul.addr %s368, 4
        %s370 = scalar_lea.vmem %s3, %s369
        %s371 = smul.u32 %s22, 4
        %s372 = sadd.s32 %s371, 3
      $region40: #{tpu_custom_call.1} parent=23 // pred_fallthru
        _
      // Predicated region
      $region41: #{tpu_custom_call.1} parent=23 // pred_check
        %p373 = pneg %p178
      $region42: #{tpu_custom_call.1} parent=23 // pred_check_branch
        %375 = sbr.rel (%p373) target = $region44
      $region43: #{tpu_custom_call.1} parent=23 // pred_region
        %s376 = smul.u32 %s22, 4
        %s377 = sadd.s32 %s376, 4
        %p378 = scmp.lt.s32.totalorder %s21, 1
        %s379 = scalar_select %p378, %s21, 1
        %p380 = scmp.lt.s32.totalorder %s377, 9
        %s381 = scalar_select %p380, %s377, 9
        %s382 = smul.addr %s381, 10
        %s383 = smul.addr %s379, 100
        %s384 = sadd.s32 %s382, %s383
        %s385 = smul.addr %s384, 4
        %s386 = scalar_lea.vmem %s4, %s385
        %s387 = smul.u32 %s22, 4
        %s388 = sadd.s32 %s387, 4
      $region44: #{tpu_custom_call.1} parent=23 // pred_fallthru
        _
      // Predicated region
      $region45: #{tpu_custom_call.1} parent=23 // pred_check
        %p389 = pneg %p210
      $region46: #{tpu_custom_call.1} parent=23 // pred_check_branch
        %391 = sbr.rel (%p389) target = $region48
      $region47: #{tpu_custom_call.1} parent=23 // pred_region
        %s392 = smul.u32 %s22, 4
        %s393 = sadd.s32 %s392, 5
        %p394 = scmp.lt.s32.totalorder %s21, 1
        %s395 = scalar_select %p394, %s21, 1
        %p396 = scmp.lt.s32.totalorder %s393, 9
        %s397 = scalar_select %p396, %s393, 9
        %s398 = smul.addr %s397, 10
        %s399 = smul.addr %s395, 100
        %s400 = sadd.s32 %s398, %s399
        %s401 = smul.addr %s400, 4
        %s402 = scalar_lea.vmem %s5, %s401
        %s403 = smul.u32 %s22, 4
        %s404 = sadd.s32 %s403, 5
      $region48: #{tpu_custom_call.1} parent=23 // pred_fallthru
        _
    $region24: #{tpu_custom_call.1} parent=5 // pred_fallthru
      _
    %p405 = scmp.le.s32.totalorder 1, %s14
    %p406 = scmp.lt.s32.totalorder %s14, 5
    %p407 = pnand %p405, %p406
    %p408 = pneg %p407
    // Predicated region
    $region49: #{tpu_custom_call.1} parent=5 // pred_check
      _
    $region50: #{tpu_custom_call.1} parent=5 // pred_check_branch
      %410 = sbr.rel (%p407) target = $region52
    $region51: #{tpu_custom_call.1} parent=5 // pred_region
      %s411 = ssub.s32 %s14, 1
      %s412 = smul.u32 %s24, 4
      %p413 = scmp.lt.s32.totalorder %s23, 1
      %s414 = scalar_select %p413, %s23, 1
      %p415 = scmp.lt.s32.totalorder %s412, 9
      %s416 = scalar_select %p415, %s412, 9
      %s417 = smul.addr %s416, 10
      %s418 = smul.addr %s414, 100
      %s419 = sadd.s32 %s417, %s418
      %s420 = smul.addr %s419, 4
      %s421 = scalar_lea.vmem %s0, %s420
      %p422 = pneg %p56
      %p423 = pneg %p53
      %s424 = smul.u32 %s24, 4
      %s425 = sadd.s32 %s424, 1
      %p426 = scmp.lt.s32.totalorder %s23, 1
      %s427 = scalar_select %p426, %s23, 1
      %p428 = scmp.lt.s32.totalorder %s425, 9
      %s429 = scalar_select %p428, %s425, 9
      %s430 = smul.addr %s429, 10
      %s431 = smul.addr %s427, 100
      %s432 = sadd.s32 %s430, %s431
      %s433 = smul.addr %s432, 4
      %s434 = scalar_lea.vmem %s1, %s433
      %p435 = pneg %p88
      %p436 = pneg %p85
      %s437 = smul.u32 %s24, 4
      %s438 = sadd.s32 %s437, 2
      %p439 = scmp.lt.s32.totalorder %s23, 1
      %s440 = scalar_select %p439, %s23, 1
      %p441 = scmp.lt.s32.totalorder %s438, 9
      %s442 = scalar_select %p441, %s438, 9
      %s443 = smul.addr %s442, 10
      %s444 = smul.addr %s440, 100
      %s445 = sadd.s32 %s443, %s444
      %s446 = smul.addr %s445, 4
      %s447 = scalar_lea.vmem %s2, %s446
      %p448 = pneg %p120
      %p449 = pneg %p117
      %s450 = smul.u32 %s24, 4
      %s451 = sadd.s32 %s450, 3
      %p452 = scmp.lt.s32.totalorder %s23, 1
      %s453 = scalar_select %p452, %s23, 1
      %p454 = scmp.lt.s32.totalorder %s451, 9
      %s455 = scalar_select %p454, %s451, 9
      %s456 = smul.addr %s455, 10
      %s457 = smul.addr %s453, 100
      %s458 = sadd.s32 %s456, %s457
      %s459 = smul.addr %s458, 4
      %s460 = scalar_lea.vmem %s3, %s459
      %p461 = pneg %p152
      %p462 = pneg %p149
      %s463 = smul.u32 %s24, 4
      %s464 = sadd.s32 %s463, 4
      %p465 = scmp.lt.s32.totalorder %s23, 1
      %s466 = scalar_select %p465, %s23, 1
      %p467 = scmp.lt.s32.totalorder %s464, 9
      %s468 = scalar_select %p467, %s464, 9
      %s469 = smul.addr %s468, 10
      %s470 = smul.addr %s466, 100
      %s471 = sadd.s32 %s469, %s470
      %s472 = smul.addr %s471, 4
      %s473 = scalar_lea.vmem %s4, %s472
      %p474 = pneg %p184
      %p475 = pneg %p181
      %s476 = smul.u32 %s24, 4
      %s477 = sadd.s32 %s476, 5
      %p478 = scmp.lt.s32.totalorder %s23, 1
      %s479 = scalar_select %p478, %s23, 1
      %p480 = scmp.lt.s32.totalorder %s477, 9
      %s481 = scalar_select %p480, %s477, 9
      %s482 = smul.addr %s481, 10
      %s483 = smul.addr %s479, 100
      %s484 = sadd.s32 %s482, %s483
      %s485 = smul.addr %s484, 4
      %s486 = scalar_lea.vmem %s5, %s485
      %p487 = pneg %p216
      %p488 = pneg %p213
      %p489 = pneg %p237
      %p490 = pneg %p234
      %p491 = pneg %p258
      %p492 = pneg %p255
      %p493 = pneg %p286
      %p494 = pneg %p283
      %s495 = smul.u32 4, %s24
      %p496 = scmp.lt.s32.totalorder %s23, 1
      %s497 = scalar_select %p496, %s23, 1
      %p498 = scmp.lt.s32.totalorder %s495, 7
      %s499 = scalar_select %p498, %s495, 7
      %s500 = smul.addr %s499, 8
      %s501 = smul.addr %s497, 64
      %s502 = sadd.s32 %s500, %s501
      %s503 = smul.addr %s502, 8
      %s504 = scalar_lea.vmem %s8, %s503
      %s505 = smul.u32 %s24, 4
      %p506 = scmp.lt.s32.totalorder %s23, 1
      %s507 = scalar_select %p506, %s23, 1
      %p508 = scmp.lt.s32.totalorder %s505, 9
      %s509 = scalar_select %p508, %s505, 9
      %s510 = smul.addr %s509, 10
      %s511 = smul.addr %s507, 100
      %s512 = sadd.s32 %s510, %s511
      %s513 = smul.addr %s512, 4
      %s514 = scalar_lea.vmem %s0, %s513
      %s515 = smul.u32 %s24, 4
      %s516 = smul.u32 %s24, 4
      %s517 = sadd.s32 %s516, 1
      %p518 = scmp.lt.s32.totalorder %s23, 1
      %s519 = scalar_select %p518, %s23, 1
      %p520 = scmp.lt.s32.totalorder %s517, 9
      %s521 = scalar_select %p520, %s517, 9
      %s522 = smul.addr %s521, 10
      %s523 = smul.addr %s519, 100
      %s524 = sadd.s32 %s522, %s523
      %s525 = smul.addr %s524, 4
      %s526 = scalar_lea.vmem %s1, %s525
      %s527 = smul.u32 %s24, 4
      %s528 = sadd.s32 %s527, 1
      %s529 = smul.u32 %s24, 4
      %s530 = sadd.s32 %s529, 2
      %p531 = scmp.lt.s32.totalorder %s23, 1
      %s532 = scalar_select %p531, %s23, 1
      %p533 = scmp.lt.s32.totalorder %s530, 9
      %s534 = scalar_select %p533, %s530, 9
      %s535 = smul.addr %s534, 10
      %s536 = smul.addr %s532, 100
      %s537 = sadd.s32 %s535, %s536
      %s538 = smul.addr %s537, 4
      %s539 = scalar_lea.vmem %s2, %s538
      %s540 = smul.u32 %s24, 4
      %s541 = sadd.s32 %s540, 2
      %s542 = smul.u32 %s24, 4
      %s543 = sadd.s32 %s542, 3
      %p544 = scmp.lt.s32.totalorder %s23, 1
      %s545 = scalar_select %p544, %s23, 1
      %p546 = scmp.lt.s32.totalorder %s543, 9
      %s547 = scalar_select %p546, %s543, 9
      %s548 = smul.addr %s547, 10
      %s549 = smul.addr %s545, 100
      %s550 = sadd.s32 %s548, %s549
      %s551 = smul.addr %s550, 4
      %s552 = scalar_lea.vmem %s3, %s551
      %s553 = smul.u32 %s24, 4
      %s554 = sadd.s32 %s553, 3
      %s555 = smul.u32 %s24, 4
      %s556 = sadd.s32 %s555, 4
      %p557 = scmp.lt.s32.totalorder %s23, 1
      %s558 = scalar_select %p557, %s23, 1
      %p559 = scmp.lt.s32.totalorder %s556, 9
      %s560 = scalar_select %p559, %s556, 9
      %s561 = smul.addr %s560, 10
      %s562 = smul.addr %s558, 100
      %s563 = sadd.s32 %s561, %s562
      %s564 = smul.addr %s563, 4
      %s565 = scalar_lea.vmem %s4, %s564
      %s566 = smul.u32 %s24, 4
      %s567 = sadd.s32 %s566, 4
      %s568 = smul.u32 %s24, 4
      %s569 = sadd.s32 %s568, 5
      %p570 = scmp.lt.s32.totalorder %s23, 1
      %s571 = scalar_select %p570, %s23, 1
      %p572 = scmp.lt.s32.totalorder %s569, 9
      %s573 = scalar_select %p572, %s569, 9
      %s574 = smul.addr %s573, 10
      %s575 = smul.addr %s571, 100
      %s576 = sadd.s32 %s574, %s575
      %s577 = smul.addr %s576, 4
      %s578 = scalar_lea.vmem %s5, %s577
      %s579 = smul.u32 %s24, 4
      %s580 = sadd.s32 %s579, 5
      %s581 = smul.u32 4, %s24
      %p582 = scmp.lt.s32.totalorder %s23, 1
      %s583 = scalar_select %p582, %s23, 1
      %p584 = scmp.lt.s32.totalorder %s581, 7
      %s585 = scalar_select %p584, %s581, 7
      %s586 = smul.addr %s585, 8
      %s587 = smul.addr %s583, 64
      %s588 = sadd.s32 %s586, %s587
      %s589 = smul.addr %s588, 8
      %s590 = scalar_lea.vmem %s8, %s589
      %s591 = smul.u32 4, %s24
      %v595 = vlaneseq
      %v596 = vshrl.u32 %v595, 7
      %v597 = vadd.s32 %v596, 8
      %v598 = vadd.s32 %v596, 16
      %v599 = vadd.s32 %v596, 24
      %v600 = vadd.s32 %v596, 32
      %v601 = vadd.s32 %v596, 40
      %v602 = vadd.s32 %v596, 48
      %v603 = vadd.s32 %v596, 56
      %vm604 = vcmp.lt.s32.totalorder %v596, 0
      %v605 = vsub.s32 0, %v596
      %v606 = vsel %vm604, %v605, %v596
      %v607 = vshrl.u32 %v606, 3
      %v608 = vand.u32 %v606, 7
      %v609 = vsub.s32 0, %v608
      %v610 = vsel %vm604, %v609, %v608
      %vm611 = vcmp.lt.s32.totalorder %v597, 0
      %v612 = vsub.s32 0, %v597
      %v613 = vsel %vm611, %v612, %v597
      %v614 = vshrl.u32 %v613, 3
      %v615 = vand.u32 %v613, 7
      %v616 = vsub.s32 0, %v615
      %v617 = vsel %vm611, %v616, %v615
      %vm618 = vcmp.lt.s32.totalorder %v598, 0
      %v619 = vsub.s32 0, %v598
      %v620 = vsel %vm618, %v619, %v598
      %v621 = vshrl.u32 %v620, 3
      %v622 = vand.u32 %v620, 7
      %v623 = vsub.s32 0, %v622
      %v624 = vsel %vm618, %v623, %v622
      %vm625 = vcmp.lt.s32.totalorder %v599, 0
      %v626 = vsub.s32 0, %v599
      %v627 = vsel %vm625, %v626, %v599
      %v628 = vshrl.u32 %v627, 3
      %v629 = vand.u32 %v627, 7
      %v630 = vsub.s32 0, %v629
      %v631 = vsel %vm625, %v630, %v629
      %vm632 = vcmp.lt.s32.totalorder %v600, 0
      %v633 = vsub.s32 0, %v600
      %v634 = vsel %vm632, %v633, %v600
      %v635 = vshrl.u32 %v634, 3
      %v636 = vand.u32 %v634, 7
      %v637 = vsub.s32 0, %v636
      %v638 = vsel %vm632, %v637, %v636
      %vm639 = vcmp.lt.s32.totalorder %v601, 0
      %v640 = vsub.s32 0, %v601
      %v641 = vsel %vm639, %v640, %v601
      %v642 = vshrl.u32 %v641, 3
      %v643 = vand.u32 %v641, 7
      %v644 = vsub.s32 0, %v643
      %v645 = vsel %vm639, %v644, %v643
      %vm646 = vcmp.lt.s32.totalorder %v602, 0
      %v647 = vsub.s32 0, %v602
      %v648 = vsel %vm646, %v647, %v602
      %v649 = vshrl.u32 %v648, 3
      %v650 = vand.u32 %v648, 7
      %v651 = vsub.s32 0, %v650
      %v652 = vsel %vm646, %v651, %v650
      %vm653 = vcmp.lt.s32.totalorder %v603, 0
      %v654 = vsub.s32 0, %v603
      %v655 = vsel %vm653, %v654, %v603
      %v656 = vshrl.u32 %v655, 3
      %v657 = vand.u32 %v655, 7
      %v658 = vsub.s32 0, %v657
      %v659 = vsel %vm653, %v658, %v657
      %vm660 = vcmp.ne.s32.totalorder %v610, 0
      %vm661 = vcmp.ne.s32.totalorder %v617, 0
      %vm662 = vcmp.ne.s32.totalorder %v624, 0
      %vm663 = vcmp.ne.s32.totalorder %v631, 0
      %vm664 = vcmp.ne.s32.totalorder %v638, 0
      %vm665 = vcmp.ne.s32.totalorder %v645, 0
      %vm666 = vcmp.ne.s32.totalorder %v652, 0
      %vm667 = vcmp.ne.s32.totalorder %v659, 0
      %vm668 = vcmp.lt.s32.totalorder %v610, 0
      %vm669 = vcmp.lt.s32.totalorder %v617, 0
      %vm670 = vcmp.lt.s32.totalorder %v624, 0
      %vm671 = vcmp.lt.s32.totalorder %v631, 0
      %vm672 = vcmp.lt.s32.totalorder %v638, 0
      %vm673 = vcmp.lt.s32.totalorder %v645, 0
      %vm674 = vcmp.lt.s32.totalorder %v652, 0
      %vm675 = vcmp.lt.s32.totalorder %v659, 0
      %vm676 = vmand %vm668, %vm660
      %vm677 = vmand %vm669, %vm661
      %vm678 = vmand %vm670, %vm662
      %vm679 = vmand %vm671, %vm663
      %vm680 = vmand %vm672, %vm664
      %vm681 = vmand %vm673, %vm665
      %vm682 = vmand %vm674, %vm666
      %vm683 = vmand %vm675, %vm667
      %v684 = vadd.s32 %v610, 8
      %v685 = vadd.s32 %v617, 8
      %v686 = vadd.s32 %v624, 8
      %v687 = vadd.s32 %v631, 8
      %v688 = vadd.s32 %v638, 8
      %v689 = vadd.s32 %v645, 8
      %v690 = vadd.s32 %v652, 8
      %v691 = vadd.s32 %v659, 8
      %v692 = vsel %vm676, %v684, %v610
      %v693 = vsel %vm677, %v685, %v617
      %v694 = vsel %vm678, %v686, %v624
      %v695 = vsel %vm679, %v687, %v631
      %v696 = vsel %vm680, %v688, %v638
      %v697 = vsel %vm681, %v689, %v645
      %v698 = vsel %vm682, %v690, %v652
      %v699 = vsel %vm683, %v691, %v659
      %v700 = vld [vmem:[%s7] sm:$0x1]
      %v702 = vlaneseq
      %v703 = vshrl.u32 %v702, 7
      %v704 = vsub.s32 0, %v703
      %v705 = vrot.slane %v700, %v704
      %v707 = vld [vmem:[%s514 + $0x4] sm:$0xf]
      %v708 = vld [vmem:[%s514 + $0x8] sm:$0xf]
      %v709 = vld [vmem:[%s514 + $0xc] sm:$0xf]
      %v710 = vld [vmem:[%s514 + $0x10] sm:$0xf]
      %v711 = vld [vmem:[%s514 + $0x14] sm:$0xf]
      %v712 = vld [vmem:[%s514 + $0x18] sm:$0xf]
      %v713 = vld [vmem:[%s514 + $0x1c] sm:$0xf]
      %v714 = vld [vmem:[%s514 + $0x20] sm:$0xf]
      %v715 = vld [vmem:[%s6] sm:$0x3]
      %v724 = vunpack.c.l.b16 %v707
      %v725 = vunpack.c.l.b16 %v708
      %v726 = vunpack.c.l.b16 %v709
      %v727 = vunpack.c.l.b16 %v710
      %v728 = vunpack.c.l.b16 %v711
      %v729 = vunpack.c.l.b16 %v712
      %v730 = vunpack.c.l.b16 %v713
      %v731 = vunpack.c.l.b16 %v714
      %v732 = vpack.c.b16 %v725, %v724
      %v733 = vpack.c.b16 %v727, %v726
      %v734 = vpack.c.b16 %v729, %v728
      %v735 = vpack.c.b16 %v731, %v730
      %vm736 = vcmask 31744
      %v738 = vsel %vm736, %v732, 0
      %v741 = vsel %vm736, %v733, 0
      %v744 = vsel %vm736, %v734, 0
      %v747 = vsel %vm736, %v735, 0
      %vm749 = vcmask 1041408
      %v751 = vsel %vm749, %v715, 0
      %753 = vmatprep.subr.bf16.mxu0 0
      %754 = vmatpush1.bf16.msra.mxu0 %v751
      %755 = vmatprep.subr.bf16.mxu0 0
      %756 = vmatpush1.bf16.msra.mxu0 0
      %757 = vmatprep.subr.bf16.mxu0 0
      %758 = vmatpush1.bf16.msra.mxu0 0
      %759 = vmatprep.subr.bf16.mxu0 0
      %760 = vmatpush1.bf16.msra.mxu0 0
      %761 = vmatprep.subr.bf16.mxu0 0
      %762 = vmatpush1.bf16.msra.mxu0 0
      %763 = vmatprep.subr.bf16.mxu0 0
      %764 = vmatpush1.bf16.msra.mxu0 0
      %765 = vmatprep.subr.bf16.mxu0 0
      %766 = vmatpush1.bf16.msra.mxu0 0
      %767 = vmatprep.subr.bf16.mxu0 0
      %768 = vmatpush1.bf16.msra.mxu0 0
      %769 = vmatprep.subr.bf16.mxu0 0
      %770 = vmatpush1.bf16.msra.mxu0 0
      %771 = vmatprep.subr.bf16.mxu0 0
      %772 = vmatpush1.bf16.msra.mxu0 0
      %773 = vmatprep.subr.bf16.mxu0 0
      %774 = vmatpush1.bf16.msra.mxu0 0
      %775 = vmatprep.subr.bf16.mxu0 0
      %776 = vmatpush1.bf16.msra.mxu0 0
      %777 = vmatprep.subr.bf16.mxu0 0
      %778 = vmatpush1.bf16.msra.mxu0 0
      %779 = vmatprep.subr.bf16.mxu0 0
      %780 = vmatpush1.bf16.msra.mxu0 0
      %781 = vmatprep.subr.bf16.mxu0 0
      %782 = vmatpush1.bf16.msra.mxu0 0
      %783 = vmatprep.subr.bf16.mxu0 0
      %784 = vmatpush1.bf16.msra.mxu0 0
      %785 = vmatprep.mubr.bf16.mxu0 0
      %786 = vmatmul.mubr.bf16.gmra.mrb[0].mxu0 %v738
      %v787 = vpop.f32.mrb[0].mxu0
      %v788 = vadd.f32 0.0, %v787
      %v789 = vpop.f32.mrb[0].mxu0
      %v790 = vpop.f32.mrb[0].mxu0
      %v791 = vadd.f32 0.0, %v790
      %v792 = vpop.f32.mrb[0].mxu0
      %793 = vmatprep.mubr.bf16.mxu0 0
      %794 = vmatmul.mubr.bf16.gmra.mrb[0].mxu0 %v741
      %v795 = vpop.f32.mrb[0].mxu0
      %v796 = vadd.f32 0.0, %v795
      %v797 = vpop.f32.mrb[0].mxu0
      %v798 = vpop.f32.mrb[0].mxu0
      %v799 = vadd.f32 0.0, %v798
      %v800 = vpop.f32.mrb[0].mxu0
      %801 = vmatprep.mubr.bf16.mxu0 0
      %802 = vmatmul.mubr.bf16.gmra.mrb[0].mxu0 %v744
      %v803 = vpop.f32.mrb[0].mxu0
      %v804 = vadd.f32 0.0, %v803
      %v805 = vpop.f32.mrb[0].mxu0
      %v806 = vpop.f32.mrb[0].mxu0
      %v807 = vadd.f32 0.0, %v806
      %v808 = vpop.f32.mrb[0].mxu0
      %809 = vmatprep.mubr.bf16.mxu0 0
      %810 = vmatmul.mubr.bf16.gmra.mrb[0].mxu0 %v747
      %v811 = vpop.f32.mrb[0].mxu0
      %v812 = vadd.f32 0.0, %v811
      %v813 = vpop.f32.mrb[0].mxu0
      %v814 = vpop.f32.mrb[0].mxu0
      %v815 = vadd.f32 0.0, %v814
      %v816 = vpop.f32.mrb[0].mxu0
      %817 = vdwg.mxu0
      %v818 = vadd.f32 %v705, %v788
      %v819 = vadd.f32 %v705, %v791
      %v820 = vadd.f32 %v705, %v796
      %v821 = vadd.f32 %v705, %v799
      %v822 = vadd.f32 %v705, %v804
      %v823 = vadd.f32 %v705, %v807
      %v824 = vadd.f32 %v705, %v812
      %v825 = vadd.f32 %v705, %v815
      %v826 = vld [vmem:[%s526 + $0x4] sm:$0xf]
      %v827 = vld [vmem:[%s526 + $0x8] sm:$0xf]
      %v828 = vld [vmem:[%s526 + $0xc] sm:$0xf]
      %v829 = vld [vmem:[%s526 + $0x10] sm:$0xf]
      %v830 = vld [vmem:[%s526 + $0x14] sm:$0xf]
      %v831 = vld [vmem:[%s526 + $0x18] sm:$0xf]
      %v832 = vld [vmem:[%s526 + $0x1c] sm:$0xf]
      %v833 = vld [vmem:[%s526 + $0x20] sm:$0xf]
      %s834 = scalar_lea.vmem %s6, 2
      %v835 = vld [vmem:[%s834] sm:$0x3]
      %v844 = vunpack.c.l.b16 %v826
      %v845 = vunpack.c.l.b16 %v827
      %v846 = vunpack.c.l.b16 %v828
      %v847 = vunpack.c.l.b16 %v829
      %v848 = vunpack.c.l.b16 %v830
      %v849 = vunpack.c.l.b16 %v831
      %v850 = vunpack.c.l.b16 %v832
      %v851 = vunpack.c.l.b16 %v833
      %v852 = vpack.c.b16 %v845, %v844
      %v853 = vpack.c.b16 %v847, %v846
      %v854 = vpack.c.b16 %v849, %v848
      %v855 = vpack.c.b16 %v851, %v850
      %v857 = vsel %vm736, %v852, 0
      %v860 = vsel %vm736, %v853, 0
      %v863 = vsel %vm736, %v854, 0
      %v866 = vsel %vm736, %v855, 0
      %v869 = vsel %vm749, %v835, 0
      %871 = vmatprep.subr.bf16.mxu0 0
      %872 = vmatpush1.bf16.msra.mxu0 %v869
      %873 = vmatprep.subr.bf16.mxu0 0
      %874 = vmatpush1.bf16.msra.mxu0 0
      %875 = vmatprep.subr.bf16.mxu0 0
      %876 = vmatpush1.bf16.msra.mxu0 0
      %877 = vmatprep.subr.bf16.mxu0 0
      %878 = vmatpush1.bf16.msra.mxu0 0
      %879 = vmatprep.subr.bf16.mxu0 0
      %880 = vmatpush1.bf16.msra.mxu0 0
      %881 = vmatprep.subr.bf16.mxu0 0
      %882 = vmatpush1.bf16.msra.mxu0 0
      %883 = vmatprep.subr.bf16.mxu0 0
      %884 = vmatpush1.bf16.msra.mxu0 0
      %885 = vmatprep.subr.bf16.mxu0 0
      %886 = vmatpush1.bf16.msra.mxu0 0
      %887 = vmatprep.subr.bf16.mxu0 0
      %888 = vmatpush1.bf16.msra.mxu0 0
      %889 = vmatprep.subr.bf16.mxu0 0
      %890 = vmatpush1.bf16.msra.mxu0 0
      %891 = vmatprep.subr.bf16.mxu0 0
      %892 = vmatpush1.bf16.msra.mxu0 0
      %893 = vmatprep.subr.bf16.mxu0 0
      %894 = vmatpush1.bf16.msra.mxu0 0
      %895 = vmatprep.subr.bf16.mxu0 0
      %896 = vmatpush1.bf16.msra.mxu0 0
      %897 = vmatprep.subr.bf16.mxu0 0
      %898 = vmatpush1.bf16.msra.mxu0 0
      %899 = vmatprep.subr.bf16.mxu0 0
      %900 = vmatpush1.bf16.msra.mxu0 0
      %901 = vmatprep.subr.bf16.mxu0 0
      %902 = vmatpush1.bf16.msra.mxu0 0
      %903 = vmatprep.mubr.bf16.mxu0 0
      %904 = vmatmul.mubr.bf16.gmra.mrb[0].mxu0 %v857
      %v905 = vpop.f32.mrb[0].mxu0
      %v906 = vadd.f32 0.0, %v905
      %v907 = vpop.f32.mrb[0].mxu0
      %v908 = vpop.f32.mrb[0].mxu0
      %v909 = vadd.f32 0.0, %v908
      %v910 = vpop.f32.mrb[0].mxu0
      %911 = vmatprep.mubr.bf16.mxu0 0
      %912 = vmatmul.mubr.bf16.gmra.mrb[0].mxu0 %v860
      %v913 = vpop.f32.mrb[0].mxu0
      %v914 = vadd.f32 0.0, %v913
      %v915 = vpop.f32.mrb[0].mxu0
      %v916 = vpop.f32.mrb[0].mxu0
      %v917 = vadd.f32 0.0, %v916
      %v918 = vpop.f32.mrb[0].mxu0
      %919 = vmatprep.mubr.bf16.mxu0 0
      %920 = vmatmul.mubr.bf16.gmra.mrb[0].mxu0 %v863
      %v921 = vpop.f32.mrb[0].mxu0
      %v922 = vadd.f32 0.0, %v921
      %v923 = vpop.f32.mrb[0].mxu0
      %v924 = vpop.f32.mrb[0].mxu0
      %v925 = vadd.f32 0.0, %v924
      %v926 = vpop.f32.mrb[0].mxu0
      %927 = vmatprep.mubr.bf16.mxu0 0
      %928 = vmatmul.mubr.bf16.gmra.mrb[0].mxu0 %v866
      %v929 = vpop.f32.mrb[0].mxu0
      %v930 = vadd.f32 0.0, %v929
      %v931 = vpop.f32.mrb[0].mxu0
      %v932 = vpop.f32.mrb[0].mxu0
      %v933 = vadd.f32 0.0, %v932
      %v934 = vpop.f32.mrb[0].mxu0
      %935 = vdwg.mxu0
      %v936 = vadd.f32 %v818, %v906
      %v937 = vadd.f32 %v819, %v909
      %v938 = vadd.f32 %v820, %v914
      %v939 = vadd.f32 %v821, %v917
      %v940 = vadd.f32 %v822, %v922
      %v941 = vadd.f32 %v823, %v925
      %v942 = vadd.f32 %v824, %v930
      %v943 = vadd.f32 %v825, %v933
      %v944 = vld [vmem:[%s539 + $0x4] sm:$0xf]
      %v945 = vld [vmem:[%s539 + $0x8] sm:$0xf]
      %v946 = vld [vmem:[%s539 + $0xc] sm:$0xf]
      %v947 = vld [vmem:[%s539 + $0x10] sm:$0xf]
      %v948 = vld [vmem:[%s539 + $0x14] sm:$0xf]
      %v949 = vld [vmem:[%s539 + $0x18] sm:$0xf]
      %v950 = vld [vmem:[%s539 + $0x1c] sm:$0xf]
      %v951 = vld [vmem:[%s539 + $0x20] sm:$0xf]
      %s952 = scalar_lea.vmem %s6, 4
      %v953 = vld [vmem:[%s952] sm:$0x3]
      %v962 = vunpack.c.l.b16 %v944
      %v963 = vunpack.c.l.b16 %v945
      %v964 = vunpack.c.l.b16 %v946
      %v965 = vunpack.c.l.b16 %v947
      %v966 = vunpack.c.l.b16 %v948
      %v967 = vunpack.c.l.b16 %v949
      %v968 = vunpack.c.l.b16 %v950
      %v969 = vunpack.c.l.b16 %v951
      %v970 = vpack.c.b16 %v963, %v962
      %v971 = vpack.c.b16 %v965, %v964
      %v972 = vpack.c.b16 %v967, %v966
      %v973 = vpack.c.b16 %v969, %v968
      %v975 = vsel %vm736, %v970, 0
      %v978 = vsel %vm736, %v971, 0
      %v981 = vsel %vm736, %v972, 0
      %v984 = vsel %vm736, %v973, 0
      %v987 = vsel %vm749, %v953, 0
      %989 = vmatprep.subr.bf16.mxu0 0
      %990 = vmatpush1.bf16.msra.mxu0 %v987
      %991 = vmatprep.subr.bf16.mxu0 0
      %992 = vmatpush1.bf16.msra.mxu0 0
      %993 = vmatprep.subr.bf16.mxu0 0
      %994 = vmatpush1.bf16.msra.mxu0 0
      %995 = vmatprep.subr.bf16.mxu0 0
      %996 = vmatpush1.bf16.msra.mxu0 0
      %997 = vmatprep.subr.bf16.mxu0 0
      %998 = vmatpush1.bf16.msra.mxu0 0
      %999 = vmatprep.subr.bf16.mxu0 0
      %1000 = vmatpush1.bf16.msra.mxu0 0
      %1001 = vmatprep.subr.bf16.mxu0 0
      %1002 = vmatpush1.bf16.msra.mxu0 0
      %1003 = vmatprep.subr.bf16.mxu0 0
      %1004 = vmatpush1.bf16.msra.mxu0 0
      %1005 = vmatprep.subr.bf16.mxu0 0
      %1006 = vmatpush1.bf16.msra.mxu0 0
      %1007 = vmatprep.subr.bf16.mxu0 0
      %1008 = vmatpush1.bf16.msra.mxu0 0
      %1009 = vmatprep.subr.bf16.mxu0 0
      %1010 = vmatpush1.bf16.msra.mxu0 0
      %1011 = vmatprep.subr.bf16.mxu0 0
      %1012 = vmatpush1.bf16.msra.mxu0 0
      %1013 = vmatprep.subr.bf16.mxu0 0
      %1014 = vmatpush1.bf16.msra.mxu0 0
      %1015 = vmatprep.subr.bf16.mxu0 0
      %1016 = vmatpush1.bf16.msra.mxu0 0
      %1017 = vmatprep.subr.bf16.mxu0 0
      %1018 = vmatpush1.bf16.msra.mxu0 0
      %1019 = vmatprep.subr.bf16.mxu0 0
      %1020 = vmatpush1.bf16.msra.mxu0 0
      %1021 = vmatprep.mubr.bf16.mxu0 0
      %1022 = vmatmul.mubr.bf16.gmra.mrb[0].mxu0 %v975
      %v1023 = vpop.f32.mrb[0].mxu0
      %v1024 = vadd.f32 0.0, %v1023
      %v1025 = vpop.f32.mrb[0].mxu0
      %v1026 = vpop.f32.mrb[0].mxu0
      %v1027 = vadd.f32 0.0, %v1026
      %v1028 = vpop.f32.mrb[0].mxu0
      %1029 = vmatprep.mubr.bf16.mxu0 0
      %1030 = vmatmul.mubr.bf16.gmra.mrb[0].mxu0 %v978
      %v1031 = vpop.f32.mrb[0].mxu0
      %v1032 = vadd.f32 0.0, %v1031
      %v1033 = vpop.f32.mrb[0].mxu0
      %v1034 = vpop.f32.mrb[0].mxu0
      %v1035 = vadd.f32 0.0, %v1034
      %v1036 = vpop.f32.mrb[0].mxu0
      %1037 = vmatprep.mubr.bf16.mxu0 0
      %1038 = vmatmul.mubr.bf16.gmra.mrb[0].mxu0 %v981
      %v1039 = vpop.f32.mrb[0].mxu0
      %v1040 = vadd.f32 0.0, %v1039
      %v1041 = vpop.f32.mrb[0].mxu0
      %v1042 = vpop.f32.mrb[0].mxu0
      %v1043 = vadd.f32 0.0, %v1042
      %v1044 = vpop.f32.mrb[0].mxu0
      %1045 = vmatprep.mubr.bf16.mxu0 0
      %1046 = vmatmul.mubr.bf16.gmra.mrb[0].mxu0 %v984
      %v1047 = vpop.f32.mrb[0].mxu0
      %v1048 = vadd.f32 0.0, %v1047
      %v1049 = vpop.f32.mrb[0].mxu0
      %v1050 = vpop.f32.mrb[0].mxu0
      %v1051 = vadd.f32 0.0, %v1050
      %v1052 = vpop.f32.mrb[0].mxu0
      %1053 = vdwg.mxu0
      %v1054 = vadd.f32 %v936, %v1024
      %v1055 = vadd.f32 %v937, %v1027
      %v1056 = vadd.f32 %v938, %v1032
      %v1057 = vadd.f32 %v939, %v1035
      %v1058 = vadd.f32 %v940, %v1040
      %v1059 = vadd.f32 %v941, %v1043
      %v1060 = vadd.f32 %v942, %v1048
      %v1061 = vadd.f32 %v943, %v1051
      %v1062 = vld [vmem:[%s526] sm:$0xf]
      %v1063 = vld [vmem:[%s526 + $0x4] sm:$0xf]
      %v1064 = vld [vmem:[%s526 + $0x8] sm:$0xf]
      %v1065 = vld [vmem:[%s526 + $0xc] sm:$0xf]
      %v1066 = vld [vmem:[%s526 + $0x10] sm:$0xf]
      %v1067 = vld [vmem:[%s526 + $0x14] sm:$0xf]
      %v1068 = vld [vmem:[%s526 + $0x18] sm:$0xf]
      %v1069 = vld [vmem:[%s526 + $0x1c] sm:$0xf]
      %s1070 = scalar_lea.vmem %s6, 6
      %v1071 = vld [vmem:[%s1070] sm:$0x3]
      %v1080 = vunpack.c.l.b16 %v1062
      %v1081 = vunpack.c.l.b16 %v1063
      %v1082 = vunpack.c.l.b16 %v1064
      %v1083 = vunpack.c.l.b16 %v1065
      %v1084 = vunpack.c.l.b16 %v1066
      %v1085 = vunpack.c.l.b16 %v1067
      %v1086 = vunpack.c.l.b16 %v1068
      %v1087 = vunpack.c.l.b16 %v1069
      %v1088 = vpack.c.b16 %v1081, %v1080
      %v1089 = vpack.c.b16 %v1083, %v1082
      %v1090 = vpack.c.b16 %v1085, %v1084
      %v1091 = vpack.c.b16 %v1087, %v1086
      %v1093 = vsel %vm736, %v1088, 0
      %v1096 = vsel %vm736, %v1089, 0
      %v1099 = vsel %vm736, %v1090, 0
      %v1102 = vsel %vm736, %v1091, 0
      %v1105 = vsel %vm749, %v1071, 0
      %1107 = vmatprep.subr.bf16.mxu0 0
      %1108 = vmatpush1.bf16.msra.mxu0 %v1105
      %1109 = vmatprep.subr.bf16.mxu0 0
      %1110 = vmatpush1.bf16.msra.mxu0 0
      %1111 = vmatprep.subr.bf16.mxu0 0
      %1112 = vmatpush1.bf16.msra.mxu0 0
      %1113 = vmatprep.subr.bf16.mxu0 0
      %1114 = vmatpush1.bf16.msra.mxu0 0
      %1115 = vmatprep.subr.bf16.mxu0 0
      %1116 = vmatpush1.bf16.msra.mxu0 0
      %1117 = vmatprep.subr.bf16.mxu0 0
      %1118 = vmatpush1.bf16.msra.mxu0 0
      %1119 = vmatprep.subr.bf16.mxu0 0
      %1120 = vmatpush1.bf16.msra.mxu0 0
      %1121 = vmatprep.subr.bf16.mxu0 0
      %1122 = vmatpush1.bf16.msra.mxu0 0
      %1123 = vmatprep.subr.bf16.mxu0 0
      %1124 = vmatpush1.bf16.msra.mxu0 0
      %1125 = vmatprep.subr.bf16.mxu0 0
      %1126 = vmatpush1.bf16.msra.mxu0 0
      %1127 = vmatprep.subr.bf16.mxu0 0
      %1128 = vmatpush1.bf16.msra.mxu0 0
      %1129 = vmatprep.subr.bf16.mxu0 0
      %1130 = vmatpush1.bf16.msra.mxu0 0
      %1131 = vmatprep.subr.bf16.mxu0 0
      %1132 = vmatpush1.bf16.msra.mxu0 0
      %1133 = vmatprep.subr.bf16.mxu0 0
      %1134 = vmatpush1.bf16.msra.mxu0 0
      %1135 = vmatprep.subr.bf16.mxu0 0
      %1136 = vmatpush1.bf16.msra.mxu0 0
      %1137 = vmatprep.subr.bf16.mxu0 0
      %1138 = vmatpush1.bf16.msra.mxu0 0
      %1139 = vmatprep.mubr.bf16.mxu0 0
      %1140 = vmatmul.mubr.bf16.gmra.mrb[0].mxu0 %v1093
      %v1141 = vpop.f32.mrb[0].mxu0
      %v1142 = vadd.f32 0.0, %v1141
      %v1143 = vpop.f32.mrb[0].mxu0
      %v1144 = vpop.f32.mrb[0].mxu0
      %v1145 = vadd.f32 0.0, %v1144
      %v1146 = vpop.f32.mrb[0].mxu0
      %1147 = vmatprep.mubr.bf16.mxu0 0
      %1148 = vmatmul.mubr.bf16.gmra.mrb[0].mxu0 %v1096
      %v1149 = vpop.f32.mrb[0].mxu0
      %v1150 = vadd.f32 0.0, %v1149
      %v1151 = vpop.f32.mrb[0].mxu0
      %v1152 = vpop.f32.mrb[0].mxu0
      %v1153 = vadd.f32 0.0, %v1152
      %v1154 = vpop.f32.mrb[0].mxu0
      %1155 = vmatprep.mubr.bf16.mxu0 0
      %1156 = vmatmul.mubr.bf16.gmra.mrb[0].mxu0 %v1099
      %v1157 = vpop.f32.mrb[0].mxu0
      %v1158 = vadd.f32 0.0, %v1157
      %v1159 = vpop.f32.mrb[0].mxu0
      %v1160 = vpop.f32.mrb[0].mxu0
      %v1161 = vadd.f32 0.0, %v1160
      %v1162 = vpop.f32.mrb[0].mxu0
      %1163 = vmatprep.mubr.bf16.mxu0 0
      %1164 = vmatmul.mubr.bf16.gmra.mrb[0].mxu0 %v1102
      %v1165 = vpop.f32.mrb[0].mxu0
      %v1166 = vadd.f32 0.0, %v1165
      %v1167 = vpop.f32.mrb[0].mxu0
      %v1168 = vpop.f32.mrb[0].mxu0
      %v1169 = vadd.f32 0.0, %v1168
      %v1170 = vpop.f32.mrb[0].mxu0
      %1171 = vdwg.mxu0
      %v1172 = vadd.f32 %v1054, %v1142
      %v1173 = vadd.f32 %v1055, %v1145
      %v1174 = vadd.f32 %v1056, %v1150
      %v1175 = vadd.f32 %v1057, %v1153
      %v1176 = vadd.f32 %v1058, %v1158
      %v1177 = vadd.f32 %v1059, %v1161
      %v1178 = vadd.f32 %v1060, %v1166
      %v1179 = vadd.f32 %v1061, %v1169
      %s1180 = scalar_lea.vmem %s6, 8
      %v1181 = vld [vmem:[%s1180] sm:$0x3]
      %v1183 = vsel %vm749, %v1181, 0
      %1185 = vmatprep.subr.bf16.mxu0 0
      %1186 = vmatpush1.bf16.msra.mxu0 %v1183
      %1187 = vmatprep.subr.bf16.mxu0 0
      %1188 = vmatpush1.bf16.msra.mxu0 0
      %1189 = vmatprep.subr.bf16.mxu0 0
      %1190 = vmatpush1.bf16.msra.mxu0 0
      %1191 = vmatprep.subr.bf16.mxu0 0
      %1192 = vmatpush1.bf16.msra.mxu0 0
      %1193 = vmatprep.subr.bf16.mxu0 0
      %1194 = vmatpush1.bf16.msra.mxu0 0
      %1195 = vmatprep.subr.bf16.mxu0 0
      %1196 = vmatpush1.bf16.msra.mxu0 0
      %1197 = vmatprep.subr.bf16.mxu0 0
      %1198 = vmatpush1.bf16.msra.mxu0 0
      %1199 = vmatprep.subr.bf16.mxu0 0
      %1200 = vmatpush1.bf16.msra.mxu0 0
      %1201 = vmatprep.subr.bf16.mxu0 0
      %1202 = vmatpush1.bf16.msra.mxu0 0
      %1203 = vmatprep.subr.bf16.mxu0 0
      %1204 = vmatpush1.bf16.msra.mxu0 0
      %1205 = vmatprep.subr.bf16.mxu0 0
      %1206 = vmatpush1.bf16.msra.mxu0 0
      %1207 = vmatprep.subr.bf16.mxu0 0
      %1208 = vmatpush1.bf16.msra.mxu0 0
      %1209 = vmatprep.subr.bf16.mxu0 0
      %1210 = vmatpush1.bf16.msra.mxu0 0
      %1211 = vmatprep.subr.bf16.mxu0 0
      %1212 = vmatpush1.bf16.msra.mxu0 0
      %1213 = vmatprep.subr.bf16.mxu0 0
      %1214 = vmatpush1.bf16.msra.mxu0 0
      %1215 = vmatprep.subr.bf16.mxu0 0
      %1216 = vmatpush1.bf16.msra.mxu0 0
      %1217 = vmatprep.mubr.bf16.mxu0 0
      %1218 = vmatmul.mubr.bf16.gmra.mrb[0].mxu0 %v857
      %v1219 = vpop.f32.mrb[0].mxu0
      %v1220 = vadd.f32 0.0, %v1219
      %v1221 = vpop.f32.mrb[0].mxu0
      %v1222 = vpop.f32.mrb[0].mxu0
      %v1223 = vadd.f32 0.0, %v1222
      %v1224 = vpop.f32.mrb[0].mxu0
      %1225 = vmatprep.mubr.bf16.mxu0 0
      %1226 = vmatmul.mubr.bf16.gmra.mrb[0].mxu0 %v860
      %v1227 = vpop.f32.mrb[0].mxu0
      %v1228 = vadd.f32 0.0, %v1227
      %v1229 = vpop.f32.mrb[0].mxu0
      %v1230 = vpop.f32.mrb[0].mxu0
      %v1231 = vadd.f32 0.0, %v1230
      %v1232 = vpop.f32.mrb[0].mxu0
      %1233 = vmatprep.mubr.bf16.mxu0 0
      %1234 = vmatmul.mubr.bf16.gmra.mrb[0].mxu0 %v863
      %v1235 = vpop.f32.mrb[0].mxu0
      %v1236 = vadd.f32 0.0, %v1235
      %v1237 = vpop.f32.mrb[0].mxu0
      %v1238 = vpop.f32.mrb[0].mxu0
      %v1239 = vadd.f32 0.0, %v1238
      %v1240 = vpop.f32.mrb[0].mxu0
      %1241 = vmatprep.mubr.bf16.mxu0 0
      %1242 = vmatmul.mubr.bf16.gmra.mrb[0].mxu0 %v866
      %v1243 = vpop.f32.mrb[0].mxu0
      %v1244 = vadd.f32 0.0, %v1243
      %v1245 = vpop.f32.mrb[0].mxu0
      %v1246 = vpop.f32.mrb[0].mxu0
      %v1247 = vadd.f32 0.0, %v1246
      %v1248 = vpop.f32.mrb[0].mxu0
      %1249 = vdwg.mxu0
      %v1250 = vadd.f32 %v1172, %v1220
      %v1251 = vadd.f32 %v1173, %v1223
      %v1252 = vadd.f32 %v1174, %v1228
      %v1253 = vadd.f32 %v1175, %v1231
      %v1254 = vadd.f32 %v1176, %v1236
      %v1255 = vadd.f32 %v1177, %v1239
      %v1256 = vadd.f32 %v1178, %v1244
      %v1257 = vadd.f32 %v1179, %v1247
      %v1258 = vld [vmem:[%s526 + $0x8] sm:$0xf]
      %v1259 = vld [vmem:[%s526 + $0xc] sm:$0xf]
      %v1260 = vld [vmem:[%s526 + $0x10] sm:$0xf]
      %v1261 = vld [vmem:[%s526 + $0x14] sm:$0xf]
      %v1262 = vld [vmem:[%s526 + $0x18] sm:$0xf]
      %v1263 = vld [vmem:[%s526 + $0x1c] sm:$0xf]
      %v1264 = vld [vmem:[%s526 + $0x20] sm:$0xf]
      %v1265 = vld [vmem:[%s526 + $0x24] sm:$0xf]
      %s1266 = scalar_lea.vmem %s6, 10
      %v1267 = vld [vmem:[%s1266] sm:$0x3]
      %v1276 = vunpack.c.l.b16 %v1258
      %v1277 = vunpack.c.l.b16 %v1259
      %v1278 = vunpack.c.l.b16 %v1260
      %v1279 = vunpack.c.l.b16 %v1261
      %v1280 = vunpack.c.l.b16 %v1262
      %v1281 = vunpack.c.l.b16 %v1263
      %v1282 = vunpack.c.l.b16 %v1264
      %v1283 = vunpack.c.l.b16 %v1265
      %v1284 = vpack.c.b16 %v1277, %v1276
      %v1285 = vpack.c.b16 %v1279, %v1278
      %v1286 = vpack.c.b16 %v1281, %v1280
      %v1287 = vpack.c.b16 %v1283, %v1282
      %v1289 = vsel %vm736, %v1284, 0
      %v1292 = vsel %vm736, %v1285, 0
      %v1295 = vsel %vm736, %v1286, 0
      %v1298 = vsel %vm736, %v1287, 0
      %v1301 = vsel %vm749, %v1267, 0
      %1303 = vmatprep.subr.bf16.mxu0 0
      %1304 = vmatpush1.bf16.msra.mxu0 %v1301
      %1305 = vmatprep.subr.bf16.mxu0 0
      %1306 = vmatpush1.bf16.msra.mxu0 0
      %1307 = vmatprep.subr.bf16.mxu0 0
      %1308 = vmatpush1.bf16.msra.mxu0 0
      %1309 = vmatprep.subr.bf16.mxu0 0
      %1310 = vmatpush1.bf16.msra.mxu0 0
      %1311 = vmatprep.subr.bf16.mxu0 0
      %1312 = vmatpush1.bf16.msra.mxu0 0
      %1313 = vmatprep.subr.bf16.mxu0 0
      %1314 = vmatpush1.bf16.msra.mxu0 0
      %1315 = vmatprep.subr.bf16.mxu0 0
      %1316 = vmatpush1.bf16.msra.mxu0 0
      %1317 = vmatprep.subr.bf16.mxu0 0
      %1318 = vmatpush1.bf16.msra.mxu0 0
      %1319 = vmatprep.subr.bf16.mxu0 0
      %1320 = vmatpush1.bf16.msra.mxu0 0
      %1321 = vmatprep.subr.bf16.mxu0 0
      %1322 = vmatpush1.bf16.msra.mxu0 0
      %1323 = vmatprep.subr.bf16.mxu0 0
      %1324 = vmatpush1.bf16.msra.mxu0 0
      %1325 = vmatprep.subr.bf16.mxu0 0
      %1326 = vmatpush1.bf16.msra.mxu0 0
      %1327 = vmatprep.subr.bf16.mxu0 0
      %1328 = vmatpush1.bf16.msra.mxu0 0
      %1329 = vmatprep.subr.bf16.mxu0 0
      %1330 = vmatpush1.bf16.msra.mxu0 0
      %1331 = vmatprep.subr.bf16.mxu0 0
      %1332 = vmatpush1.bf16.msra.mxu0 0
      %1333 = vmatprep.subr.bf16.mxu0 0
      %1334 = vmatpush1.bf16.msra.mxu0 0
      %1335 = vmatprep.mubr.bf16.mxu0 0
      %1336 = vmatmul.mubr.bf16.gmra.mrb[0].mxu0 %v1289
      %v1337 = vpop.f32.mrb[0].mxu0
      %v1338 = vadd.f32 0.0, %v1337
      %v1339 = vpop.f32.mrb[0].mxu0
      %v1340 = vpop.f32.mrb[0].mxu0
      %v1341 = vadd.f32 0.0, %v1340
      %v1342 = vpop.f32.mrb[0].mxu0
      %1343 = vmatprep.mubr.bf16.mxu0 0
      %1344 = vmatmul.mubr.bf16.gmra.mrb[0].mxu0 %v1292
      %v1345 = vpop.f32.mrb[0].mxu0
      %v1346 = vadd.f32 0.0, %v1345
      %v1347 = vpop.f32.mrb[0].mxu0
      %v1348 = vpop.f32.mrb[0].mxu0
      %v1349 = vadd.f32 0.0, %v1348
      %v1350 = vpop.f32.mrb[0].mxu0
      %1351 = vmatprep.mubr.bf16.mxu0 0
      %1352 = vmatmul.mubr.bf16.gmra.mrb[0].mxu0 %v1295
      %v1353 = vpop.f32.mrb[0].mxu0
      %v1354 = vadd.f32 0.0, %v1353
      %v1355 = vpop.f32.mrb[0].mxu0
      %v1356 = vpop.f32.mrb[0].mxu0
      %v1357 = vadd.f32 0.0, %v1356
      %v1358 = vpop.f32.mrb[0].mxu0
      %1359 = vmatprep.mubr.bf16.mxu0 0
      %1360 = vmatmul.mubr.bf16.gmra.mrb[0].mxu0 %v1298
      %v1361 = vpop.f32.mrb[0].mxu0
      %v1362 = vadd.f32 0.0, %v1361
      %v1363 = vpop.f32.mrb[0].mxu0
      %v1364 = vpop.f32.mrb[0].mxu0
      %v1365 = vadd.f32 0.0, %v1364
      %v1366 = vpop.f32.mrb[0].mxu0
      %1367 = vdwg.mxu0
      %v1368 = vadd.f32 %v1250, %v1338
      %v1369 = vadd.f32 %v1251, %v1341
      %v1370 = vadd.f32 %v1252, %v1346
      %v1371 = vadd.f32 %v1253, %v1349
      %v1372 = vadd.f32 %v1254, %v1354
      %v1373 = vadd.f32 %v1255, %v1357
      %v1374 = vadd.f32 %v1256, %v1362
      %v1375 = vadd.f32 %v1257, %v1365
      %v1376 = vld [vmem:[%s526] sm:$0x8]
      %v1377 = vadd.s32 %v692, 4294967295
      %v1378 = vadd.s32 %v693, 4294967295
      %v1379 = vadd.s32 %v694, 4294967295
      %v1380 = vadd.s32 %v695, 4294967295
      %v1381 = vadd.s32 %v696, 4294967295
      %v1382 = vadd.s32 %v697, 4294967295
      %v1383 = vadd.s32 %v698, 4294967295
      %v1384 = vadd.s32 %v699, 4294967295
      %vm1385 = vcmp.ge.s32.totalorder %v1377, 0
      %vm1386 = vcmp.ge.s32.totalorder %v1378, 0
      %vm1387 = vcmp.ge.s32.totalorder %v1379, 0
      %vm1388 = vcmp.ge.s32.totalorder %v1380, 0
      %vm1389 = vcmp.ge.s32.totalorder %v1381, 0
      %vm1390 = vcmp.ge.s32.totalorder %v1382, 0
      %vm1391 = vcmp.ge.s32.totalorder %v1383, 0
      %vm1392 = vcmp.ge.s32.totalorder %v1384, 0
      %vm1393 = vcmp.lt.s32.totalorder %v1377, 8
      %vm1394 = vcmp.lt.s32.totalorder %v1378, 8
      %vm1395 = vcmp.lt.s32.totalorder %v1379, 8
      %vm1396 = vcmp.lt.s32.totalorder %v1380, 8
      %vm1397 = vcmp.lt.s32.totalorder %v1381, 8
      %vm1398 = vcmp.lt.s32.totalorder %v1382, 8
      %vm1399 = vcmp.lt.s32.totalorder %v1383, 8
      %vm1400 = vcmp.lt.s32.totalorder %v1384, 8
      %vm1401 = vmand %vm1385, %vm1393
      %vm1402 = vmand %vm1386, %vm1394
      %vm1403 = vmand %vm1387, %vm1395
      %vm1404 = vmand %vm1388, %vm1396
      %vm1405 = vmand %vm1389, %vm1397
      %vm1406 = vmand %vm1390, %vm1398
      %vm1407 = vmand %vm1391, %vm1399
      %vm1408 = vmand %vm1392, %vm1400
      %v1409 = vsel %vm1401, 1, 0
      %v1410 = vsel %vm1402, 1, 0
      %v1411 = vsel %vm1403, 1, 0
      %v1412 = vsel %vm1404, 1, 0
      %v1413 = vsel %vm1405, 1, 0
      %v1414 = vsel %vm1406, 1, 0
      %v1415 = vsel %vm1407, 1, 0
      %v1416 = vsel %vm1408, 1, 0
      %vm1417 = vcmp.eq.s32.totalorder %v1409, 1
      %vm1418 = vcmp.eq.s32.totalorder %v1410, 1
      %vm1419 = vcmp.eq.s32.totalorder %v1411, 1
      %vm1420 = vcmp.eq.s32.totalorder %v1412, 1
      %vm1421 = vcmp.eq.s32.totalorder %v1413, 1
      %vm1422 = vcmp.eq.s32.totalorder %v1414, 1
      %vm1423 = vcmp.eq.s32.totalorder %v1415, 1
      %vm1424 = vcmp.eq.s32.totalorder %v1416, 1
      %vm1425 = vmpackc.low %vm1417, %vm1417
      %vm1426 = vmpackc.low %vm1418, %vm1418
      %vm1427 = vmpackc.low %vm1419, %vm1419
      %vm1428 = vmpackc.low %vm1420, %vm1420
      %vm1429 = vmpackc.low %vm1421, %vm1421
      %vm1430 = vmpackc.low %vm1422, %vm1422
      %vm1431 = vmpackc.low %vm1423, %vm1423
      %vm1432 = vmpackc.low %vm1424, %vm1424
      %v1433 = vsel %vm1425, 65537, 0
      %v1434 = vsel %vm1426, 65537, 0
      %v1435 = vsel %vm1427, 65537, 0
      %v1436 = vsel %vm1428, 65537, 0
      %v1437 = vsel %vm1429, 65537, 0
      %v1438 = vsel %vm1430, 65537, 0
      %v1439 = vsel %vm1431, 65537, 0
      %v1440 = vsel %vm1432, 65537, 0
      %vm1441 = vsmask.f32 3328
      %vm1442 = vsmask.f32 7440
      %vm1443 = vmor %vm1441, %vm1442
      %v1445 = vshll.u32 %v1433, 16
      %v1447 = vrot.slane %v1445, 5
      %v1448 = vshrl.u32 %v1433, 16
      %v1450 = vrot.slane %v1448, 4
      %v1451 = vor.u32 %v1450, %v1447
      %v1452 = vrot.slane %v1451, 4
      %v1454 = vshll.u32 %v1434, 16
      %v1456 = vrot.slane %v1454, 5
      %v1457 = vsel %vm1443, %v1452, %v1456
      %v1458 = vshrl.u32 %v1434, 16
      %v1460 = vrot.slane %v1458, 4
      %v1461 = vor.u32 %v1460, %v1456
      %v1462 = vrot.slane %v1461, 4
      %v1464 = vshll.u32 %v1435, 16
      %v1466 = vrot.slane %v1464, 5
      %v1467 = vsel %vm1443, %v1462, %v1466
      %v1468 = vshrl.u32 %v1435, 16
      %v1470 = vrot.slane %v1468, 4
      %v1471 = vor.u32 %v1470, %v1466
      %v1472 = vrot.slane %v1471, 4
      %v1474 = vshll.u32 %v1436, 16
      %v1476 = vrot.slane %v1474, 5
      %v1477 = vsel %vm1443, %v1472, %v1476
      %v1478 = vshrl.u32 %v1436, 16
      %v1480 = vrot.slane %v1478, 4
      %v1481 = vor.u32 %v1480, %v1476
      %v1482 = vrot.slane %v1481, 4
      %v1484 = vshll.u32 %v1437, 16
      %v1486 = vrot.slane %v1484, 5
      %v1487 = vsel %vm1443, %v1482, %v1486
      %v1488 = vshrl.u32 %v1437, 16
      %v1490 = vrot.slane %v1488, 4
      %v1491 = vor.u32 %v1490, %v1486
      %v1492 = vrot.slane %v1491, 4
      %v1494 = vshll.u32 %v1438, 16
      %v1496 = vrot.slane %v1494, 5
      %v1497 = vsel %vm1443, %v1492, %v1496
      %v1498 = vshrl.u32 %v1438, 16
      %v1500 = vrot.slane %v1498, 4
      %v1501 = vor.u32 %v1500, %v1496
      %v1502 = vrot.slane %v1501, 4
      %v1504 = vshll.u32 %v1439, 16
      %v1506 = vrot.slane %v1504, 5
      %v1507 = vsel %vm1443, %v1502, %v1506
      %v1508 = vshrl.u32 %v1439, 16
      %v1510 = vrot.slane %v1508, 4
      %v1511 = vor.u32 %v1510, %v1506
      %v1512 = vrot.slane %v1511, 4
      %v1514 = vshll.u32 %v1440, 16
      %v1516 = vrot.slane %v1514, 5
      %v1517 = vsel %vm1443, %v1512, %v1516
      %v1518 = vshrl.u32 %v1440, 16
      %v1520 = vrot.slane %v1518, 4
      %v1521 = vor.u32 %v1520, %v1516
      %v1522 = vrot.slane %v1521, 4
      %vm1523 = vcmp.ne.s16.totalorder %v1447, 0
      %vm1524 = vcmp.ne.s16.totalorder %v1457, 0
      %vm1525 = vcmp.ne.s16.totalorder %v1467, 0
      %vm1526 = vcmp.ne.s16.totalorder %v1477, 0
      %vm1527 = vcmp.ne.s16.totalorder %v1487, 0
      %vm1528 = vcmp.ne.s16.totalorder %v1497, 0
      %vm1529 = vcmp.ne.s16.totalorder %v1507, 0
      %vm1530 = vcmp.ne.s16.totalorder %v1517, 0
      %vm1531 = vcmp.ne.s16.totalorder %v1522, 0
      %v1532 = vsel %vm1523, %v1376, 0
      %v1533 = vsel %vm1524, %v826, 0
      %v1534 = vsel %vm1525, %v827, 0
      %v1535 = vsel %vm1526, %v828, 0
      %v1536 = vsel %vm1527, %v829, 0
      %v1537 = vsel %vm1528, %v830, 0
      %v1538 = vsel %vm1529, %v831, 0
      %v1539 = vsel %vm1530, %v832, 0
      %v1540 = vsel %vm1531, %v833, 0
      %s1541 = scalar_lea.vmem %s6, 12
      %v1542 = vld [vmem:[%s1541] sm:$0x3]
      %v1552 = vunpack.c.l.b16 %v1532
      %v1553 = vunpack.c.l.b16 %v1533
      %v1554 = vunpack.c.l.b16 %v1534
      %v1555 = vunpack.c.l.b16 %v1535
      %v1556 = vunpack.c.l.b16 %v1536
      %v1557 = vunpack.c.l.b16 %v1537
      %v1558 = vunpack.c.l.b16 %v1538
      %v1559 = vunpack.c.l.b16 %v1539
      %v1560 = vunpack.c.l.b16 %v1540
      %v1561 = vpack.c.b16 %v1553, %v1552
      %v1562 = vpack.c.b16 %v1555, %v1554
      %v1563 = vpack.c.b16 %v1557, %v1556
      %v1564 = vpack.c.b16 %v1559, %v1558
      %v1565 = vpack.c.b16 %v1560, %v1560
      %vm1566 = vsmask.f32 4352
      %v1568 = vshrl.u32 %v1561, 16
      %v1570 = vrot.slane %v1568, 3
      %v1571 = vshll.u32 %v1561, 16
      %v1573 = vrot.slane %v1571, 4
      %v1574 = vor.u32 %v1570, %v1573
      %v1576 = vshrl.u32 %v1562, 16
      %v1578 = vrot.slane %v1576, 3
      %v1579 = vshll.u32 %v1562, 16
      %v1581 = vrot.slane %v1579, 4
      %v1582 = vor.u32 %v1578, %v1581
      %v1583 = vsel %vm1566, %v1574, %v1582
      %v1585 = vshrl.u32 %v1563, 16
      %v1587 = vrot.slane %v1585, 3
      %v1588 = vshll.u32 %v1563, 16
      %v1590 = vrot.slane %v1588, 4
      %v1591 = vor.u32 %v1587, %v1590
      %v1592 = vsel %vm1566, %v1582, %v1591
      %v1594 = vshrl.u32 %v1564, 16
      %v1596 = vrot.slane %v1594, 3
      %v1597 = vshll.u32 %v1564, 16
      %v1599 = vrot.slane %v1597, 4
      %v1600 = vor.u32 %v1596, %v1599
      %v1601 = vsel %vm1566, %v1591, %v1600
      %v1603 = vshrl.u32 %v1565, 16
      %v1605 = vrot.slane %v1603, 3
      %v1606 = vshll.u32 %v1565, 16
      %v1608 = vrot.slane %v1606, 4
      %v1609 = vor.u32 %v1605, %v1608
      %v1610 = vsel %vm1566, %v1600, %v1609
      %v1612 = vsel %vm736, %v1583, 0
      %v1615 = vsel %vm736, %v1592, 0
      %v1618 = vsel %vm736, %v1601, 0
      %v1621 = vsel %vm736, %v1610, 0
      %v1624 = vsel %vm749, %v1542, 0
      %1626 = vmatprep.subr.bf16.mxu0 0
      %1627 = vmatpush1.bf16.msra.mxu0 %v1624
      %1628 = vmatprep.subr.bf16.mxu0 0
      %1629 = vmatpush1.bf16.msra.mxu0 0
      %1630 = vmatprep.subr.bf16.mxu0 0
      %1631 = vmatpush1.bf16.msra.mxu0 0
      %1632 = vmatprep.subr.bf16.mxu0 0
      %1633 = vmatpush1.bf16.msra.mxu0 0
      %1634 = vmatprep.subr.bf16.mxu0 0
      %1635 = vmatpush1.bf16.msra.mxu0 0
      %1636 = vmatprep.subr.bf16.mxu0 0
      %1637 = vmatpush1.bf16.msra.mxu0 0
      %1638 = vmatprep.subr.bf16.mxu0 0
      %1639 = vmatpush1.bf16.msra.mxu0 0
      %1640 = vmatprep.subr.bf16.mxu0 0
      %1641 = vmatpush1.bf16.msra.mxu0 0
      %1642 = vmatprep.subr.bf16.mxu0 0
      %1643 = vmatpush1.bf16.msra.mxu0 0
      %1644 = vmatprep.subr.bf16.mxu0 0
      %1645 = vmatpush1.bf16.msra.mxu0 0
      %1646 = vmatprep.subr.bf16.mxu0 0
      %1647 = vmatpush1.bf16.msra.mxu0 0
      %1648 = vmatprep.subr.bf16.mxu0 0
      %1649 = vmatpush1.bf16.msra.mxu0 0
      %1650 = vmatprep.subr.bf16.mxu0 0
      %1651 = vmatpush1.bf16.msra.mxu0 0
      %1652 = vmatprep.subr.bf16.mxu0 0
      %1653 = vmatpush1.bf16.msra.mxu0 0
      %1654 = vmatprep.subr.bf16.mxu0 0
      %1655 = vmatpush1.bf16.msra.mxu0 0
      %1656 = vmatprep.subr.bf16.mxu0 0
      %1657 = vmatpush1.bf16.msra.mxu0 0
      %1658 = vmatprep.mubr.bf16.mxu0 0
      %1659 = vmatmul.mubr.bf16.gmra.mrb[0].mxu0 %v1612
      %v1660 = vpop.f32.mrb[0].mxu0
      %v1661 = vadd.f32 0.0, %v1660
      %v1662 = vpop.f32.mrb[0].mxu0
      %v1663 = vpop.f32.mrb[0].mxu0
      %v1664 = vadd.f32 0.0, %v1663
      %v1665 = vpop.f32.mrb[0].mxu0
      %1666 = vmatprep.mubr.bf16.mxu0 0
      %1667 = vmatmul.mubr.bf16.gmra.mrb[0].mxu0 %v1615
      %v1668 = vpop.f32.mrb[0].mxu0
      %v1669 = vadd.f32 0.0, %v1668
      %v1670 = vpop.f32.mrb[0].mxu0
      %v1671 = vpop.f32.mrb[0].mxu0
      %v1672 = vadd.f32 0.0, %v1671
      %v1673 = vpop.f32.mrb[0].mxu0
      %1674 = vmatprep.mubr.bf16.mxu0 0
      %1675 = vmatmul.mubr.bf16.gmra.mrb[0].mxu0 %v1618
      %v1676 = vpop.f32.mrb[0].mxu0
      %v1677 = vadd.f32 0.0, %v1676
      %v1678 = vpop.f32.mrb[0].mxu0
      %v1679 = vpop.f32.mrb[0].mxu0
      %v1680 = vadd.f32 0.0, %v1679
      %v1681 = vpop.f32.mrb[0].mxu0
      %1682 = vmatprep.mubr.bf16.mxu0 0
      %1683 = vmatmul.mubr.bf16.gmra.mrb[0].mxu0 %v1621
      %v1684 = vpop.f32.mrb[0].mxu0
      %v1685 = vadd.f32 0.0, %v1684
      %v1686 = vpop.f32.mrb[0].mxu0
      %v1687 = vpop.f32.mrb[0].mxu0
      %v1688 = vadd.f32 0.0, %v1687
      %v1689 = vpop.f32.mrb[0].mxu0
      %1690 = vdwg.mxu0
      %v1691 = vadd.f32 %v1368, %v1661
      %v1692 = vadd.f32 %v1369, %v1664
      %v1693 = vadd.f32 %v1370, %v1669
      %v1694 = vadd.f32 %v1371, %v1672
      %v1695 = vadd.f32 %v1372, %v1677
      %v1696 = vadd.f32 %v1373, %v1680
      %v1697 = vadd.f32 %v1374, %v1685
      %v1698 = vadd.f32 %v1375, %v1688
      %s1699 = scalar_lea.vmem %s6, 14
      %v1700 = vld [vmem:[%s1699] sm:$0x3]
      %v1702 = vsel %vm749, %v1700, 0
      %1704 = vmatprep.subr.bf16.mxu0 0
      %1705 = vmatpush1.bf16.msra.mxu0 %v1702
      %1706 = vmatprep.subr.bf16.mxu0 0
      %1707 = vmatpush1.bf16.msra.mxu0 0
      %1708 = vmatprep.subr.bf16.mxu0 0
      %1709 = vmatpush1.bf16.msra.mxu0 0
      %1710 = vmatprep.subr.bf16.mxu0 0
      %1711 = vmatpush1.bf16.msra.mxu0 0
      %1712 = vmatprep.subr.bf16.mxu0 0
      %1713 = vmatpush1.bf16.msra.mxu0 0
      %1714 = vmatprep.subr.bf16.mxu0 0
      %1715 = vmatpush1.bf16.msra.mxu0 0
      %1716 = vmatprep.subr.bf16.mxu0 0
      %1717 = vmatpush1.bf16.msra.mxu0 0
      %1718 = vmatprep.subr.bf16.mxu0 0
      %1719 = vmatpush1.bf16.msra.mxu0 0
      %1720 = vmatprep.subr.bf16.mxu0 0
      %1721 = vmatpush1.bf16.msra.mxu0 0
      %1722 = vmatprep.subr.bf16.mxu0 0
      %1723 = vmatpush1.bf16.msra.mxu0 0
      %1724 = vmatprep.subr.bf16.mxu0 0
      %1725 = vmatpush1.bf16.msra.mxu0 0
      %1726 = vmatprep.subr.bf16.mxu0 0
      %1727 = vmatpush1.bf16.msra.mxu0 0
      %1728 = vmatprep.subr.bf16.mxu0 0
      %1729 = vmatpush1.bf16.msra.mxu0 0
      %1730 = vmatprep.subr.bf16.mxu0 0
      %1731 = vmatpush1.bf16.msra.mxu0 0
      %1732 = vmatprep.subr.bf16.mxu0 0
      %1733 = vmatpush1.bf16.msra.mxu0 0
      %1734 = vmatprep.subr.bf16.mxu0 0
      %1735 = vmatpush1.bf16.msra.mxu0 0
      %1736 = vmatprep.mubr.bf16.mxu0 0
      %1737 = vmatmul.mubr.bf16.gmra.mrb[0].mxu0 %v857
      %v1738 = vpop.f32.mrb[0].mxu0
      %v1739 = vadd.f32 0.0, %v1738
      %v1740 = vpop.f32.mrb[0].mxu0
      %v1741 = vpop.f32.mrb[0].mxu0
      %v1742 = vadd.f32 0.0, %v1741
      %v1743 = vpop.f32.mrb[0].mxu0
      %1744 = vmatprep.mubr.bf16.mxu0 0
      %1745 = vmatmul.mubr.bf16.gmra.mrb[0].mxu0 %v860
      %v1746 = vpop.f32.mrb[0].mxu0
      %v1747 = vadd.f32 0.0, %v1746
      %v1748 = vpop.f32.mrb[0].mxu0
      %v1749 = vpop.f32.mrb[0].mxu0
      %v1750 = vadd.f32 0.0, %v1749
      %v1751 = vpop.f32.mrb[0].mxu0
      %1752 = vmatprep.mubr.bf16.mxu0 0
      %1753 = vmatmul.mubr.bf16.gmra.mrb[0].mxu0 %v863
      %v1754 = vpop.f32.mrb[0].mxu0
      %v1755 = vadd.f32 0.0, %v1754
      %v1756 = vpop.f32.mrb[0].mxu0
      %v1757 = vpop.f32.mrb[0].mxu0
      %v1758 = vadd.f32 0.0, %v1757
      %v1759 = vpop.f32.mrb[0].mxu0
      %1760 = vmatprep.mubr.bf16.mxu0 0
      %1761 = vmatmul.mubr.bf16.gmra.mrb[0].mxu0 %v866
      %v1762 = vpop.f32.mrb[0].mxu0
      %v1763 = vadd.f32 0.0, %v1762
      %v1764 = vpop.f32.mrb[0].mxu0
      %v1765 = vpop.f32.mrb[0].mxu0
      %v1766 = vadd.f32 0.0, %v1765
      %v1767 = vpop.f32.mrb[0].mxu0
      %1768 = vdwg.mxu0
      %v1769 = vadd.f32 %v1691, %v1739
      %v1770 = vadd.f32 %v1692, %v1742
      %v1771 = vadd.f32 %v1693, %v1747
      %v1772 = vadd.f32 %v1694, %v1750
      %v1773 = vadd.f32 %v1695, %v1755
      %v1774 = vadd.f32 %v1696, %v1758
      %v1775 = vadd.f32 %v1697, %v1763
      %v1776 = vadd.f32 %v1698, %v1766
      %v1777 = vld [vmem:[%s526 + $0x4] sm:$0xf]
      %v1778 = vld [vmem:[%s526 + $0x24] sm:$0x1]
      %v1779 = vadd.s32 %v692, 1
      %v1780 = vadd.s32 %v693, 1
      %v1781 = vadd.s32 %v694, 1
      %v1782 = vadd.s32 %v695, 1
      %v1783 = vadd.s32 %v696, 1
      %v1784 = vadd.s32 %v697, 1
      %v1785 = vadd.s32 %v698, 1
      %v1786 = vadd.s32 %v699, 1
      %vm1787 = vcmp.ge.s32.totalorder %v1779, 0
      %vm1788 = vcmp.ge.s32.totalorder %v1780, 0
      %vm1789 = vcmp.ge.s32.totalorder %v1781, 0
      %vm1790 = vcmp.ge.s32.totalorder %v1782, 0
      %vm1791 = vcmp.ge.s32.totalorder %v1783, 0
      %vm1792 = vcmp.ge.s32.totalorder %v1784, 0
      %vm1793 = vcmp.ge.s32.totalorder %v1785, 0
      %vm1794 = vcmp.ge.s32.totalorder %v1786, 0
      %vm1795 = vcmp.lt.s32.totalorder %v1779, 8
      %vm1796 = vcmp.lt.s32.totalorder %v1780, 8
      %vm1797 = vcmp.lt.s32.totalorder %v1781, 8
      %vm1798 = vcmp.lt.s32.totalorder %v1782, 8
      %vm1799 = vcmp.lt.s32.totalorder %v1783, 8
      %vm1800 = vcmp.lt.s32.totalorder %v1784, 8
      %vm1801 = vcmp.lt.s32.totalorder %v1785, 8
      %vm1802 = vcmp.lt.s32.totalorder %v1786, 8
      %vm1803 = vmand %vm1787, %vm1795
      %vm1804 = vmand %vm1788, %vm1796
      %vm1805 = vmand %vm1789, %vm1797
      %vm1806 = vmand %vm1790, %vm1798
      %vm1807 = vmand %vm1791, %vm1799
      %vm1808 = vmand %vm1792, %vm1800
      %vm1809 = vmand %vm1793, %vm1801
      %vm1810 = vmand %vm1794, %vm1802
      %v1811 = vsel %vm1803, 1, 0
      %v1812 = vsel %vm1804, 1, 0
      %v1813 = vsel %vm1805, 1, 0
      %v1814 = vsel %vm1806, 1, 0
      %v1815 = vsel %vm1807, 1, 0
      %v1816 = vsel %vm1808, 1, 0
      %v1817 = vsel %vm1809, 1, 0
      %v1818 = vsel %vm1810, 1, 0
      %vm1819 = vcmp.eq.s32.totalorder %v1811, 1
      %vm1820 = vcmp.eq.s32.totalorder %v1812, 1
      %vm1821 = vcmp.eq.s32.totalorder %v1813, 1
      %vm1822 = vcmp.eq.s32.totalorder %v1814, 1
      %vm1823 = vcmp.eq.s32.totalorder %v1815, 1
      %vm1824 = vcmp.eq.s32.totalorder %v1816, 1
      %vm1825 = vcmp.eq.s32.totalorder %v1817, 1
      %vm1826 = vcmp.eq.s32.totalorder %v1818, 1
      %vm1827 = vmpackc.low %vm1819, %vm1819
      %vm1828 = vmpackc.low %vm1820, %vm1820
      %vm1829 = vmpackc.low %vm1821, %vm1821
      %vm1830 = vmpackc.low %vm1822, %vm1822
      %vm1831 = vmpackc.low %vm1823, %vm1823
      %vm1832 = vmpackc.low %vm1824, %vm1824
      %vm1833 = vmpackc.low %vm1825, %vm1825
      %vm1834 = vmpackc.low %vm1826, %vm1826
      %v1835 = vsel %vm1827, 65537, 0
      %v1836 = vsel %vm1828, 65537, 0
      %v1837 = vsel %vm1829, 65537, 0
      %v1838 = vsel %vm1830, 65537, 0
      %v1839 = vsel %vm1831, 65537, 0
      %v1840 = vsel %vm1832, 65537, 0
      %v1841 = vsel %vm1833, 65537, 0
      %v1842 = vsel %vm1834, 65537, 0
      %vm1843 = vsmask.f32 256
      %vm1844 = vsmask.f32 4368
      %vm1845 = vmor %vm1843, %vm1844
      %v1847 = vshrl.u32 %v1835, 16
      %v1849 = vrot.slane %v1847, 7
      %v1850 = vshll.u32 %v1835, 16
      %v1852 = vor.u32 %v1849, %v1850
      %v1853 = vrot.slane %v1849, 4
      %v1855 = vshrl.u32 %v1836, 16
      %v1857 = vrot.slane %v1855, 7
      %v1858 = vshll.u32 %v1836, 16
      %v1860 = vor.u32 %v1857, %v1858
      %v1861 = vsel %vm1845, %v1853, %v1860
      %v1862 = vrot.slane %v1857, 4
      %v1864 = vshrl.u32 %v1837, 16
      %v1866 = vrot.slane %v1864, 7
      %v1867 = vshll.u32 %v1837, 16
      %v1869 = vor.u32 %v1866, %v1867
      %v1870 = vsel %vm1845, %v1862, %v1869
      %v1871 = vrot.slane %v1866, 4
      %v1873 = vshrl.u32 %v1838, 16
      %v1875 = vrot.slane %v1873, 7
      %v1876 = vshll.u32 %v1838, 16
      %v1878 = vor.u32 %v1875, %v1876
      %v1879 = vsel %vm1845, %v1871, %v1878
      %v1880 = vrot.slane %v1875, 4
      %v1882 = vshrl.u32 %v1839, 16
      %v1884 = vrot.slane %v1882, 7
      %v1885 = vshll.u32 %v1839, 16
      %v1887 = vor.u32 %v1884, %v1885
      %v1888 = vsel %vm1845, %v1880, %v1887
      %v1889 = vrot.slane %v1884, 4
      %v1891 = vshrl.u32 %v1840, 16
      %v1893 = vrot.slane %v1891, 7
      %v1894 = vshll.u32 %v1840, 16
      %v1896 = vor.u32 %v1893, %v1894
      %v1897 = vsel %vm1845, %v1889, %v1896
      %v1898 = vrot.slane %v1893, 4
      %v1900 = vshrl.u32 %v1841, 16
      %v1902 = vrot.slane %v1900, 7
      %v1903 = vshll.u32 %v1841, 16
      %v1905 = vor.u32 %v1902, %v1903
      %v1906 = vsel %vm1845, %v1898, %v1905
      %v1907 = vrot.slane %v1902, 4
      %v1909 = vshrl.u32 %v1842, 16
      %v1911 = vrot.slane %v1909, 7
      %v1912 = vshll.u32 %v1842, 16
      %v1914 = vor.u32 %v1911, %v1912
      %v1915 = vsel %vm1845, %v1907, %v1914
      %v1916 = vrot.slane %v1911, 4
      %vm1917 = vcmp.ne.s16.totalorder %v1852, 0
      %vm1918 = vcmp.ne.s16.totalorder %v1861, 0
      %vm1919 = vcmp.ne.s16.totalorder %v1870, 0
      %vm1920 = vcmp.ne.s16.totalorder %v1879, 0
      %vm1921 = vcmp.ne.s16.totalorder %v1888, 0
      %vm1922 = vcmp.ne.s16.totalorder %v1897, 0
      %vm1923 = vcmp.ne.s16.totalorder %v1906, 0
      %vm1924 = vcmp.ne.s16.totalorder %v1915, 0
      %vm1925 = vcmp.ne.s16.totalorder %v1916, 0
      %v1926 = vsel %vm1917, %v1777, 0
      %v1927 = vsel %vm1918, %v1258, 0
      %v1928 = vsel %vm1919, %v1259, 0
      %v1929 = vsel %vm1920, %v1260, 0
      %v1930 = vsel %vm1921, %v1261, 0
      %v1931 = vsel %vm1922, %v1262, 0
      %v1932 = vsel %vm1923, %v1263, 0
      %v1933 = vsel %vm1924, %v1264, 0
      %v1934 = vsel %vm1925, %v1778, 0
      %s1935 = scalar_lea.vmem %s6, 16
      %v1936 = vld [vmem:[%s1935] sm:$0x3]
      %v1946 = vunpack.c.l.b16 %v1926
      %v1947 = vunpack.c.l.b16 %v1927
      %v1948 = vunpack.c.l.b16 %v1928
      %v1949 = vunpack.c.l.b16 %v1929
      %v1950 = vunpack.c.l.b16 %v1930
      %v1951 = vunpack.c.l.b16 %v1931
      %v1952 = vunpack.c.l.b16 %v1932
      %v1953 = vunpack.c.l.b16 %v1933
      %v1954 = vunpack.c.l.b16 %v1934
      %v1955 = vpack.c.b16 %v1947, %v1946
      %v1956 = vpack.c.b16 %v1949, %v1948
      %v1957 = vpack.c.b16 %v1951, %v1950
      %v1958 = vpack.c.b16 %v1953, %v1952
      %v1959 = vpack.c.b16 %v1954, %v1954
      %vm1960 = vsmask.f32 7424
      %v1962 = vshrl.u32 %v1955, 16
      %v1964 = vshll.u32 %v1955, 16
      %v1966 = vrot.slane %v1964, 1
      %v1967 = vor.u32 %v1962, %v1966
      %v1969 = vshll.u32 %v1956, 16
      %v1971 = vrot.slane %v1969, 1
      %v1972 = vsel %vm1960, %v1967, %v1971
      %v1973 = vshrl.u32 %v1956, 16
      %v1975 = vor.u32 %v1973, %v1971
      %v1977 = vshll.u32 %v1957, 16
      %v1979 = vrot.slane %v1977, 1
      %v1980 = vsel %vm1960, %v1975, %v1979
      %v1981 = vshrl.u32 %v1957, 16
      %v1983 = vor.u32 %v1981, %v1979
      %v1985 = vshll.u32 %v1958, 16
      %v1987 = vrot.slane %v1985, 1
      %v1988 = vsel %vm1960, %v1983, %v1987
      %v1989 = vshrl.u32 %v1958, 16
      %v1991 = vor.u32 %v1989, %v1987
      %v1993 = vshll.u32 %v1959, 16
      %v1995 = vrot.slane %v1993, 1
      %v1996 = vsel %vm1960, %v1991, %v1995
      %v1998 = vsel %vm736, %v1972, 0
      %v2001 = vsel %vm736, %v1980, 0
      %v2004 = vsel %vm736, %v1988, 0
      %v2007 = vsel %vm736, %v1996, 0
      %v2010 = vsel %vm749, %v1936, 0
      %2012 = vmatprep.subr.bf16.mxu0 0
      %2013 = vmatpush1.bf16.msra.mxu0 %v2010
      %2014 = vmatprep.subr.bf16.mxu0 0
      %2015 = vmatpush1.bf16.msra.mxu0 0
      %2016 = vmatprep.subr.bf16.mxu0 0
      %2017 = vmatpush1.bf16.msra.mxu0 0
      %2018 = vmatprep.subr.bf16.mxu0 0
      %2019 = vmatpush1.bf16.msra.mxu0 0
      %2020 = vmatprep.subr.bf16.mxu0 0
      %2021 = vmatpush1.bf16.msra.mxu0 0
      %2022 = vmatprep.subr.bf16.mxu0 0
      %2023 = vmatpush1.bf16.msra.mxu0 0
      %2024 = vmatprep.subr.bf16.mxu0 0
      %2025 = vmatpush1.bf16.msra.mxu0 0
      %2026 = vmatprep.subr.bf16.mxu0 0
      %2027 = vmatpush1.bf16.msra.mxu0 0
      %2028 = vmatprep.subr.bf16.mxu0 0
      %2029 = vmatpush1.bf16.msra.mxu0 0
      %2030 = vmatprep.subr.bf16.mxu0 0
      %2031 = vmatpush1.bf16.msra.mxu0 0
      %2032 = vmatprep.subr.bf16.mxu0 0
      %2033 = vmatpush1.bf16.msra.mxu0 0
      %2034 = vmatprep.subr.bf16.mxu0 0
      %2035 = vmatpush1.bf16.msra.mxu0 0
      %2036 = vmatprep.subr.bf16.mxu0 0
      %2037 = vmatpush1.bf16.msra.mxu0 0
      %2038 = vmatprep.subr.bf16.mxu0 0
      %2039 = vmatpush1.bf16.msra.mxu0 0
      %2040 = vmatprep.subr.bf16.mxu0 0
      %2041 = vmatpush1.bf16.msra.mxu0 0
      %2042 = vmatprep.subr.bf16.mxu0 0
      %2043 = vmatpush1.bf16.msra.mxu0 0
      %2044 = vmatprep.mubr.bf16.mxu0 0
      %2045 = vmatmul.mubr.bf16.gmra.mrb[0].mxu0 %v1998
      %v2046 = vpop.f32.mrb[0].mxu0
      %v2047 = vadd.f32 0.0, %v2046
      %v2048 = vpop.f32.mrb[0].mxu0
      %v2049 = vpop.f32.mrb[0].mxu0
      %v2050 = vadd.f32 0.0, %v2049
      %v2051 = vpop.f32.mrb[0].mxu0
      %2052 = vmatprep.mubr.bf16.mxu0 0
      %2053 = vmatmul.mubr.bf16.gmra.mrb[0].mxu0 %v2001
      %v2054 = vpop.f32.mrb[0].mxu0
      %v2055 = vadd.f32 0.0, %v2054
      %v2056 = vpop.f32.mrb[0].mxu0
      %v2057 = vpop.f32.mrb[0].mxu0
      %v2058 = vadd.f32 0.0, %v2057
      %v2059 = vpop.f32.mrb[0].mxu0
      %2060 = vmatprep.mubr.bf16.mxu0 0
      %2061 = vmatmul.mubr.bf16.gmra.mrb[0].mxu0 %v2004
      %v2062 = vpop.f32.mrb[0].mxu0
      %v2063 = vadd.f32 0.0, %v2062
      %v2064 = vpop.f32.mrb[0].mxu0
      %v2065 = vpop.f32.mrb[0].mxu0
      %v2066 = vadd.f32 0.0, %v2065
      %v2067 = vpop.f32.mrb[0].mxu0
      %2068 = vmatprep.mubr.bf16.mxu0 0
      %2069 = vmatmul.mubr.bf16.gmra.mrb[0].mxu0 %v2007
      %v2070 = vpop.f32.mrb[0].mxu0
      %v2071 = vadd.f32 0.0, %v2070
      %v2072 = vpop.f32.mrb[0].mxu0
      %v2073 = vpop.f32.mrb[0].mxu0
      %v2074 = vadd.f32 0.0, %v2073
      %v2075 = vpop.f32.mrb[0].mxu0
      %2076 = vdwg.mxu0
      %v2077 = vadd.f32 %v1769, %v2047
      %v2078 = vadd.f32 %v1770, %v2050
      %v2079 = vadd.f32 %v1771, %v2055
      %v2080 = vadd.f32 %v1772, %v2058
      %v2081 = vadd.f32 %v1773, %v2063
      %v2082 = vadd.f32 %v1774, %v2066
      %v2083 = vadd.f32 %v1775, %v2071
      %v2084 = vadd.f32 %v1776, %v2074
      %vm2085 = vcmask 64512
      %2086 = vst.msk [vmem:[%s590] sm:$0xff] %vm2085, %v2077
      %2087 = vst.msk [vmem:[%s590 + $0x8] sm:$0xff] %vm2085, %v2078
      %2088 = vst.msk [vmem:[%s590 + $0x10] sm:$0xff] %vm2085, %v2079
      %2089 = vst.msk [vmem:[%s590 + $0x18] sm:$0xff] %vm2085, %v2080
      %2090 = vst.msk [vmem:[%s590 + $0x20] sm:$0xff] %vm2085, %v2081
      %2091 = vst.msk [vmem:[%s590 + $0x28] sm:$0xff] %vm2085, %v2082
      %2092 = vst.msk [vmem:[%s590 + $0x30] sm:$0xff] %vm2085, %v2083
      %2093 = vst.msk [vmem:[%s590 + $0x38] sm:$0xff] %vm2085, %v2084
      %v2094 = vld [vmem:[%s526 + $0x4] sm:$0xf]
      %v2095 = vld [vmem:[%s526 + $0x8] sm:$0xf]
      %v2096 = vld [vmem:[%s526 + $0xc] sm:$0xf]
      %v2097 = vld [vmem:[%s526 + $0x10] sm:$0xf]
      %v2098 = vld [vmem:[%s526 + $0x14] sm:$0xf]
      %v2099 = vld [vmem:[%s526 + $0x18] sm:$0xf]
      %v2100 = vld [vmem:[%s526 + $0x1c] sm:$0xf]
      %v2101 = vld [vmem:[%s526 + $0x20] sm:$0xf]
      %v2102 = vld [vmem:[%s6] sm:$0x3]
      %v2111 = vunpack.c.l.b16 %v2094
      %v2112 = vunpack.c.l.b16 %v2095
      %v2113 = vunpack.c.l.b16 %v2096
      %v2114 = vunpack.c.l.b16 %v2097
      %v2115 = vunpack.c.l.b16 %v2098
      %v2116 = vunpack.c.l.b16 %v2099
      %v2117 = vunpack.c.l.b16 %v2100
      %v2118 = vunpack.c.l.b16 %v2101
      %v2119 = vpack.c.b16 %v2112, %v2111
      %v2120 = vpack.c.b16 %v2114, %v2113
      %v2121 = vpack.c.b16 %v2116, %v2115
      %v2122 = vpack.c.b16 %v2118, %v2117
      %v2124 = vsel %vm736, %v2119, 0
      %v2127 = vsel %vm736, %v2120, 0
      %v2130 = vsel %vm736, %v2121, 0
      %v2133 = vsel %vm736, %v2122, 0
      %v2136 = vsel %vm749, %v2102, 0
      %2138 = vmatprep.subr.bf16.mxu0 0
      %2139 = vmatpush1.bf16.msra.mxu0 %v2136
      %2140 = vmatprep.subr.bf16.mxu0 0
      %2141 = vmatpush1.bf16.msra.mxu0 0
      %2142 = vmatprep.subr.bf16.mxu0 0
      %2143 = vmatpush1.bf16.msra.mxu0 0
      %2144 = vmatprep.subr.bf16.mxu0 0
      %2145 = vmatpush1.bf16.msra.mxu0 0
      %2146 = vmatprep.subr.bf16.mxu0 0
      %2147 = vmatpush1.bf16.msra.mxu0 0
      %2148 = vmatprep.subr.bf16.mxu0 0
      %2149 = vmatpush1.bf16.msra.mxu0 0
      %2150 = vmatprep.subr.bf16.mxu0 0
      %2151 = vmatpush1.bf16.msra.mxu0 0
      %2152 = vmatprep.subr.bf16.mxu0 0
      %2153 = vmatpush1.bf16.msra.mxu0 0
      %2154 = vmatprep.subr.bf16.mxu0 0
      %2155 = vmatpush1.bf16.msra.mxu0 0
      %2156 = vmatprep.subr.bf16.mxu0 0
      %2157 = vmatpush1.bf16.msra.mxu0 0
      %2158 = vmatprep.subr.bf16.mxu0 0
      %2159 = vmatpush1.bf16.msra.mxu0 0
      %2160 = vmatprep.subr.bf16.mxu0 0
      %2161 = vmatpush1.bf16.msra.mxu0 0
      %2162 = vmatprep.subr.bf16.mxu0 0
      %2163 = vmatpush1.bf16.msra.mxu0 0
      %2164 = vmatprep.subr.bf16.mxu0 0
      %2165 = vmatpush1.bf16.msra.mxu0 0
      %2166 = vmatprep.subr.bf16.mxu0 0
      %2167 = vmatpush1.bf16.msra.mxu0 0
      %2168 = vmatprep.subr.bf16.mxu0 0
      %2169 = vmatpush1.bf16.msra.mxu0 0
      %2170 = vmatprep.mubr.bf16.mxu0 0
      %2171 = vmatmul.mubr.bf16.gmra.mrb[0].mxu0 %v2124
      %v2172 = vpop.f32.mrb[0].mxu0
      %v2173 = vadd.f32 0.0, %v2172
      %v2174 = vpop.f32.mrb[0].mxu0
      %v2175 = vpop.f32.mrb[0].mxu0
      %v2176 = vadd.f32 0.0, %v2175
      %v2177 = vpop.f32.mrb[0].mxu0
      %2178 = vmatprep.mubr.bf16.mxu0 0
      %2179 = vmatmul.mubr.bf16.gmra.mrb[0].mxu0 %v2127
      %v2180 = vpop.f32.mrb[0].mxu0
      %v2181 = vadd.f32 0.0, %v2180
      %v2182 = vpop.f32.mrb[0].mxu0
      %v2183 = vpop.f32.mrb[0].mxu0
      %v2184 = vadd.f32 0.0, %v2183
      %v2185 = vpop.f32.mrb[0].mxu0
      %2186 = vmatprep.mubr.bf16.mxu0 0
      %2187 = vmatmul.mubr.bf16.gmra.mrb[0].mxu0 %v2130
      %v2188 = vpop.f32.mrb[0].mxu0
      %v2189 = vadd.f32 0.0, %v2188
      %v2190 = vpop.f32.mrb[0].mxu0
      %v2191 = vpop.f32.mrb[0].mxu0
      %v2192 = vadd.f32 0.0, %v2191
      %v2193 = vpop.f32.mrb[0].mxu0
      %2194 = vmatprep.mubr.bf16.mxu0 0
      %2195 = vmatmul.mubr.bf16.gmra.mrb[0].mxu0 %v2133
      %v2196 = vpop.f32.mrb[0].mxu0
      %v2197 = vadd.f32 0.0, %v2196
      %v2198 = vpop.f32.mrb[0].mxu0
      %v2199 = vpop.f32.mrb[0].mxu0
      %v2200 = vadd.f32 0.0, %v2199
      %v2201 = vpop.f32.mrb[0].mxu0
      %2202 = vdwg.mxu0
      %v2203 = vadd.f32 %v705, %v2173
      %v2204 = vadd.f32 %v705, %v2176
      %v2205 = vadd.f32 %v705, %v2181
      %v2206 = vadd.f32 %v705, %v2184
      %v2207 = vadd.f32 %v705, %v2189
      %v2208 = vadd.f32 %v705, %v2192
      %v2209 = vadd.f32 %v705, %v2197
      %v2210 = vadd.f32 %v705, %v2200
      %v2211 = vld [vmem:[%s539 + $0x4] sm:$0xf]
      %v2212 = vld [vmem:[%s539 + $0x8] sm:$0xf]
      %v2213 = vld [vmem:[%s539 + $0xc] sm:$0xf]
      %v2214 = vld [vmem:[%s539 + $0x10] sm:$0xf]
      %v2215 = vld [vmem:[%s539 + $0x14] sm:$0xf]
      %v2216 = vld [vmem:[%s539 + $0x18] sm:$0xf]
      %v2217 = vld [vmem:[%s539 + $0x1c] sm:$0xf]
      %v2218 = vld [vmem:[%s539 + $0x20] sm:$0xf]
      %v2219 = vld [vmem:[%s834] sm:$0x3]
      %v2228 = vunpack.c.l.b16 %v2211
      %v2229 = vunpack.c.l.b16 %v2212
      %v2230 = vunpack.c.l.b16 %v2213
      %v2231 = vunpack.c.l.b16 %v2214
      %v2232 = vunpack.c.l.b16 %v2215
      %v2233 = vunpack.c.l.b16 %v2216
      %v2234 = vunpack.c.l.b16 %v2217
      %v2235 = vunpack.c.l.b16 %v2218
      %v2236 = vpack.c.b16 %v2229, %v2228
      %v2237 = vpack.c.b16 %v2231, %v2230
      %v2238 = vpack.c.b16 %v2233, %v2232
      %v2239 = vpack.c.b16 %v2235, %v2234
      %v2241 = vsel %vm736, %v2236, 0
      %v2244 = vsel %vm736, %v2237, 0
      %v2247 = vsel %vm736, %v2238, 0
      %v2250 = vsel %vm736, %v2239, 0
      %v2253 = vsel %vm749, %v2219, 0
      %2255 = vmatprep.subr.bf16.mxu0 0
      %2256 = vmatpush1.bf16.msra.mxu0 %v2253
      %2257 = vmatprep.subr.bf16.mxu0 0
      %2258 = vmatpush1.bf16.msra.mxu0 0
      %2259 = vmatprep.subr.bf16.mxu0 0
      %2260 = vmatpush1.bf16.msra.mxu0 0
      %2261 = vmatprep.subr.bf16.mxu0 0
      %2262 = vmatpush1.bf16.msra.mxu0 0
      %2263 = vmatprep.subr.bf16.mxu0 0
      %2264 = vmatpush1.bf16.msra.mxu0 0
      %2265 = vmatprep.subr.bf16.mxu0 0
      %2266 = vmatpush1.bf16.msra.mxu0 0
      %2267 = vmatprep.subr.bf16.mxu0 0
      %2268 = vmatpush1.bf16.msra.mxu0 0
      %2269 = vmatprep.subr.bf16.mxu0 0
      %2270 = vmatpush1.bf16.msra.mxu0 0
      %2271 = vmatprep.subr.bf16.mxu0 0
      %2272 = vmatpush1.bf16.msra.mxu0 0
      %2273 = vmatprep.subr.bf16.mxu0 0
      %2274 = vmatpush1.bf16.msra.mxu0 0
      %2275 = vmatprep.subr.bf16.mxu0 0
      %2276 = vmatpush1.bf16.msra.mxu0 0
      %2277 = vmatprep.subr.bf16.mxu0 0
      %2278 = vmatpush1.bf16.msra.mxu0 0
      %2279 = vmatprep.subr.bf16.mxu0 0
      %2280 = vmatpush1.bf16.msra.mxu0 0
      %2281 = vmatprep.subr.bf16.mxu0 0
      %2282 = vmatpush1.bf16.msra.mxu0 0
      %2283 = vmatprep.subr.bf16.mxu0 0
      %2284 = vmatpush1.bf16.msra.mxu0 0
      %2285 = vmatprep.subr.bf16.mxu0 0
      %2286 = vmatpush1.bf16.msra.mxu0 0
      %2287 = vmatprep.mubr.bf16.mxu0 0
      %2288 = vmatmul.mubr.bf16.gmra.mrb[0].mxu0 %v2241
      %v2289 = vpop.f32.mrb[0].mxu0
      %v2290 = vadd.f32 0.0, %v2289
      %v2291 = vpop.f32.mrb[0].mxu0
      %v2292 = vpop.f32.mrb[0].mxu0
      %v2293 = vadd.f32 0.0, %v2292
      %v2294 = vpop.f32.mrb[0].mxu0
      %2295 = vmatprep.mubr.bf16.mxu0 0
      %2296 = vmatmul.mubr.bf16.gmra.mrb[0].mxu0 %v2244
      %v2297 = vpop.f32.mrb[0].mxu0
      %v2298 = vadd.f32 0.0, %v2297
      %v2299 = vpop.f32.mrb[0].mxu0
      %v2300 = vpop.f32.mrb[0].mxu0
      %v2301 = vadd.f32 0.0, %v2300
      %v2302 = vpop.f32.mrb[0].mxu0
      %2303 = vmatprep.mubr.bf16.mxu0 0
      %2304 = vmatmul.mubr.bf16.gmra.mrb[0].mxu0 %v2247
      %v2305 = vpop.f32.mrb[0].mxu0
      %v2306 = vadd.f32 0.0, %v2305
      %v2307 = vpop.f32.mrb[0].mxu0
      %v2308 = vpop.f32.mrb[0].mxu0
      %v2309 = vadd.f32 0.0, %v2308
      %v2310 = vpop.f32.mrb[0].mxu0
      %2311 = vmatprep.mubr.bf16.mxu0 0
      %2312 = vmatmul.mubr.bf16.gmra.mrb[0].mxu0 %v2250
      %v2313 = vpop.f32.mrb[0].mxu0
      %v2314 = vadd.f32 0.0, %v2313
      %v2315 = vpop.f32.mrb[0].mxu0
      %v2316 = vpop.f32.mrb[0].mxu0
      %v2317 = vadd.f32 0.0, %v2316
      %v2318 = vpop.f32.mrb[0].mxu0
      %2319 = vdwg.mxu0
      %v2320 = vadd.f32 %v2203, %v2290
      %v2321 = vadd.f32 %v2204, %v2293
      %v2322 = vadd.f32 %v2205, %v2298
      %v2323 = vadd.f32 %v2206, %v2301
      %v2324 = vadd.f32 %v2207, %v2306
      %v2325 = vadd.f32 %v2208, %v2309
      %v2326 = vadd.f32 %v2209, %v2314
      %v2327 = vadd.f32 %v2210, %v2317
      %v2328 = vld [vmem:[%s552 + $0x4] sm:$0xf]
      %v2329 = vld [vmem:[%s552 + $0x8] sm:$0xf]
      %v2330 = vld [vmem:[%s552 + $0xc] sm:$0xf]
      %v2331 = vld [vmem:[%s552 + $0x10] sm:$0xf]
      %v2332 = vld [vmem:[%s552 + $0x14] sm:$0xf]
      %v2333 = vld [vmem:[%s552 + $0x18] sm:$0xf]
      %v2334 = vld [vmem:[%s552 + $0x1c] sm:$0xf]
      %v2335 = vld [vmem:[%s552 + $0x20] sm:$0xf]
      %v2336 = vld [vmem:[%s952] sm:$0x3]
      %v2345 = vunpack.c.l.b16 %v2328
      %v2346 = vunpack.c.l.b16 %v2329
      %v2347 = vunpack.c.l.b16 %v2330
      %v2348 = vunpack.c.l.b16 %v2331
      %v2349 = vunpack.c.l.b16 %v2332
      %v2350 = vunpack.c.l.b16 %v2333
      %v2351 = vunpack.c.l.b16 %v2334
      %v2352 = vunpack.c.l.b16 %v2335
      %v2353 = vpack.c.b16 %v2346, %v2345
      %v2354 = vpack.c.b16 %v2348, %v2347
      %v2355 = vpack.c.b16 %v2350, %v2349
      %v2356 = vpack.c.b16 %v2352, %v2351
      %v2358 = vsel %vm736, %v2353, 0
      %v2361 = vsel %vm736, %v2354, 0
      %v2364 = vsel %vm736, %v2355, 0
      %v2367 = vsel %vm736, %v2356, 0
      %v2370 = vsel %vm749, %v2336, 0
      %2372 = vmatprep.subr.bf16.mxu0 0
      %2373 = vmatpush1.bf16.msra.mxu0 %v2370
      %2374 = vmatprep.subr.bf16.mxu0 0
      %2375 = vmatpush1.bf16.msra.mxu0 0
      %2376 = vmatprep.subr.bf16.mxu0 0
      %2377 = vmatpush1.bf16.msra.mxu0 0
      %2378 = vmatprep.subr.bf16.mxu0 0
      %2379 = vmatpush1.bf16.msra.mxu0 0
      %2380 = vmatprep.subr.bf16.mxu0 0
      %2381 = vmatpush1.bf16.msra.mxu0 0
      %2382 = vmatprep.subr.bf16.mxu0 0
      %2383 = vmatpush1.bf16.msra.mxu0 0
      %2384 = vmatprep.subr.bf16.mxu0 0
      %2385 = vmatpush1.bf16.msra.mxu0 0
      %2386 = vmatprep.subr.bf16.mxu0 0
      %2387 = vmatpush1.bf16.msra.mxu0 0
      %2388 = vmatprep.subr.bf16.mxu0 0
      %2389 = vmatpush1.bf16.msra.mxu0 0
      %2390 = vmatprep.subr.bf16.mxu0 0
      %2391 = vmatpush1.bf16.msra.mxu0 0
      %2392 = vmatprep.subr.bf16.mxu0 0
      %2393 = vmatpush1.bf16.msra.mxu0 0
      %2394 = vmatprep.subr.bf16.mxu0 0
      %2395 = vmatpush1.bf16.msra.mxu0 0
      %2396 = vmatprep.subr.bf16.mxu0 0
      %2397 = vmatpush1.bf16.msra.mxu0 0
      %2398 = vmatprep.subr.bf16.mxu0 0
      %2399 = vmatpush1.bf16.msra.mxu0 0
      %2400 = vmatprep.subr.bf16.mxu0 0
      %2401 = vmatpush1.bf16.msra.mxu0 0
      %2402 = vmatprep.subr.bf16.mxu0 0
      %2403 = vmatpush1.bf16.msra.mxu0 0
      %2404 = vmatprep.mubr.bf16.mxu0 0
      %2405 = vmatmul.mubr.bf16.gmra.mrb[0].mxu0 %v2358
      %v2406 = vpop.f32.mrb[0].mxu0
      %v2407 = vadd.f32 0.0, %v2406
      %v2408 = vpop.f32.mrb[0].mxu0
      %v2409 = vpop.f32.mrb[0].mxu0
      %v2410 = vadd.f32 0.0, %v2409
      %v2411 = vpop.f32.mrb[0].mxu0
      %2412 = vmatprep.mubr.bf16.mxu0 0
      %2413 = vmatmul.mubr.bf16.gmra.mrb[0].mxu0 %v2361
      %v2414 = vpop.f32.mrb[0].mxu0
      %v2415 = vadd.f32 0.0, %v2414
      %v2416 = vpop.f32.mrb[0].mxu0
      %v2417 = vpop.f32.mrb[0].mxu0
      %v2418 = vadd.f32 0.0, %v2417
      %v2419 = vpop.f32.mrb[0].mxu0
      %2420 = vmatprep.mubr.bf16.mxu0 0
      %2421 = vmatmul.mubr.bf16.gmra.mrb[0].mxu0 %v2364
      %v2422 = vpop.f32.mrb[0].mxu0
      %v2423 = vadd.f32 0.0, %v2422
      %v2424 = vpop.f32.mrb[0].mxu0
      %v2425 = vpop.f32.mrb[0].mxu0
      %v2426 = vadd.f32 0.0, %v2425
      %v2427 = vpop.f32.mrb[0].mxu0
      %2428 = vmatprep.mubr.bf16.mxu0 0
      %2429 = vmatmul.mubr.bf16.gmra.mrb[0].mxu0 %v2367
      %v2430 = vpop.f32.mrb[0].mxu0
      %v2431 = vadd.f32 0.0, %v2430
      %v2432 = vpop.f32.mrb[0].mxu0
      %v2433 = vpop.f32.mrb[0].mxu0
      %v2434 = vadd.f32 0.0, %v2433
      %v2435 = vpop.f32.mrb[0].mxu0
      %2436 = vdwg.mxu0
      %v2437 = vadd.f32 %v2320, %v2407
      %v2438 = vadd.f32 %v2321, %v2410
      %v2439 = vadd.f32 %v2322, %v2415
      %v2440 = vadd.f32 %v2323, %v2418
      %v2441 = vadd.f32 %v2324, %v2423
      %v2442 = vadd.f32 %v2325, %v2426
      %v2443 = vadd.f32 %v2326, %v2431
      %v2444 = vadd.f32 %v2327, %v2434
      %v2445 = vld [vmem:[%s539] sm:$0xf]
      %v2446 = vld [vmem:[%s539 + $0x4] sm:$0xf]
      %v2447 = vld [vmem:[%s539 + $0x8] sm:$0xf]
      %v2448 = vld [vmem:[%s539 + $0xc] sm:$0xf]
      %v2449 = vld [vmem:[%s539 + $0x10] sm:$0xf]
      %v2450 = vld [vmem:[%s539 + $0x14] sm:$0xf]
      %v2451 = vld [vmem:[%s539 + $0x18] sm:$0xf]
      %v2452 = vld [vmem:[%s539 + $0x1c] sm:$0xf]
      %v2453 = vld [vmem:[%s1070] sm:$0x3]
      %v2462 = vunpack.c.l.b16 %v2445
      %v2463 = vunpack.c.l.b16 %v2446
      %v2464 = vunpack.c.l.b16 %v2447
      %v2465 = vunpack.c.l.b16 %v2448
      %v2466 = vunpack.c.l.b16 %v2449
      %v2467 = vunpack.c.l.b16 %v2450
      %v2468 = vunpack.c.l.b16 %v2451
      %v2469 = vunpack.c.l.b16 %v2452
      %v2470 = vpack.c.b16 %v2463, %v2462
      %v2471 = vpack.c.b16 %v2465, %v2464
      %v2472 = vpack.c.b16 %v2467, %v2466
      %v2473 = vpack.c.b16 %v2469, %v2468
      %v2475 = vsel %vm736, %v2470, 0
      %v2478 = vsel %vm736, %v2471, 0
      %v2481 = vsel %vm736, %v2472, 0
      %v2484 = vsel %vm736, %v2473, 0
      %v2487 = vsel %vm749, %v2453, 0
      %2489 = vmatprep.subr.bf16.mxu0 0
      %2490 = vmatpush1.bf16.msra.mxu0 %v2487
      %2491 = vmatprep.subr.bf16.mxu0 0
      %2492 = vmatpush1.bf16.msra.mxu0 0
      %2493 = vmatprep.subr.bf16.mxu0 0
      %2494 = vmatpush1.bf16.msra.mxu0 0
      %2495 = vmatprep.subr.bf16.mxu0 0
      %2496 = vmatpush1.bf16.msra.mxu0 0
      %2497 = vmatprep.subr.bf16.mxu0 0
      %2498 = vmatpush1.bf16.msra.mxu0 0
      %2499 = vmatprep.subr.bf16.mxu0 0
      %2500 = vmatpush1.bf16.msra.mxu0 0
      %2501 = vmatprep.subr.bf16.mxu0 0
      %2502 = vmatpush1.bf16.msra.mxu0 0
      %2503 = vmatprep.subr.bf16.mxu0 0
      %2504 = vmatpush1.bf16.msra.mxu0 0
      %2505 = vmatprep.subr.bf16.mxu0 0
      %2506 = vmatpush1.bf16.msra.mxu0 0
      %2507 = vmatprep.subr.bf16.mxu0 0
      %2508 = vmatpush1.bf16.msra.mxu0 0
      %2509 = vmatprep.subr.bf16.mxu0 0
      %2510 = vmatpush1.bf16.msra.mxu0 0
      %2511 = vmatprep.subr.bf16.mxu0 0
      %2512 = vmatpush1.bf16.msra.mxu0 0
      %2513 = vmatprep.subr.bf16.mxu0 0
      %2514 = vmatpush1.bf16.msra.mxu0 0
      %2515 = vmatprep.subr.bf16.mxu0 0
      %2516 = vmatpush1.bf16.msra.mxu0 0
      %2517 = vmatprep.subr.bf16.mxu0 0
      %2518 = vmatpush1.bf16.msra.mxu0 0
      %2519 = vmatprep.subr.bf16.mxu0 0
      %2520 = vmatpush1.bf16.msra.mxu0 0
      %2521 = vmatprep.mubr.bf16.mxu0 0
      %2522 = vmatmul.mubr.bf16.gmra.mrb[0].mxu0 %v2475
      %v2523 = vpop.f32.mrb[0].mxu0
      %v2524 = vadd.f32 0.0, %v2523
      %v2525 = vpop.f32.mrb[0].mxu0
      %v2526 = vpop.f32.mrb[0].mxu0
      %v2527 = vadd.f32 0.0, %v2526
      %v2528 = vpop.f32.mrb[0].mxu0
      %2529 = vmatprep.mubr.bf16.mxu0 0
      %2530 = vmatmul.mubr.bf16.gmra.mrb[0].mxu0 %v2478
      %v2531 = vpop.f32.mrb[0].mxu0
      %v2532 = vadd.f32 0.0, %v2531
      %v2533 = vpop.f32.mrb[0].mxu0
      %v2534 = vpop.f32.mrb[0].mxu0
      %v2535 = vadd.f32 0.0, %v2534
      %v2536 = vpop.f32.mrb[0].mxu0
      %2537 = vmatprep.mubr.bf16.mxu0 0
      %2538 = vmatmul.mubr.bf16.gmra.mrb[0].mxu0 %v2481
      %v2539 = vpop.f32.mrb[0].mxu0
      %v2540 = vadd.f32 0.0, %v2539
      %v2541 = vpop.f32.mrb[0].mxu0
      %v2542 = vpop.f32.mrb[0].mxu0
      %v2543 = vadd.f32 0.0, %v2542
      %v2544 = vpop.f32.mrb[0].mxu0
      %2545 = vmatprep.mubr.bf16.mxu0 0
      %2546 = vmatmul.mubr.bf16.gmra.mrb[0].mxu0 %v2484
      %v2547 = vpop.f32.mrb[0].mxu0
      %v2548 = vadd.f32 0.0, %v2547
      %v2549 = vpop.f32.mrb[0].mxu0
      %v2550 = vpop.f32.mrb[0].mxu0
      %v2551 = vadd.f32 0.0, %v2550
      %v2552 = vpop.f32.mrb[0].mxu0
      %2553 = vdwg.mxu0
      %v2554 = vadd.f32 %v2437, %v2524
      %v2555 = vadd.f32 %v2438, %v2527
      %v2556 = vadd.f32 %v2439, %v2532
      %v2557 = vadd.f32 %v2440, %v2535
      %v2558 = vadd.f32 %v2441, %v2540
      %v2559 = vadd.f32 %v2442, %v2543
      %v2560 = vadd.f32 %v2443, %v2548
      %v2561 = vadd.f32 %v2444, %v2551
      %v2562 = vld [vmem:[%s1180] sm:$0x3]
      %v2564 = vsel %vm749, %v2562, 0
      %2566 = vmatprep.subr.bf16.mxu0 0
      %2567 = vmatpush1.bf16.msra.mxu0 %v2564
      %2568 = vmatprep.subr.bf16.mxu0 0
      %2569 = vmatpush1.bf16.msra.mxu0 0
      %2570 = vmatprep.subr.bf16.mxu0 0
      %2571 = vmatpush1.bf16.msra.mxu0 0
      %2572 = vmatprep.subr.bf16.mxu0 0
      %2573 = vmatpush1.bf16.msra.mxu0 0
      %2574 = vmatprep.subr.bf16.mxu0 0
      %2575 = vmatpush1.bf16.msra.mxu0 0
      %2576 = vmatprep.subr.bf16.mxu0 0
      %2577 = vmatpush1.bf16.msra.mxu0 0
      %2578 = vmatprep.subr.bf16.mxu0 0
      %2579 = vmatpush1.bf16.msra.mxu0 0
      %2580 = vmatprep.subr.bf16.mxu0 0
      %2581 = vmatpush1.bf16.msra.mxu0 0
      %2582 = vmatprep.subr.bf16.mxu0 0
      %2583 = vmatpush1.bf16.msra.mxu0 0
      %2584 = vmatprep.subr.bf16.mxu0 0
      %2585 = vmatpush1.bf16.msra.mxu0 0
      %2586 = vmatprep.subr.bf16.mxu0 0
      %2587 = vmatpush1.bf16.msra.mxu0 0
      %2588 = vmatprep.subr.bf16.mxu0 0
      %2589 = vmatpush1.bf16.msra.mxu0 0
      %2590 = vmatprep.subr.bf16.mxu0 0
      %2591 = vmatpush1.bf16.msra.mxu0 0
      %2592 = vmatprep.subr.bf16.mxu0 0
      %2593 = vmatpush1.bf16.msra.mxu0 0
      %2594 = vmatprep.subr.bf16.mxu0 0
      %2595 = vmatpush1.bf16.msra.mxu0 0
      %2596 = vmatprep.subr.bf16.mxu0 0
      %2597 = vmatpush1.bf16.msra.mxu0 0
      %2598 = vmatprep.mubr.bf16.mxu0 0
      %2599 = vmatmul.mubr.bf16.gmra.mrb[0].mxu0 %v2241
      %v2600 = vpop.f32.mrb[0].mxu0
      %v2601 = vadd.f32 0.0, %v2600
      %v2602 = vpop.f32.mrb[0].mxu0
      %v2603 = vpop.f32.mrb[0].mxu0
      %v2604 = vadd.f32 0.0, %v2603
      %v2605 = vpop.f32.mrb[0].mxu0
      %2606 = vmatprep.mubr.bf16.mxu0 0
      %2607 = vmatmul.mubr.bf16.gmra.mrb[0].mxu0 %v2244
      %v2608 = vpop.f32.mrb[0].mxu0
      %v2609 = vadd.f32 0.0, %v2608
      %v2610 = vpop.f32.mrb[0].mxu0
      %v2611 = vpop.f32.mrb[0].mxu0
      %v2612 = vadd.f32 0.0, %v2611
      %v2613 = vpop.f32.mrb[0].mxu0
      %2614 = vmatprep.mubr.bf16.mxu0 0
      %2615 = vmatmul.mubr.bf16.gmra.mrb[0].mxu0 %v2247
      %v2616 = vpop.f32.mrb[0].mxu0
      %v2617 = vadd.f32 0.0, %v2616
      %v2618 = vpop.f32.mrb[0].mxu0
      %v2619 = vpop.f32.mrb[0].mxu0
      %v2620 = vadd.f32 0.0, %v2619
      %v2621 = vpop.f32.mrb[0].mxu0
      %2622 = vmatprep.mubr.bf16.mxu0 0
      %2623 = vmatmul.mubr.bf16.gmra.mrb[0].mxu0 %v2250
      %v2624 = vpop.f32.mrb[0].mxu0
      %v2625 = vadd.f32 0.0, %v2624
      %v2626 = vpop.f32.mrb[0].mxu0
      %v2627 = vpop.f32.mrb[0].mxu0
      %v2628 = vadd.f32 0.0, %v2627
      %v2629 = vpop.f32.mrb[0].mxu0
      %2630 = vdwg.mxu0
      %v2631 = vadd.f32 %v2554, %v2601
      %v2632 = vadd.f32 %v2555, %v2604
      %v2633 = vadd.f32 %v2556, %v2609
      %v2634 = vadd.f32 %v2557, %v2612
      %v2635 = vadd.f32 %v2558, %v2617
      %v2636 = vadd.f32 %v2559, %v2620
      %v2637 = vadd.f32 %v2560, %v2625
      %v2638 = vadd.f32 %v2561, %v2628
      %v2639 = vld [vmem:[%s539 + $0x8] sm:$0xf]
      %v2640 = vld [vmem:[%s539 + $0xc] sm:$0xf]
      %v2641 = vld [vmem:[%s539 + $0x10] sm:$0xf]
      %v2642 = vld [vmem:[%s539 + $0x14] sm:$0xf]
      %v2643 = vld [vmem:[%s539 + $0x18] sm:$0xf]
      %v2644 = vld [vmem:[%s539 + $0x1c] sm:$0xf]
      %v2645 = vld [vmem:[%s539 + $0x20] sm:$0xf]
      %v2646 = vld [vmem:[%s539 + $0x24] sm:$0xf]
      %v2647 = vld [vmem:[%s1266] sm:$0x3]
      %v2656 = vunpack.c.l.b16 %v2639
      %v2657 = vunpack.c.l.b16 %v2640
      %v2658 = vunpack.c.l.b16 %v2641
      %v2659 = vunpack.c.l.b16 %v2642
      %v2660 = vunpack.c.l.b16 %v2643
      %v2661 = vunpack.c.l.b16 %v2644
      %v2662 = vunpack.c.l.b16 %v2645
      %v2663 = vunpack.c.l.b16 %v2646
      %v2664 = vpack.c.b16 %v2657, %v2656
      %v2665 = vpack.c.b16 %v2659, %v2658
      %v2666 = vpack.c.b16 %v2661, %v2660
      %v2667 = vpack.c.b16 %v2663, %v2662
      %v2669 = vsel %vm736, %v2664, 0
      %v2672 = vsel %vm736, %v2665, 0
      %v2675 = vsel %vm736, %v2666, 0
      %v2678 = vsel %vm736, %v2667, 0
      %v2681 = vsel %vm749, %v2647, 0
      %2683 = vmatprep.subr.bf16.mxu0 0
      %2684 = vmatpush1.bf16.msra.mxu0 %v2681
      %2685 = vmatprep.subr.bf16.mxu0 0
      %2686 = vmatpush1.bf16.msra.mxu0 0
      %2687 = vmatprep.subr.bf16.mxu0 0
      %2688 = vmatpush1.bf16.msra.mxu0 0
      %2689 = vmatprep.subr.bf16.mxu0 0
      %2690 = vmatpush1.bf16.msra.mxu0 0
      %2691 = vmatprep.subr.bf16.mxu0 0
      %2692 = vmatpush1.bf16.msra.mxu0 0
      %2693 = vmatprep.subr.bf16.mxu0 0
      %2694 = vmatpush1.bf16.msra.mxu0 0
      %2695 = vmatprep.subr.bf16.mxu0 0
      %2696 = vmatpush1.bf16.msra.mxu0 0
      %2697 = vmatprep.subr.bf16.mxu0 0
      %2698 = vmatpush1.bf16.msra.mxu0 0
      %2699 = vmatprep.subr.bf16.mxu0 0
      %2700 = vmatpush1.bf16.msra.mxu0 0
      %2701 = vmatprep.subr.bf16.mxu0 0
      %2702 = vmatpush1.bf16.msra.mxu0 0
      %2703 = vmatprep.subr.bf16.mxu0 0
      %2704 = vmatpush1.bf16.msra.mxu0 0
      %2705 = vmatprep.subr.bf16.mxu0 0
      %2706 = vmatpush1.bf16.msra.mxu0 0
      %2707 = vmatprep.subr.bf16.mxu0 0
      %2708 = vmatpush1.bf16.msra.mxu0 0
      %2709 = vmatprep.subr.bf16.mxu0 0
      %2710 = vmatpush1.bf16.msra.mxu0 0
      %2711 = vmatprep.subr.bf16.mxu0 0
      %2712 = vmatpush1.bf16.msra.mxu0 0
      %2713 = vmatprep.subr.bf16.mxu0 0
      %2714 = vmatpush1.bf16.msra.mxu0 0
      %2715 = vmatprep.mubr.bf16.mxu0 0
      %2716 = vmatmul.mubr.bf16.gmra.mrb[0].mxu0 %v2669
      %v2717 = vpop.f32.mrb[0].mxu0
      %v2718 = vadd.f32 0.0, %v2717
      %v2719 = vpop.f32.mrb[0].mxu0
      %v2720 = vpop.f32.mrb[0].mxu0
      %v2721 = vadd.f32 0.0, %v2720
      %v2722 = vpop.f32.mrb[0].mxu0
      %2723 = vmatprep.mubr.bf16.mxu0 0
      %2724 = vmatmul.mubr.bf16.gmra.mrb[0].mxu0 %v2672
      %v2725 = vpop.f32.mrb[0].mxu0
      %v2726 = vadd.f32 0.0, %v2725
      %v2727 = vpop.f32.mrb[0].mxu0
      %v2728 = vpop.f32.mrb[0].mxu0
      %v2729 = vadd.f32 0.0, %v2728
      %v2730 = vpop.f32.mrb[0].mxu0
      %2731 = vmatprep.mubr.bf16.mxu0 0
      %2732 = vmatmul.mubr.bf16.gmra.mrb[0].mxu0 %v2675
      %v2733 = vpop.f32.mrb[0].mxu0
      %v2734 = vadd.f32 0.0, %v2733
      %v2735 = vpop.f32.mrb[0].mxu0
      %v2736 = vpop.f32.mrb[0].mxu0
      %v2737 = vadd.f32 0.0, %v2736
      %v2738 = vpop.f32.mrb[0].mxu0
      %2739 = vmatprep.mubr.bf16.mxu0 0
      %2740 = vmatmul.mubr.bf16.gmra.mrb[0].mxu0 %v2678
      %v2741 = vpop.f32.mrb[0].mxu0
      %v2742 = vadd.f32 0.0, %v2741
      %v2743 = vpop.f32.mrb[0].mxu0
      %v2744 = vpop.f32.mrb[0].mxu0
      %v2745 = vadd.f32 0.0, %v2744
      %v2746 = vpop.f32.mrb[0].mxu0
      %2747 = vdwg.mxu0
      %v2748 = vadd.f32 %v2631, %v2718
      %v2749 = vadd.f32 %v2632, %v2721
      %v2750 = vadd.f32 %v2633, %v2726
      %v2751 = vadd.f32 %v2634, %v2729
      %v2752 = vadd.f32 %v2635, %v2734
      %v2753 = vadd.f32 %v2636, %v2737
      %v2754 = vadd.f32 %v2637, %v2742
      %v2755 = vadd.f32 %v2638, %v2745
      %v2756 = vld [vmem:[%s539] sm:$0x8]
      %v2757 = vsel %vm1523, %v2756, 0
      %v2758 = vsel %vm1524, %v2211, 0
      %v2759 = vsel %vm1525, %v2212, 0
      %v2760 = vsel %vm1526, %v2213, 0
      %v2761 = vsel %vm1527, %v2214, 0
      %v2762 = vsel %vm1528, %v2215, 0
      %v2763 = vsel %vm1529, %v2216, 0
      %v2764 = vsel %vm1530, %v2217, 0
      %v2765 = vsel %vm1531, %v2218, 0
      %v2766 = vld [vmem:[%s1541] sm:$0x3]
      %v2776 = vunpack.c.l.b16 %v2757
      %v2777 = vunpack.c.l.b16 %v2758
      %v2778 = vunpack.c.l.b16 %v2759
      %v2779 = vunpack.c.l.b16 %v2760
      %v2780 = vunpack.c.l.b16 %v2761
      %v2781 = vunpack.c.l.b16 %v2762
      %v2782 = vunpack.c.l.b16 %v2763
      %v2783 = vunpack.c.l.b16 %v2764
      %v2784 = vunpack.c.l.b16 %v2765
      %v2785 = vpack.c.b16 %v2777, %v2776
      %v2786 = vpack.c.b16 %v2779, %v2778
      %v2787 = vpack.c.b16 %v2781, %v2780
      %v2788 = vpack.c.b16 %v2783, %v2782
      %v2789 = vpack.c.b16 %v2784, %v2784
      %v2791 = vshrl.u32 %v2785, 16
      %v2793 = vrot.slane %v2791, 3
      %v2794 = vshll.u32 %v2785, 16
      %v2796 = vrot.slane %v2794, 4
      %v2797 = vor.u32 %v2793, %v2796
      %v2799 = vshrl.u32 %v2786, 16
      %v2801 = vrot.slane %v2799, 3
      %v2802 = vshll.u32 %v2786, 16
      %v2804 = vrot.slane %v2802, 4
      %v2805 = vor.u32 %v2801, %v2804
      %v2806 = vsel %vm1566, %v2797, %v2805
      %v2808 = vshrl.u32 %v2787, 16
      %v2810 = vrot.slane %v2808, 3
      %v2811 = vshll.u32 %v2787, 16
      %v2813 = vrot.slane %v2811, 4
      %v2814 = vor.u32 %v2810, %v2813
      %v2815 = vsel %vm1566, %v2805, %v2814
      %v2817 = vshrl.u32 %v2788, 16
      %v2819 = vrot.slane %v2817, 3
      %v2820 = vshll.u32 %v2788, 16
      %v2822 = vrot.slane %v2820, 4
      %v2823 = vor.u32 %v2819, %v2822
      %v2824 = vsel %vm1566, %v2814, %v2823
      %v2826 = vshrl.u32 %v2789, 16
      %v2828 = vrot.slane %v2826, 3
      %v2829 = vshll.u32 %v2789, 16
      %v2831 = vrot.slane %v2829, 4
      %v2832 = vor.u32 %v2828, %v2831
      %v2833 = vsel %vm1566, %v2823, %v2832
      %v2835 = vsel %vm736, %v2806, 0
      %v2838 = vsel %vm736, %v2815, 0
      %v2841 = vsel %vm736, %v2824, 0
      %v2844 = vsel %vm736, %v2833, 0
      %v2847 = vsel %vm749, %v2766, 0
      %2849 = vmatprep.subr.bf16.mxu0 0
      %2850 = vmatpush1.bf16.msra.mxu0 %v2847
      %2851 = vmatprep.subr.bf16.mxu0 0
      %2852 = vmatpush1.bf16.msra.mxu0 0
      %2853 = vmatprep.subr.bf16.mxu0 0
      %2854 = vmatpush1.bf16.msra.mxu0 0
      %2855 = vmatprep.subr.bf16.mxu0 0
      %2856 = vmatpush1.bf16.msra.mxu0 0
      %2857 = vmatprep.subr.bf16.mxu0 0
      %2858 = vmatpush1.bf16.msra.mxu0 0
      %2859 = vmatprep.subr.bf16.mxu0 0
      %2860 = vmatpush1.bf16.msra.mxu0 0
      %2861 = vmatprep.subr.bf16.mxu0 0
      %2862 = vmatpush1.bf16.msra.mxu0 0
      %2863 = vmatprep.subr.bf16.mxu0 0
      %2864 = vmatpush1.bf16.msra.mxu0 0
      %2865 = vmatprep.subr.bf16.mxu0 0
      %2866 = vmatpush1.bf16.msra.mxu0 0
      %2867 = vmatprep.subr.bf16.mxu0 0
      %2868 = vmatpush1.bf16.msra.mxu0 0
      %2869 = vmatprep.subr.bf16.mxu0 0
      %2870 = vmatpush1.bf16.msra.mxu0 0
      %2871 = vmatprep.subr.bf16.mxu0 0
      %2872 = vmatpush1.bf16.msra.mxu0 0
      %2873 = vmatprep.subr.bf16.mxu0 0
      %2874 = vmatpush1.bf16.msra.mxu0 0
      %2875 = vmatprep.subr.bf16.mxu0 0
      %2876 = vmatpush1.bf16.msra.mxu0 0
      %2877 = vmatprep.subr.bf16.mxu0 0
      %2878 = vmatpush1.bf16.msra.mxu0 0
      %2879 = vmatprep.subr.bf16.mxu0 0
      %2880 = vmatpush1.bf16.msra.mxu0 0
      %2881 = vmatprep.mubr.bf16.mxu0 0
      %2882 = vmatmul.mubr.bf16.gmra.mrb[0].mxu0 %v2835
      %v2883 = vpop.f32.mrb[0].mxu0
      %v2884 = vadd.f32 0.0, %v2883
      %v2885 = vpop.f32.mrb[0].mxu0
      %v2886 = vpop.f32.mrb[0].mxu0
      %v2887 = vadd.f32 0.0, %v2886
      %v2888 = vpop.f32.mrb[0].mxu0
      %2889 = vmatprep.mubr.bf16.mxu0 0
      %2890 = vmatmul.mubr.bf16.gmra.mrb[0].mxu0 %v2838
      %v2891 = vpop.f32.mrb[0].mxu0
      %v2892 = vadd.f32 0.0, %v2891
      %v2893 = vpop.f32.mrb[0].mxu0
      %v2894 = vpop.f32.mrb[0].mxu0
      %v2895 = vadd.f32 0.0, %v2894
      %v2896 = vpop.f32.mrb[0].mxu0
      %2897 = vmatprep.mubr.bf16.mxu0 0
      %2898 = vmatmul.mubr.bf16.gmra.mrb[0].mxu0 %v2841
      %v2899 = vpop.f32.mrb[0].mxu0
      %v2900 = vadd.f32 0.0, %v2899
      %v2901 = vpop.f32.mrb[0].mxu0
      %v2902 = vpop.f32.mrb[0].mxu0
      %v2903 = vadd.f32 0.0, %v2902
      %v2904 = vpop.f32.mrb[0].mxu0
      %2905 = vmatprep.mubr.bf16.mxu0 0
      %2906 = vmatmul.mubr.bf16.gmra.mrb[0].mxu0 %v2844
      %v2907 = vpop.f32.mrb[0].mxu0
      %v2908 = vadd.f32 0.0, %v2907
      %v2909 = vpop.f32.mrb[0].mxu0
      %v2910 = vpop.f32.mrb[0].mxu0
      %v2911 = vadd.f32 0.0, %v2910
      %v2912 = vpop.f32.mrb[0].mxu0
      %2913 = vdwg.mxu0
      %v2914 = vadd.f32 %v2748, %v2884
      %v2915 = vadd.f32 %v2749, %v2887
      %v2916 = vadd.f32 %v2750, %v2892
      %v2917 = vadd.f32 %v2751, %v2895
      %v2918 = vadd.f32 %v2752, %v2900
      %v2919 = vadd.f32 %v2753, %v2903
      %v2920 = vadd.f32 %v2754, %v2908
      %v2921 = vadd.f32 %v2755, %v2911
      %v2922 = vld [vmem:[%s1699] sm:$0x3]
      %v2924 = vsel %vm749, %v2922, 0
      %2926 = vmatprep.subr.bf16.mxu0 0
      %2927 = vmatpush1.bf16.msra.mxu0 %v2924
      %2928 = vmatprep.subr.bf16.mxu0 0
      %2929 = vmatpush1.bf16.msra.mxu0 0
      %2930 = vmatprep.subr.bf16.mxu0 0
      %2931 = vmatpush1.bf16.msra.mxu0 0
      %2932 = vmatprep.subr.bf16.mxu0 0
      %2933 = vmatpush1.bf16.msra.mxu0 0
      %2934 = vmatprep.subr.bf16.mxu0 0
      %2935 = vmatpush1.bf16.msra.mxu0 0
      %2936 = vmatprep.subr.bf16.mxu0 0
      %2937 = vmatpush1.bf16.msra.mxu0 0
      %2938 = vmatprep.subr.bf16.mxu0 0
      %2939 = vmatpush1.bf16.msra.mxu0 0
      %2940 = vmatprep.subr.bf16.mxu0 0
      %2941 = vmatpush1.bf16.msra.mxu0 0
      %2942 = vmatprep.subr.bf16.mxu0 0
      %2943 = vmatpush1.bf16.msra.mxu0 0
      %2944 = vmatprep.subr.bf16.mxu0 0
      %2945 = vmatpush1.bf16.msra.mxu0 0
      %2946 = vmatprep.subr.bf16.mxu0 0
      %2947 = vmatpush1.bf16.msra.mxu0 0
      %2948 = vmatprep.subr.bf16.mxu0 0
      %2949 = vmatpush1.bf16.msra.mxu0 0
      %2950 = vmatprep.subr.bf16.mxu0 0
      %2951 = vmatpush1.bf16.msra.mxu0 0
      %2952 = vmatprep.subr.bf16.mxu0 0
      %2953 = vmatpush1.bf16.msra.mxu0 0
      %2954 = vmatprep.subr.bf16.mxu0 0
      %2955 = vmatpush1.bf16.msra.mxu0 0
      %2956 = vmatprep.subr.bf16.mxu0 0
      %2957 = vmatpush1.bf16.msra.mxu0 0
      %2958 = vmatprep.mubr.bf16.mxu0 0
      %2959 = vmatmul.mubr.bf16.gmra.mrb[0].mxu0 %v2241
      %v2960 = vpop.f32.mrb[0].mxu0
      %v2961 = vadd.f32 0.0, %v2960
      %v2962 = vpop.f32.mrb[0].mxu0
      %v2963 = vpop.f32.mrb[0].mxu0
      %v2964 = vadd.f32 0.0, %v2963
      %v2965 = vpop.f32.mrb[0].mxu0
      %2966 = vmatprep.mubr.bf16.mxu0 0
      %2967 = vmatmul.mubr.bf16.gmra.mrb[0].mxu0 %v2244
      %v2968 = vpop.f32.mrb[0].mxu0
      %v2969 = vadd.f32 0.0, %v2968
      %v2970 = vpop.f32.mrb[0].mxu0
      %v2971 = vpop.f32.mrb[0].mxu0
      %v2972 = vadd.f32 0.0, %v2971
      %v2973 = vpop.f32.mrb[0].mxu0
      %2974 = vmatprep.mubr.bf16.mxu0 0
      %2975 = vmatmul.mubr.bf16.gmra.mrb[0].mxu0 %v2247
      %v2976 = vpop.f32.mrb[0].mxu0
      %v2977 = vadd.f32 0.0, %v2976
      %v2978 = vpop.f32.mrb[0].mxu0
      %v2979 = vpop.f32.mrb[0].mxu0
      %v2980 = vadd.f32 0.0, %v2979
      %v2981 = vpop.f32.mrb[0].mxu0
      %2982 = vmatprep.mubr.bf16.mxu0 0
      %2983 = vmatmul.mubr.bf16.gmra.mrb[0].mxu0 %v2250
      %v2984 = vpop.f32.mrb[0].mxu0
      %v2985 = vadd.f32 0.0, %v2984
      %v2986 = vpop.f32.mrb[0].mxu0
      %v2987 = vpop.f32.mrb[0].mxu0
      %v2988 = vadd.f32 0.0, %v2987
      %v2989 = vpop.f32.mrb[0].mxu0
      %2990 = vdwg.mxu0
      %v2991 = vadd.f32 %v2914, %v2961
      %v2992 = vadd.f32 %v2915, %v2964
      %v2993 = vadd.f32 %v2916, %v2969
      %v2994 = vadd.f32 %v2917, %v2972
      %v2995 = vadd.f32 %v2918, %v2977
      %v2996 = vadd.f32 %v2919, %v2980
      %v2997 = vadd.f32 %v2920, %v2985
      %v2998 = vadd.f32 %v2921, %v2988
      %v2999 = vld [vmem:[%s539 + $0x4] sm:$0xf]
      %v3000 = vld [vmem:[%s539 + $0x24] sm:$0x1]
      %v3001 = vsel %vm1917, %v2999, 0
      %v3002 = vsel %vm1918, %v2639, 0
      %v3003 = vsel %vm1919, %v2640, 0
      %v3004 = vsel %vm1920, %v2641, 0
      %v3005 = vsel %vm1921, %v2642, 0
      %v3006 = vsel %vm1922, %v2643, 0
      %v3007 = vsel %vm1923, %v2644, 0
      %v3008 = vsel %vm1924, %v2645, 0
      %v3009 = vsel %vm1925, %v3000, 0
      %v3010 = vld [vmem:[%s1935] sm:$0x3]
      %v3020 = vunpack.c.l.b16 %v3001
      %v3021 = vunpack.c.l.b16 %v3002
      %v3022 = vunpack.c.l.b16 %v3003
      %v3023 = vunpack.c.l.b16 %v3004
      %v3024 = vunpack.c.l.b16 %v3005
      %v3025 = vunpack.c.l.b16 %v3006
      %v3026 = vunpack.c.l.b16 %v3007
      %v3027 = vunpack.c.l.b16 %v3008
      %v3028 = vunpack.c.l.b16 %v3009
      %v3029 = vpack.c.b16 %v3021, %v3020
      %v3030 = vpack.c.b16 %v3023, %v3022
      %v3031 = vpack.c.b16 %v3025, %v3024
      %v3032 = vpack.c.b16 %v3027, %v3026
      %v3033 = vpack.c.b16 %v3028, %v3028
      %v3035 = vshrl.u32 %v3029, 16
      %v3037 = vshll.u32 %v3029, 16
      %v3039 = vrot.slane %v3037, 1
      %v3040 = vor.u32 %v3035, %v3039
      %v3042 = vshll.u32 %v3030, 16
      %v3044 = vrot.slane %v3042, 1
      %v3045 = vsel %vm1960, %v3040, %v3044
      %v3046 = vshrl.u32 %v3030, 16
      %v3048 = vor.u32 %v3046, %v3044
      %v3050 = vshll.u32 %v3031, 16
      %v3052 = vrot.slane %v3050, 1
      %v3053 = vsel %vm1960, %v3048, %v3052
      %v3054 = vshrl.u32 %v3031, 16
      %v3056 = vor.u32 %v3054, %v3052
      %v3058 = vshll.u32 %v3032, 16
      %v3060 = vrot.slane %v3058, 1
      %v3061 = vsel %vm1960, %v3056, %v3060
      %v3062 = vshrl.u32 %v3032, 16
      %v3064 = vor.u32 %v3062, %v3060
      %v3066 = vshll.u32 %v3033, 16
      %v3068 = vrot.slane %v3066, 1
      %v3069 = vsel %vm1960, %v3064, %v3068
      %v3071 = vsel %vm736, %v3045, 0
      %v3074 = vsel %vm736, %v3053, 0
      %v3077 = vsel %vm736, %v3061, 0
      %v3080 = vsel %vm736, %v3069, 0
      %v3083 = vsel %vm749, %v3010, 0
      %3085 = vmatprep.subr.bf16.mxu0 0
      %3086 = vmatpush1.bf16.msra.mxu0 %v3083
      %3087 = vmatprep.subr.bf16.mxu0 0
      %3088 = vmatpush1.bf16.msra.mxu0 0
      %3089 = vmatprep.subr.bf16.mxu0 0
      %3090 = vmatpush1.bf16.msra.mxu0 0
      %3091 = vmatprep.subr.bf16.mxu0 0
      %3092 = vmatpush1.bf16.msra.mxu0 0
      %3093 = vmatprep.subr.bf16.mxu0 0
      %3094 = vmatpush1.bf16.msra.mxu0 0
      %3095 = vmatprep.subr.bf16.mxu0 0
      %3096 = vmatpush1.bf16.msra.mxu0 0
      %3097 = vmatprep.subr.bf16.mxu0 0
      %3098 = vmatpush1.bf16.msra.mxu0 0
      %3099 = vmatprep.subr.bf16.mxu0 0
      %3100 = vmatpush1.bf16.msra.mxu0 0
      %3101 = vmatprep.subr.bf16.mxu0 0
      %3102 = vmatpush1.bf16.msra.mxu0 0
      %3103 = vmatprep.subr.bf16.mxu0 0
      %3104 = vmatpush1.bf16.msra.mxu0 0
      %3105 = vmatprep.subr.bf16.mxu0 0
      %3106 = vmatpush1.bf16.msra.mxu0 0
      %3107 = vmatprep.subr.bf16.mxu0 0
      %3108 = vmatpush1.bf16.msra.mxu0 0
      %3109 = vmatprep.subr.bf16.mxu0 0
      %3110 = vmatpush1.bf16.msra.mxu0 0
      %3111 = vmatprep.subr.bf16.mxu0 0
      %3112 = vmatpush1.bf16.msra.mxu0 0
      %3113 = vmatprep.subr.bf16.mxu0 0
      %3114 = vmatpush1.bf16.msra.mxu0 0
      %3115 = vmatprep.subr.bf16.mxu0 0
      %3116 = vmatpush1.bf16.msra.mxu0 0
      %3117 = vmatprep.mubr.bf16.mxu0 0
      %3118 = vmatmul.mubr.bf16.gmra.mrb[0].mxu0 %v3071
      %v3119 = vpop.f32.mrb[0].mxu0
      %v3120 = vadd.f32 0.0, %v3119
      %v3121 = vpop.f32.mrb[0].mxu0
      %v3122 = vpop.f32.mrb[0].mxu0
      %v3123 = vadd.f32 0.0, %v3122
      %v3124 = vpop.f32.mrb[0].mxu0
      %3125 = vmatprep.mubr.bf16.mxu0 0
      %3126 = vmatmul.mubr.bf16.gmra.mrb[0].mxu0 %v3074
      %v3127 = vpop.f32.mrb[0].mxu0
      %v3128 = vadd.f32 0.0, %v3127
      %v3129 = vpop.f32.mrb[0].mxu0
      %v3130 = vpop.f32.mrb[0].mxu0
      %v3131 = vadd.f32 0.0, %v3130
      %v3132 = vpop.f32.mrb[0].mxu0
      %3133 = vmatprep.mubr.bf16.mxu0 0
      %3134 = vmatmul.mubr.bf16.gmra.mrb[0].mxu0 %v3077
      %v3135 = vpop.f32.mrb[0].mxu0
      %v3136 = vadd.f32 0.0, %v3135
      %v3137 = vpop.f32.mrb[0].mxu0
      %v3138 = vpop.f32.mrb[0].mxu0
      %v3139 = vadd.f32 0.0, %v3138
      %v3140 = vpop.f32.mrb[0].mxu0
      %3141 = vmatprep.mubr.bf16.mxu0 0
      %3142 = vmatmul.mubr.bf16.gmra.mrb[0].mxu0 %v3080
      %v3143 = vpop.f32.mrb[0].mxu0
      %v3144 = vadd.f32 0.0, %v3143
      %v3145 = vpop.f32.mrb[0].mxu0
      %v3146 = vpop.f32.mrb[0].mxu0
      %v3147 = vadd.f32 0.0, %v3146
      %v3148 = vpop.f32.mrb[0].mxu0
      %3149 = vdwg.mxu0
      %v3150 = vadd.f32 %v2991, %v3120
      %v3151 = vadd.f32 %v2992, %v3123
      %v3152 = vadd.f32 %v2993, %v3128
      %v3153 = vadd.f32 %v2994, %v3131
      %v3154 = vadd.f32 %v2995, %v3136
      %v3155 = vadd.f32 %v2996, %v3139
      %v3156 = vadd.f32 %v2997, %v3144
      %v3157 = vadd.f32 %v2998, %v3147
      %s3158 = scalar_lea.vmem %s590, 64
      %3159 = vst.msk [vmem:[%s3158] sm:$0xff] %vm2085, %v3150
      %3160 = vst.msk [vmem:[%s3158 + $0x8] sm:$0xff] %vm2085, %v3151
      %3161 = vst.msk [vmem:[%s3158 + $0x10] sm:$0xff] %vm2085, %v3152
      %3162 = vst.msk [vmem:[%s3158 + $0x18] sm:$0xff] %vm2085, %v3153
      %3163 = vst.msk [vmem:[%s3158 + $0x20] sm:$0xff] %vm2085, %v3154
      %3164 = vst.msk [vmem:[%s3158 + $0x28] sm:$0xff] %vm2085, %v3155
      %3165 = vst.msk [vmem:[%s3158 + $0x30] sm:$0xff] %vm2085, %v3156
      %3166 = vst.msk [vmem:[%s3158 + $0x38] sm:$0xff] %vm2085, %v3157
      %v3167 = vld [vmem:[%s539 + $0x4] sm:$0xf]
      %v3168 = vld [vmem:[%s539 + $0x8] sm:$0xf]
      %v3169 = vld [vmem:[%s539 + $0xc] sm:$0xf]
      %v3170 = vld [vmem:[%s539 + $0x10] sm:$0xf]
      %v3171 = vld [vmem:[%s539 + $0x14] sm:$0xf]
      %v3172 = vld [vmem:[%s539 + $0x18] sm:$0xf]
      %v3173 = vld [vmem:[%s539 + $0x1c] sm:$0xf]
      %v3174 = vld [vmem:[%s539 + $0x20] sm:$0xf]
      %v3175 = vld [vmem:[%s6] sm:$0x3]
      %v3184 = vunpack.c.l.b16 %v3167
      %v3185 = vunpack.c.l.b16 %v3168
      %v3186 = vunpack.c.l.b16 %v3169
      %v3187 = vunpack.c.l.b16 %v3170
      %v3188 = vunpack.c.l.b16 %v3171
      %v3189 = vunpack.c.l.b16 %v3172
      %v3190 = vunpack.c.l.b16 %v3173
      %v3191 = vunpack.c.l.b16 %v3174
      %v3192 = vpack.c.b16 %v3185, %v3184
      %v3193 = vpack.c.b16 %v3187, %v3186
      %v3194 = vpack.c.b16 %v3189, %v3188
      %v3195 = vpack.c.b16 %v3191, %v3190
      %v3197 = vsel %vm736, %v3192, 0
      %v3200 = vsel %vm736, %v3193, 0
      %v3203 = vsel %vm736, %v3194, 0
      %v3206 = vsel %vm736, %v3195, 0
      %v3209 = vsel %vm749, %v3175, 0
      %3211 = vmatprep.subr.bf16.mxu0 0
      %3212 = vmatpush1.bf16.msra.mxu0 %v3209
      %3213 = vmatprep.subr.bf16.mxu0 0
      %3214 = vmatpush1.bf16.msra.mxu0 0
      %3215 = vmatprep.subr.bf16.mxu0 0
      %3216 = vmatpush1.bf16.msra.mxu0 0
      %3217 = vmatprep.subr.bf16.mxu0 0
      %3218 = vmatpush1.bf16.msra.mxu0 0
      %3219 = vmatprep.subr.bf16.mxu0 0
      %3220 = vmatpush1.bf16.msra.mxu0 0
      %3221 = vmatprep.subr.bf16.mxu0 0
      %3222 = vmatpush1.bf16.msra.mxu0 0
      %3223 = vmatprep.subr.bf16.mxu0 0
      %3224 = vmatpush1.bf16.msra.mxu0 0
      %3225 = vmatprep.subr.bf16.mxu0 0
      %3226 = vmatpush1.bf16.msra.mxu0 0
      %3227 = vmatprep.subr.bf16.mxu0 0
      %3228 = vmatpush1.bf16.msra.mxu0 0
      %3229 = vmatprep.subr.bf16.mxu0 0
      %3230 = vmatpush1.bf16.msra.mxu0 0
      %3231 = vmatprep.subr.bf16.mxu0 0
      %3232 = vmatpush1.bf16.msra.mxu0 0
      %3233 = vmatprep.subr.bf16.mxu0 0
      %3234 = vmatpush1.bf16.msra.mxu0 0
      %3235 = vmatprep.subr.bf16.mxu0 0
      %3236 = vmatpush1.bf16.msra.mxu0 0
      %3237 = vmatprep.subr.bf16.mxu0 0
      %3238 = vmatpush1.bf16.msra.mxu0 0
      %3239 = vmatprep.subr.bf16.mxu0 0
      %3240 = vmatpush1.bf16.msra.mxu0 0
      %3241 = vmatprep.subr.bf16.mxu0 0
      %3242 = vmatpush1.bf16.msra.mxu0 0
      %3243 = vmatprep.mubr.bf16.mxu0 0
      %3244 = vmatmul.mubr.bf16.gmra.mrb[0].mxu0 %v3197
      %v3245 = vpop.f32.mrb[0].mxu0
      %v3246 = vadd.f32 0.0, %v3245
      %v3247 = vpop.f32.mrb[0].mxu0
      %v3248 = vpop.f32.mrb[0].mxu0
      %v3249 = vadd.f32 0.0, %v3248
      %v3250 = vpop.f32.mrb[0].mxu0
      %3251 = vmatprep.mubr.bf16.mxu0 0
      %3252 = vmatmul.mubr.bf16.gmra.mrb[0].mxu0 %v3200
      %v3253 = vpop.f32.mrb[0].mxu0
      %v3254 = vadd.f32 0.0, %v3253
      %v3255 = vpop.f32.mrb[0].mxu0
      %v3256 = vpop.f32.mrb[0].mxu0
      %v3257 = vadd.f32 0.0, %v3256
      %v3258 = vpop.f32.mrb[0].mxu0
      %3259 = vmatprep.mubr.bf16.mxu0 0
      %3260 = vmatmul.mubr.bf16.gmra.mrb[0].mxu0 %v3203
      %v3261 = vpop.f32.mrb[0].mxu0
      %v3262 = vadd.f32 0.0, %v3261
      %v3263 = vpop.f32.mrb[0].mxu0
      %v3264 = vpop.f32.mrb[0].mxu0
      %v3265 = vadd.f32 0.0, %v3264
      %v3266 = vpop.f32.mrb[0].mxu0
      %3267 = vmatprep.mubr.bf16.mxu0 0
      %3268 = vmatmul.mubr.bf16.gmra.mrb[0].mxu0 %v3206
      %v3269 = vpop.f32.mrb[0].mxu0
      %v3270 = vadd.f32 0.0, %v3269
      %v3271 = vpop.f32.mrb[0].mxu0
      %v3272 = vpop.f32.mrb[0].mxu0
      %v3273 = vadd.f32 0.0, %v3272
      %v3274 = vpop.f32.mrb[0].mxu0
      %3275 = vdwg.mxu0
      %v3276 = vadd.f32 %v705, %v3246
      %v3277 = vadd.f32 %v705, %v3249
      %v3278 = vadd.f32 %v705, %v3254
      %v3279 = vadd.f32 %v705, %v3257
      %v3280 = vadd.f32 %v705, %v3262
      %v3281 = vadd.f32 %v705, %v3265
      %v3282 = vadd.f32 %v705, %v3270
      %v3283 = vadd.f32 %v705, %v3273
      %v3284 = vld [vmem:[%s552 + $0x4] sm:$0xf]
      %v3285 = vld [vmem:[%s552 + $0x8] sm:$0xf]
      %v3286 = vld [vmem:[%s552 + $0xc] sm:$0xf]
      %v3287 = vld [vmem:[%s552 + $0x10] sm:$0xf]
      %v3288 = vld [vmem:[%s552 + $0x14] sm:$0xf]
      %v3289 = vld [vmem:[%s552 + $0x18] sm:$0xf]
      %v3290 = vld [vmem:[%s552 + $0x1c] sm:$0xf]
      %v3291 = vld [vmem:[%s552 + $0x20] sm:$0xf]
      %v3292 = vld [vmem:[%s834] sm:$0x3]
      %v3301 = vunpack.c.l.b16 %v3284
      %v3302 = vunpack.c.l.b16 %v3285
      %v3303 = vunpack.c.l.b16 %v3286
      %v3304 = vunpack.c.l.b16 %v3287
      %v3305 = vunpack.c.l.b16 %v3288
      %v3306 = vunpack.c.l.b16 %v3289
      %v3307 = vunpack.c.l.b16 %v3290
      %v3308 = vunpack.c.l.b16 %v3291
      %v3309 = vpack.c.b16 %v3302, %v3301
      %v3310 = vpack.c.b16 %v3304, %v3303
      %v3311 = vpack.c.b16 %v3306, %v3305
      %v3312 = vpack.c.b16 %v3308, %v3307
      %v3314 = vsel %vm736, %v3309, 0
      %v3317 = vsel %vm736, %v3310, 0
      %v3320 = vsel %vm736, %v3311, 0
      %v3323 = vsel %vm736, %v3312, 0
      %v3326 = vsel %vm749, %v3292, 0
      %3328 = vmatprep.subr.bf16.mxu0 0
      %3329 = vmatpush1.bf16.msra.mxu0 %v3326
      %3330 = vmatprep.subr.bf16.mxu0 0
      %3331 = vmatpush1.bf16.msra.mxu0 0
      %3332 = vmatprep.subr.bf16.mxu0 0
      %3333 = vmatpush1.bf16.msra.mxu0 0
      %3334 = vmatprep.subr.bf16.mxu0 0
      %3335 = vmatpush1.bf16.msra.mxu0 0
      %3336 = vmatprep.subr.bf16.mxu0 0
      %3337 = vmatpush1.bf16.msra.mxu0 0
      %3338 = vmatprep.subr.bf16.mxu0 0
      %3339 = vmatpush1.bf16.msra.mxu0 0
      %3340 = vmatprep.subr.bf16.mxu0 0
      %3341 = vmatpush1.bf16.msra.mxu0 0
      %3342 = vmatprep.subr.bf16.mxu0 0
      %3343 = vmatpush1.bf16.msra.mxu0 0
      %3344 = vmatprep.subr.bf16.mxu0 0
      %3345 = vmatpush1.bf16.msra.mxu0 0
      %3346 = vmatprep.subr.bf16.mxu0 0
      %3347 = vmatpush1.bf16.msra.mxu0 0
      %3348 = vmatprep.subr.bf16.mxu0 0
      %3349 = vmatpush1.bf16.msra.mxu0 0
      %3350 = vmatprep.subr.bf16.mxu0 0
      %3351 = vmatpush1.bf16.msra.mxu0 0
      %3352 = vmatprep.subr.bf16.mxu0 0
      %3353 = vmatpush1.bf16.msra.mxu0 0
      %3354 = vmatprep.subr.bf16.mxu0 0
      %3355 = vmatpush1.bf16.msra.mxu0 0
      %3356 = vmatprep.subr.bf16.mxu0 0
      %3357 = vmatpush1.bf16.msra.mxu0 0
      %3358 = vmatprep.subr.bf16.mxu0 0
      %3359 = vmatpush1.bf16.msra.mxu0 0
      %3360 = vmatprep.mubr.bf16.mxu0 0
      %3361 = vmatmul.mubr.bf16.gmra.mrb[0].mxu0 %v3314
      %v3362 = vpop.f32.mrb[0].mxu0
      %v3363 = vadd.f32 0.0, %v3362
      %v3364 = vpop.f32.mrb[0].mxu0
      %v3365 = vpop.f32.mrb[0].mxu0
      %v3366 = vadd.f32 0.0, %v3365
      %v3367 = vpop.f32.mrb[0].mxu0
      %3368 = vmatprep.mubr.bf16.mxu0 0
      %3369 = vmatmul.mubr.bf16.gmra.mrb[0].mxu0 %v3317
      %v3370 = vpop.f32.mrb[0].mxu0
      %v3371 = vadd.f32 0.0, %v3370
      %v3372 = vpop.f32.mrb[0].mxu0
      %v3373 = vpop.f32.mrb[0].mxu0
      %v3374 = vadd.f32 0.0, %v3373
      %v3375 = vpop.f32.mrb[0].mxu0
      %3376 = vmatprep.mubr.bf16.mxu0 0
      %3377 = vmatmul.mubr.bf16.gmra.mrb[0].mxu0 %v3320
      %v3378 = vpop.f32.mrb[0].mxu0
      %v3379 = vadd.f32 0.0, %v3378
      %v3380 = vpop.f32.mrb[0].mxu0
      %v3381 = vpop.f32.mrb[0].mxu0
      %v3382 = vadd.f32 0.0, %v3381
      %v3383 = vpop.f32.mrb[0].mxu0
      %3384 = vmatprep.mubr.bf16.mxu0 0
      %3385 = vmatmul.mubr.bf16.gmra.mrb[0].mxu0 %v3323
      %v3386 = vpop.f32.mrb[0].mxu0
      %v3387 = vadd.f32 0.0, %v3386
      %v3388 = vpop.f32.mrb[0].mxu0
      %v3389 = vpop.f32.mrb[0].mxu0
      %v3390 = vadd.f32 0.0, %v3389
      %v3391 = vpop.f32.mrb[0].mxu0
      %3392 = vdwg.mxu0
      %v3393 = vadd.f32 %v3276, %v3363
      %v3394 = vadd.f32 %v3277, %v3366
      %v3395 = vadd.f32 %v3278, %v3371
      %v3396 = vadd.f32 %v3279, %v3374
      %v3397 = vadd.f32 %v3280, %v3379
      %v3398 = vadd.f32 %v3281, %v3382
      %v3399 = vadd.f32 %v3282, %v3387
      %v3400 = vadd.f32 %v3283, %v3390
      %v3401 = vld [vmem:[%s565 + $0x4] sm:$0xf]
      %v3402 = vld [vmem:[%s565 + $0x8] sm:$0xf]
      %v3403 = vld [vmem:[%s565 + $0xc] sm:$0xf]
      %v3404 = vld [vmem:[%s565 + $0x10] sm:$0xf]
      %v3405 = vld [vmem:[%s565 + $0x14] sm:$0xf]
      %v3406 = vld [vmem:[%s565 + $0x18] sm:$0xf]
      %v3407 = vld [vmem:[%s565 + $0x1c] sm:$0xf]
      %v3408 = vld [vmem:[%s565 + $0x20] sm:$0xf]
      %v3409 = vld [vmem:[%s952] sm:$0x3]
      %v3418 = vunpack.c.l.b16 %v3401
      %v3419 = vunpack.c.l.b16 %v3402
      %v3420 = vunpack.c.l.b16 %v3403
      %v3421 = vunpack.c.l.b16 %v3404
      %v3422 = vunpack.c.l.b16 %v3405
      %v3423 = vunpack.c.l.b16 %v3406
      %v3424 = vunpack.c.l.b16 %v3407
      %v3425 = vunpack.c.l.b16 %v3408
      %v3426 = vpack.c.b16 %v3419, %v3418
      %v3427 = vpack.c.b16 %v3421, %v3420
      %v3428 = vpack.c.b16 %v3423, %v3422
      %v3429 = vpack.c.b16 %v3425, %v3424
      %v3431 = vsel %vm736, %v3426, 0
      %v3434 = vsel %vm736, %v3427, 0
      %v3437 = vsel %vm736, %v3428, 0
      %v3440 = vsel %vm736, %v3429, 0
      %v3443 = vsel %vm749, %v3409, 0
      %3445 = vmatprep.subr.bf16.mxu0 0
      %3446 = vmatpush1.bf16.msra.mxu0 %v3443
      %3447 = vmatprep.subr.bf16.mxu0 0
      %3448 = vmatpush1.bf16.msra.mxu0 0
      %3449 = vmatprep.subr.bf16.mxu0 0
      %3450 = vmatpush1.bf16.msra.mxu0 0
      %3451 = vmatprep.subr.bf16.mxu0 0
      %3452 = vmatpush1.bf16.msra.mxu0 0
      %3453 = vmatprep.subr.bf16.mxu0 0
      %3454 = vmatpush1.bf16.msra.mxu0 0
      %3455 = vmatprep.subr.bf16.mxu0 0
      %3456 = vmatpush1.bf16.msra.mxu0 0
      %3457 = vmatprep.subr.bf16.mxu0 0
      %3458 = vmatpush1.bf16.msra.mxu0 0
      %3459 = vmatprep.subr.bf16.mxu0 0
      %3460 = vmatpush1.bf16.msra.mxu0 0
      %3461 = vmatprep.subr.bf16.mxu0 0
      %3462 = vmatpush1.bf16.msra.mxu0 0
      %3463 = vmatprep.subr.bf16.mxu0 0
      %3464 = vmatpush1.bf16.msra.mxu0 0
      %3465 = vmatprep.subr.bf16.mxu0 0
      %3466 = vmatpush1.bf16.msra.mxu0 0
      %3467 = vmatprep.subr.bf16.mxu0 0
      %3468 = vmatpush1.bf16.msra.mxu0 0
      %3469 = vmatprep.subr.bf16.mxu0 0
      %3470 = vmatpush1.bf16.msra.mxu0 0
      %3471 = vmatprep.subr.bf16.mxu0 0
      %3472 = vmatpush1.bf16.msra.mxu0 0
      %3473 = vmatprep.subr.bf16.mxu0 0
      %3474 = vmatpush1.bf16.msra.mxu0 0
      %3475 = vmatprep.subr.bf16.mxu0 0
      %3476 = vmatpush1.bf16.msra.mxu0 0
      %3477 = vmatprep.mubr.bf16.mxu0 0
      %3478 = vmatmul.mubr.bf16.gmra.mrb[0].mxu0 %v3431
      %v3479 = vpop.f32.mrb[0].mxu0
      %v3480 = vadd.f32 0.0, %v3479
      %v3481 = vpop.f32.mrb[0].mxu0
      %v3482 = vpop.f32.mrb[0].mxu0
      %v3483 = vadd.f32 0.0, %v3482
      %v3484 = vpop.f32.mrb[0].mxu0
      %3485 = vmatprep.mubr.bf16.mxu0 0
      %3486 = vmatmul.mubr.bf16.gmra.mrb[0].mxu0 %v3434
      %v3487 = vpop.f32.mrb[0].mxu0
      %v3488 = vadd.f32 0.0, %v3487
      %v3489 = vpop.f32.mrb[0].mxu0
      %v3490 = vpop.f32.mrb[0].mxu0
      %v3491 = vadd.f32 0.0, %v3490
      %v3492 = vpop.f32.mrb[0].mxu0
      %3493 = vmatprep.mubr.bf16.mxu0 0
      %3494 = vmatmul.mubr.bf16.gmra.mrb[0].mxu0 %v3437
      %v3495 = vpop.f32.mrb[0].mxu0
      %v3496 = vadd.f32 0.0, %v3495
      %v3497 = vpop.f32.mrb[0].mxu0
      %v3498 = vpop.f32.mrb[0].mxu0
      %v3499 = vadd.f32 0.0, %v3498
      %v3500 = vpop.f32.mrb[0].mxu0
      %3501 = vmatprep.mubr.bf16.mxu0 0
      %3502 = vmatmul.mubr.bf16.gmra.mrb[0].mxu0 %v3440
      %v3503 = vpop.f32.mrb[0].mxu0
      %v3504 = vadd.f32 0.0, %v3503
      %v3505 = vpop.f32.mrb[0].mxu0
      %v3506 = vpop.f32.mrb[0].mxu0
      %v3507 = vadd.f32 0.0, %v3506
      %v3508 = vpop.f32.mrb[0].mxu0
      %3509 = vdwg.mxu0
      %v3510 = vadd.f32 %v3393, %v3480
      %v3511 = vadd.f32 %v3394, %v3483
      %v3512 = vadd.f32 %v3395, %v3488
      %v3513 = vadd.f32 %v3396, %v3491
      %v3514 = vadd.f32 %v3397, %v3496
      %v3515 = vadd.f32 %v3398, %v3499
      %v3516 = vadd.f32 %v3399, %v3504
      %v3517 = vadd.f32 %v3400, %v3507
      %v3518 = vld [vmem:[%s552] sm:$0xf]
      %v3519 = vld [vmem:[%s552 + $0x4] sm:$0xf]
      %v3520 = vld [vmem:[%s552 + $0x8] sm:$0xf]
      %v3521 = vld [vmem:[%s552 + $0xc] sm:$0xf]
      %v3522 = vld [vmem:[%s552 + $0x10] sm:$0xf]
      %v3523 = vld [vmem:[%s552 + $0x14] sm:$0xf]
      %v3524 = vld [vmem:[%s552 + $0x18] sm:$0xf]
      %v3525 = vld [vmem:[%s552 + $0x1c] sm:$0xf]
      %v3526 = vld [vmem:[%s1070] sm:$0x3]
      %v3535 = vunpack.c.l.b16 %v3518
      %v3536 = vunpack.c.l.b16 %v3519
      %v3537 = vunpack.c.l.b16 %v3520
      %v3538 = vunpack.c.l.b16 %v3521
      %v3539 = vunpack.c.l.b16 %v3522
      %v3540 = vunpack.c.l.b16 %v3523
      %v3541 = vunpack.c.l.b16 %v3524
      %v3542 = vunpack.c.l.b16 %v3525
      %v3543 = vpack.c.b16 %v3536, %v3535
      %v3544 = vpack.c.b16 %v3538, %v3537
      %v3545 = vpack.c.b16 %v3540, %v3539
      %v3546 = vpack.c.b16 %v3542, %v3541
      %v3548 = vsel %vm736, %v3543, 0
      %v3551 = vsel %vm736, %v3544, 0
      %v3554 = vsel %vm736, %v3545, 0
      %v3557 = vsel %vm736, %v3546, 0
      %v3560 = vsel %vm749, %v3526, 0
      %3562 = vmatprep.subr.bf16.mxu0 0
      %3563 = vmatpush1.bf16.msra.mxu0 %v3560
      %3564 = vmatprep.subr.bf16.mxu0 0
      %3565 = vmatpush1.bf16.msra.mxu0 0
      %3566 = vmatprep.subr.bf16.mxu0 0
      %3567 = vmatpush1.bf16.msra.mxu0 0
      %3568 = vmatprep.subr.bf16.mxu0 0
      %3569 = vmatpush1.bf16.msra.mxu0 0
      %3570 = vmatprep.subr.bf16.mxu0 0
      %3571 = vmatpush1.bf16.msra.mxu0 0
      %3572 = vmatprep.subr.bf16.mxu0 0
      %3573 = vmatpush1.bf16.msra.mxu0 0
      %3574 = vmatprep.subr.bf16.mxu0 0
      %3575 = vmatpush1.bf16.msra.mxu0 0
      %3576 = vmatprep.subr.bf16.mxu0 0
      %3577 = vmatpush1.bf16.msra.mxu0 0
      %3578 = vmatprep.subr.bf16.mxu0 0
      %3579 = vmatpush1.bf16.msra.mxu0 0
      %3580 = vmatprep.subr.bf16.mxu0 0
      %3581 = vmatpush1.bf16.msra.mxu0 0
      %3582 = vmatprep.subr.bf16.mxu0 0
      %3583 = vmatpush1.bf16.msra.mxu0 0
      %3584 = vmatprep.subr.bf16.mxu0 0
      %3585 = vmatpush1.bf16.msra.mxu0 0
      %3586 = vmatprep.subr.bf16.mxu0 0
      %3587 = vmatpush1.bf16.msra.mxu0 0
      %3588 = vmatprep.subr.bf16.mxu0 0
      %3589 = vmatpush1.bf16.msra.mxu0 0
      %3590 = vmatprep.subr.bf16.mxu0 0
      %3591 = vmatpush1.bf16.msra.mxu0 0
      %3592 = vmatprep.subr.bf16.mxu0 0
      %3593 = vmatpush1.bf16.msra.mxu0 0
      %3594 = vmatprep.mubr.bf16.mxu0 0
      %3595 = vmatmul.mubr.bf16.gmra.mrb[0].mxu0 %v3548
      %v3596 = vpop.f32.mrb[0].mxu0
      %v3597 = vadd.f32 0.0, %v3596
      %v3598 = vpop.f32.mrb[0].mxu0
      %v3599 = vpop.f32.mrb[0].mxu0
      %v3600 = vadd.f32 0.0, %v3599
      %v3601 = vpop.f32.mrb[0].mxu0
      %3602 = vmatprep.mubr.bf16.mxu0 0
      %3603 = vmatmul.mubr.bf16.gmra.mrb[0].mxu0 %v3551
      %v3604 = vpop.f32.mrb[0].mxu0
      %v3605 = vadd.f32 0.0, %v3604
      %v3606 = vpop.f32.mrb[0].mxu0
      %v3607 = vpop.f32.mrb[0].mxu0
      %v3608 = vadd.f32 0.0, %v3607
      %v3609 = vpop.f32.mrb[0].mxu0
      %3610 = vmatprep.mubr.bf16.mxu0 0
      %3611 = vmatmul.mubr.bf16.gmra.mrb[0].mxu0 %v3554
      %v3612 = vpop.f32.mrb[0].mxu0
      %v3613 = vadd.f32 0.0, %v3612
      %v3614 = vpop.f32.mrb[0].mxu0
      %v3615 = vpop.f32.mrb[0].mxu0
      %v3616 = vadd.f32 0.0, %v3615
      %v3617 = vpop.f32.mrb[0].mxu0
      %3618 = vmatprep.mubr.bf16.mxu0 0
      %3619 = vmatmul.mubr.bf16.gmra.mrb[0].mxu0 %v3557
      %v3620 = vpop.f32.mrb[0].mxu0
      %v3621 = vadd.f32 0.0, %v3620
      %v3622 = vpop.f32.mrb[0].mxu0
      %v3623 = vpop.f32.mrb[0].mxu0
      %v3624 = vadd.f32 0.0, %v3623
      %v3625 = vpop.f32.mrb[0].mxu0
      %3626 = vdwg.mxu0
      %v3627 = vadd.f32 %v3510, %v3597
      %v3628 = vadd.f32 %v3511, %v3600
      %v3629 = vadd.f32 %v3512, %v3605
      %v3630 = vadd.f32 %v3513, %v3608
      %v3631 = vadd.f32 %v3514, %v3613
      %v3632 = vadd.f32 %v3515, %v3616
      %v3633 = vadd.f32 %v3516, %v3621
      %v3634 = vadd.f32 %v3517, %v3624
      %v3635 = vld [vmem:[%s1180] sm:$0x3]
      %v3637 = vsel %vm749, %v3635, 0
      %3639 = vmatprep.subr.bf16.mxu0 0
      %3640 = vmatpush1.bf16.msra.mxu0 %v3637
      %3641 = vmatprep.subr.bf16.mxu0 0
      %3642 = vmatpush1.bf16.msra.mxu0 0
      %3643 = vmatprep.subr.bf16.mxu0 0
      %3644 = vmatpush1.bf16.msra.mxu0 0
      %3645 = vmatprep.subr.bf16.mxu0 0
      %3646 = vmatpush1.bf16.msra.mxu0 0
      %3647 = vmatprep.subr.bf16.mxu0 0
      %3648 = vmatpush1.bf16.msra.mxu0 0
      %3649 = vmatprep.subr.bf16.mxu0 0
      %3650 = vmatpush1.bf16.msra.mxu0 0
      %3651 = vmatprep.subr.bf16.mxu0 0
      %3652 = vmatpush1.bf16.msra.mxu0 0
      %3653 = vmatprep.subr.bf16.mxu0 0
      %3654 = vmatpush1.bf16.msra.mxu0 0
      %3655 = vmatprep.subr.bf16.mxu0 0
      %3656 = vmatpush1.bf16.msra.mxu0 0
      %3657 = vmatprep.subr.bf16.mxu0 0
      %3658 = vmatpush1.bf16.msra.mxu0 0
      %3659 = vmatprep.subr.bf16.mxu0 0
      %3660 = vmatpush1.bf16.msra.mxu0 0
      %3661 = vmatprep.subr.bf16.mxu0 0
      %3662 = vmatpush1.bf16.msra.mxu0 0
      %3663 = vmatprep.subr.bf16.mxu0 0
      %3664 = vmatpush1.bf16.msra.mxu0 0
      %3665 = vmatprep.subr.bf16.mxu0 0
      %3666 = vmatpush1.bf16.msra.mxu0 0
      %3667 = vmatprep.subr.bf16.mxu0 0
      %3668 = vmatpush1.bf16.msra.mxu0 0
      %3669 = vmatprep.subr.bf16.mxu0 0
      %3670 = vmatpush1.bf16.msra.mxu0 0
      %3671 = vmatprep.mubr.bf16.mxu0 0
      %3672 = vmatmul.mubr.bf16.gmra.mrb[0].mxu0 %v3314
      %v3673 = vpop.f32.mrb[0].mxu0
      %v3674 = vadd.f32 0.0, %v3673
      %v3675 = vpop.f32.mrb[0].mxu0
      %v3676 = vpop.f32.mrb[0].mxu0
      %v3677 = vadd.f32 0.0, %v3676
      %v3678 = vpop.f32.mrb[0].mxu0
      %3679 = vmatprep.mubr.bf16.mxu0 0
      %3680 = vmatmul.mubr.bf16.gmra.mrb[0].mxu0 %v3317
      %v3681 = vpop.f32.mrb[0].mxu0
      %v3682 = vadd.f32 0.0, %v3681
      %v3683 = vpop.f32.mrb[0].mxu0
      %v3684 = vpop.f32.mrb[0].mxu0
      %v3685 = vadd.f32 0.0, %v3684
      %v3686 = vpop.f32.mrb[0].mxu0
      %3687 = vmatprep.mubr.bf16.mxu0 0
      %3688 = vmatmul.mubr.bf16.gmra.mrb[0].mxu0 %v3320
      %v3689 = vpop.f32.mrb[0].mxu0
      %v3690 = vadd.f32 0.0, %v3689
      %v3691 = vpop.f32.mrb[0].mxu0
      %v3692 = vpop.f32.mrb[0].mxu0
      %v3693 = vadd.f32 0.0, %v3692
      %v3694 = vpop.f32.mrb[0].mxu0
      %3695 = vmatprep.mubr.bf16.mxu0 0
      %3696 = vmatmul.mubr.bf16.gmra.mrb[0].mxu0 %v3323
      %v3697 = vpop.f32.mrb[0].mxu0
      %v3698 = vadd.f32 0.0, %v3697
      %v3699 = vpop.f32.mrb[0].mxu0
      %v3700 = vpop.f32.mrb[0].mxu0
      %v3701 = vadd.f32 0.0, %v3700
      %v3702 = vpop.f32.mrb[0].mxu0
      %3703 = vdwg.mxu0
      %v3704 = vadd.f32 %v3627, %v3674
      %v3705 = vadd.f32 %v3628, %v3677
      %v3706 = vadd.f32 %v3629, %v3682
      %v3707 = vadd.f32 %v3630, %v3685
      %v3708 = vadd.f32 %v3631, %v3690
      %v3709 = vadd.f32 %v3632, %v3693
      %v3710 = vadd.f32 %v3633, %v3698
      %v3711 = vadd.f32 %v3634, %v3701
      %v3712 = vld [vmem:[%s552 + $0x8] sm:$0xf]
      %v3713 = vld [vmem:[%s552 + $0xc] sm:$0xf]
      %v3714 = vld [vmem:[%s552 + $0x10] sm:$0xf]
      %v3715 = vld [vmem:[%s552 + $0x14] sm:$0xf]
      %v3716 = vld [vmem:[%s552 + $0x18] sm:$0xf]
      %v3717 = vld [vmem:[%s552 + $0x1c] sm:$0xf]
      %v3718 = vld [vmem:[%s552 + $0x20] sm:$0xf]
      %v3719 = vld [vmem:[%s552 + $0x24] sm:$0xf]
      %v3720 = vld [vmem:[%s1266] sm:$0x3]
      %v3729 = vunpack.c.l.b16 %v3712
      %v3730 = vunpack.c.l.b16 %v3713
      %v3731 = vunpack.c.l.b16 %v3714
      %v3732 = vunpack.c.l.b16 %v3715
      %v3733 = vunpack.c.l.b16 %v3716
      %v3734 = vunpack.c.l.b16 %v3717
      %v3735 = vunpack.c.l.b16 %v3718
      %v3736 = vunpack.c.l.b16 %v3719
      %v3737 = vpack.c.b16 %v3730, %v3729
      %v3738 = vpack.c.b16 %v3732, %v3731
      %v3739 = vpack.c.b16 %v3734, %v3733
      %v3740 = vpack.c.b16 %v3736, %v3735
      %v3742 = vsel %vm736, %v3737, 0
      %v3745 = vsel %vm736, %v3738, 0
      %v3748 = vsel %vm736, %v3739, 0
      %v3751 = vsel %vm736, %v3740, 0
      %v3754 = vsel %vm749, %v3720, 0
      %3756 = vmatprep.subr.bf16.mxu0 0
      %3757 = vmatpush1.bf16.msra.mxu0 %v3754
      %3758 = vmatprep.subr.bf16.mxu0 0
      %3759 = vmatpush1.bf16.msra.mxu0 0
      %3760 = vmatprep.subr.bf16.mxu0 0
      %3761 = vmatpush1.bf16.msra.mxu0 0
      %3762 = vmatprep.subr.bf16.mxu0 0
      %3763 = vmatpush1.bf16.msra.mxu0 0
      %3764 = vmatprep.subr.bf16.mxu0 0
      %3765 = vmatpush1.bf16.msra.mxu0 0
      %3766 = vmatprep.subr.bf16.mxu0 0
      %3767 = vmatpush1.bf16.msra.mxu0 0
      %3768 = vmatprep.subr.bf16.mxu0 0
      %3769 = vmatpush1.bf16.msra.mxu0 0
      %3770 = vmatprep.subr.bf16.mxu0 0
      %3771 = vmatpush1.bf16.msra.mxu0 0
      %3772 = vmatprep.subr.bf16.mxu0 0
      %3773 = vmatpush1.bf16.msra.mxu0 0
      %3774 = vmatprep.subr.bf16.mxu0 0
      %3775 = vmatpush1.bf16.msra.mxu0 0
      %3776 = vmatprep.subr.bf16.mxu0 0
      %3777 = vmatpush1.bf16.msra.mxu0 0
      %3778 = vmatprep.subr.bf16.mxu0 0
      %3779 = vmatpush1.bf16.msra.mxu0 0
      %3780 = vmatprep.subr.bf16.mxu0 0
      %3781 = vmatpush1.bf16.msra.mxu0 0
      %3782 = vmatprep.subr.bf16.mxu0 0
      %3783 = vmatpush1.bf16.msra.mxu0 0
      %3784 = vmatprep.subr.bf16.mxu0 0
      %3785 = vmatpush1.bf16.msra.mxu0 0
      %3786 = vmatprep.subr.bf16.mxu0 0
      %3787 = vmatpush1.bf16.msra.mxu0 0
      %3788 = vmatprep.mubr.bf16.mxu0 0
      %3789 = vmatmul.mubr.bf16.gmra.mrb[0].mxu0 %v3742
      %v3790 = vpop.f32.mrb[0].mxu0
      %v3791 = vadd.f32 0.0, %v3790
      %v3792 = vpop.f32.mrb[0].mxu0
      %v3793 = vpop.f32.mrb[0].mxu0
      %v3794 = vadd.f32 0.0, %v3793
      %v3795 = vpop.f32.mrb[0].mxu0
      %3796 = vmatprep.mubr.bf16.mxu0 0
      %3797 = vmatmul.mubr.bf16.gmra.mrb[0].mxu0 %v3745
      %v3798 = vpop.f32.mrb[0].mxu0
      %v3799 = vadd.f32 0.0, %v3798
      %v3800 = vpop.f32.mrb[0].mxu0
      %v3801 = vpop.f32.mrb[0].mxu0
      %v3802 = vadd.f32 0.0, %v3801
      %v3803 = vpop.f32.mrb[0].mxu0
      %3804 = vmatprep.mubr.bf16.mxu0 0
      %3805 = vmatmul.mubr.bf16.gmra.mrb[0].mxu0 %v3748
      %v3806 = vpop.f32.mrb[0].mxu0
      %v3807 = vadd.f32 0.0, %v3806
      %v3808 = vpop.f32.mrb[0].mxu0
      %v3809 = vpop.f32.mrb[0].mxu0
      %v3810 = vadd.f32 0.0, %v3809
      %v3811 = vpop.f32.mrb[0].mxu0
      %3812 = vmatprep.mubr.bf16.mxu0 0
      %3813 = vmatmul.mubr.bf16.gmra.mrb[0].mxu0 %v3751
      %v3814 = vpop.f32.mrb[0].mxu0
      %v3815 = vadd.f32 0.0, %v3814
      %v3816 = vpop.f32.mrb[0].mxu0
      %v3817 = vpop.f32.mrb[0].mxu0
      %v3818 = vadd.f32 0.0, %v3817
      %v3819 = vpop.f32.mrb[0].mxu0
      %3820 = vdwg.mxu0
      %v3821 = vadd.f32 %v3704, %v3791
      %v3822 = vadd.f32 %v3705, %v3794
      %v3823 = vadd.f32 %v3706, %v3799
      %v3824 = vadd.f32 %v3707, %v3802
      %v3825 = vadd.f32 %v3708, %v3807
      %v3826 = vadd.f32 %v3709, %v3810
      %v3827 = vadd.f32 %v3710, %v3815
      %v3828 = vadd.f32 %v3711, %v3818
      %v3829 = vld [vmem:[%s552] sm:$0x8]
      %v3830 = vsel %vm1523, %v3829, 0
      %v3831 = vsel %vm1524, %v3284, 0
      %v3832 = vsel %vm1525, %v3285, 0
      %v3833 = vsel %vm1526, %v3286, 0
      %v3834 = vsel %vm1527, %v3287, 0
      %v3835 = vsel %vm1528, %v3288, 0
      %v3836 = vsel %vm1529, %v3289, 0
      %v3837 = vsel %vm1530, %v3290, 0
      %v3838 = vsel %vm1531, %v3291, 0
      %v3839 = vld [vmem:[%s1541] sm:$0x3]
      %v3849 = vunpack.c.l.b16 %v3830
      %v3850 = vunpack.c.l.b16 %v3831
      %v3851 = vunpack.c.l.b16 %v3832
      %v3852 = vunpack.c.l.b16 %v3833
      %v3853 = vunpack.c.l.b16 %v3834
      %v3854 = vunpack.c.l.b16 %v3835
      %v3855 = vunpack.c.l.b16 %v3836
      %v3856 = vunpack.c.l.b16 %v3837
      %v3857 = vunpack.c.l.b16 %v3838
      %v3858 = vpack.c.b16 %v3850, %v3849
      %v3859 = vpack.c.b16 %v3852, %v3851
      %v3860 = vpack.c.b16 %v3854, %v3853
      %v3861 = vpack.c.b16 %v3856, %v3855
      %v3862 = vpack.c.b16 %v3857, %v3857
      %v3864 = vshrl.u32 %v3858, 16
      %v3866 = vrot.slane %v3864, 3
      %v3867 = vshll.u32 %v3858, 16
      %v3869 = vrot.slane %v3867, 4
      %v3870 = vor.u32 %v3866, %v3869
      %v3872 = vshrl.u32 %v3859, 16
      %v3874 = vrot.slane %v3872, 3
      %v3875 = vshll.u32 %v3859, 16
      %v3877 = vrot.slane %v3875, 4
      %v3878 = vor.u32 %v3874, %v3877
      %v3879 = vsel %vm1566, %v3870, %v3878
      %v3881 = vshrl.u32 %v3860, 16
      %v3883 = vrot.slane %v3881, 3
      %v3884 = vshll.u32 %v3860, 16
      %v3886 = vrot.slane %v3884, 4
      %v3887 = vor.u32 %v3883, %v3886
      %v3888 = vsel %vm1566, %v3878, %v3887
      %v3890 = vshrl.u32 %v3861, 16
      %v3892 = vrot.slane %v3890, 3
      %v3893 = vshll.u32 %v3861, 16
      %v3895 = vrot.slane %v3893, 4
      %v3896 = vor.u32 %v3892, %v3895
      %v3897 = vsel %vm1566, %v3887, %v3896
      %v3899 = vshrl.u32 %v3862, 16
      %v3901 = vrot.slane %v3899, 3
      %v3902 = vshll.u32 %v3862, 16
      %v3904 = vrot.slane %v3902, 4
      %v3905 = vor.u32 %v3901, %v3904
      %v3906 = vsel %vm1566, %v3896, %v3905
      %v3908 = vsel %vm736, %v3879, 0
      %v3911 = vsel %vm736, %v3888, 0
      %v3914 = vsel %vm736, %v3897, 0
      %v3917 = vsel %vm736, %v3906, 0
      %v3920 = vsel %vm749, %v3839, 0
      %3922 = vmatprep.subr.bf16.mxu0 0
      %3923 = vmatpush1.bf16.msra.mxu0 %v3920
      %3924 = vmatprep.subr.bf16.mxu0 0
      %3925 = vmatpush1.bf16.msra.mxu0 0
      %3926 = vmatprep.subr.bf16.mxu0 0
      %3927 = vmatpush1.bf16.msra.mxu0 0
      %3928 = vmatprep.subr.bf16.mxu0 0
      %3929 = vmatpush1.bf16.msra.mxu0 0
      %3930 = vmatprep.subr.bf16.mxu0 0
      %3931 = vmatpush1.bf16.msra.mxu0 0
      %3932 = vmatprep.subr.bf16.mxu0 0
      %3933 = vmatpush1.bf16.msra.mxu0 0
      %3934 = vmatprep.subr.bf16.mxu0 0
      %3935 = vmatpush1.bf16.msra.mxu0 0
      %3936 = vmatprep.subr.bf16.mxu0 0
      %3937 = vmatpush1.bf16.msra.mxu0 0
      %3938 = vmatprep.subr.bf16.mxu0 0
      %3939 = vmatpush1.bf16.msra.mxu0 0
      %3940 = vmatprep.subr.bf16.mxu0 0
      %3941 = vmatpush1.bf16.msra.mxu0 0
      %3942 = vmatprep.subr.bf16.mxu0 0
      %3943 = vmatpush1.bf16.msra.mxu0 0
      %3944 = vmatprep.subr.bf16.mxu0 0
      %3945 = vmatpush1.bf16.msra.mxu0 0
      %3946 = vmatprep.subr.bf16.mxu0 0
      %3947 = vmatpush1.bf16.msra.mxu0 0
      %3948 = vmatprep.subr.bf16.mxu0 0
      %3949 = vmatpush1.bf16.msra.mxu0 0
      %3950 = vmatprep.subr.bf16.mxu0 0
      %3951 = vmatpush1.bf16.msra.mxu0 0
      %3952 = vmatprep.subr.bf16.mxu0 0
      %3953 = vmatpush1.bf16.msra.mxu0 0
      %3954 = vmatprep.mubr.bf16.mxu0 0
      %3955 = vmatmul.mubr.bf16.gmra.mrb[0].mxu0 %v3908
      %v3956 = vpop.f32.mrb[0].mxu0
      %v3957 = vadd.f32 0.0, %v3956
      %v3958 = vpop.f32.mrb[0].mxu0
      %v3959 = vpop.f32.mrb[0].mxu0
      %v3960 = vadd.f32 0.0, %v3959
      %v3961 = vpop.f32.mrb[0].mxu0
      %3962 = vmatprep.mubr.bf16.mxu0 0
      %3963 = vmatmul.mubr.bf16.gmra.mrb[0].mxu0 %v3911
      %v3964 = vpop.f32.mrb[0].mxu0
      %v3965 = vadd.f32 0.0, %v3964
      %v3966 = vpop.f32.mrb[0].mxu0
      %v3967 = vpop.f32.mrb[0].mxu0
      %v3968 = vadd.f32 0.0, %v3967
      %v3969 = vpop.f32.mrb[0].mxu0
      %3970 = vmatprep.mubr.bf16.mxu0 0
      %3971 = vmatmul.mubr.bf16.gmra.mrb[0].mxu0 %v3914
      %v3972 = vpop.f32.mrb[0].mxu0
      %v3973 = vadd.f32 0.0, %v3972
      %v3974 = vpop.f32.mrb[0].mxu0
      %v3975 = vpop.f32.mrb[0].mxu0
      %v3976 = vadd.f32 0.0, %v3975
      %v3977 = vpop.f32.mrb[0].mxu0
      %3978 = vmatprep.mubr.bf16.mxu0 0
      %3979 = vmatmul.mubr.bf16.gmra.mrb[0].mxu0 %v3917
      %v3980 = vpop.f32.mrb[0].mxu0
      %v3981 = vadd.f32 0.0, %v3980
      %v3982 = vpop.f32.mrb[0].mxu0
      %v3983 = vpop.f32.mrb[0].mxu0
      %v3984 = vadd.f32 0.0, %v3983
      %v3985 = vpop.f32.mrb[0].mxu0
      %3986 = vdwg.mxu0
      %v3987 = vadd.f32 %v3821, %v3957
      %v3988 = vadd.f32 %v3822, %v3960
      %v3989 = vadd.f32 %v3823, %v3965
      %v3990 = vadd.f32 %v3824, %v3968
      %v3991 = vadd.f32 %v3825, %v3973
      %v3992 = vadd.f32 %v3826, %v3976
      %v3993 = vadd.f32 %v3827, %v3981
      %v3994 = vadd.f32 %v3828, %v3984
      %v3995 = vld [vmem:[%s1699] sm:$0x3]
      %v3997 = vsel %vm749, %v3995, 0
      %3999 = vmatprep.subr.bf16.mxu0 0
      %4000 = vmatpush1.bf16.msra.mxu0 %v3997
      %4001 = vmatprep.subr.bf16.mxu0 0
      %4002 = vmatpush1.bf16.msra.mxu0 0
      %4003 = vmatprep.subr.bf16.mxu0 0
      %4004 = vmatpush1.bf16.msra.mxu0 0
      %4005 = vmatprep.subr.bf16.mxu0 0
      %4006 = vmatpush1.bf16.msra.mxu0 0
      %4007 = vmatprep.subr.bf16.mxu0 0
      %4008 = vmatpush1.bf16.msra.mxu0 0
      %4009 = vmatprep.subr.bf16.mxu0 0
      %4010 = vmatpush1.bf16.msra.mxu0 0
      %4011 = vmatprep.subr.bf16.mxu0 0
      %4012 = vmatpush1.bf16.msra.mxu0 0
      %4013 = vmatprep.subr.bf16.mxu0 0
      %4014 = vmatpush1.bf16.msra.mxu0 0
      %4015 = vmatprep.subr.bf16.mxu0 0
      %4016 = vmatpush1.bf16.msra.mxu0 0
      %4017 = vmatprep.subr.bf16.mxu0 0
      %4018 = vmatpush1.bf16.msra.mxu0 0
      %4019 = vmatprep.subr.bf16.mxu0 0
      %4020 = vmatpush1.bf16.msra.mxu0 0
      %4021 = vmatprep.subr.bf16.mxu0 0
      %4022 = vmatpush1.bf16.msra.mxu0 0
      %4023 = vmatprep.subr.bf16.mxu0 0
      %4024 = vmatpush1.bf16.msra.mxu0 0
      %4025 = vmatprep.subr.bf16.mxu0 0
      %4026 = vmatpush1.bf16.msra.mxu0 0
      %4027 = vmatprep.subr.bf16.mxu0 0
      %4028 = vmatpush1.bf16.msra.mxu0 0
      %4029 = vmatprep.subr.bf16.mxu0 0
      %4030 = vmatpush1.bf16.msra.mxu0 0
      %4031 = vmatprep.mubr.bf16.mxu0 0
      %4032 = vmatmul.mubr.bf16.gmra.mrb[0].mxu0 %v3314
      %v4033 = vpop.f32.mrb[0].mxu0
      %v4034 = vadd.f32 0.0, %v4033
      %v4035 = vpop.f32.mrb[0].mxu0
      %v4036 = vpop.f32.mrb[0].mxu0
      %v4037 = vadd.f32 0.0, %v4036
      %v4038 = vpop.f32.mrb[0].mxu0
      %4039 = vmatprep.mubr.bf16.mxu0 0
      %4040 = vmatmul.mubr.bf16.gmra.mrb[0].mxu0 %v3317
      %v4041 = vpop.f32.mrb[0].mxu0
      %v4042 = vadd.f32 0.0, %v4041
      %v4043 = vpop.f32.mrb[0].mxu0
      %v4044 = vpop.f32.mrb[0].mxu0
      %v4045 = vadd.f32 0.0, %v4044
      %v4046 = vpop.f32.mrb[0].mxu0
      %4047 = vmatprep.mubr.bf16.mxu0 0
      %4048 = vmatmul.mubr.bf16.gmra.mrb[0].mxu0 %v3320
      %v4049 = vpop.f32.mrb[0].mxu0
      %v4050 = vadd.f32 0.0, %v4049
      %v4051 = vpop.f32.mrb[0].mxu0
      %v4052 = vpop.f32.mrb[0].mxu0
      %v4053 = vadd.f32 0.0, %v4052
      %v4054 = vpop.f32.mrb[0].mxu0
      %4055 = vmatprep.mubr.bf16.mxu0 0
      %4056 = vmatmul.mubr.bf16.gmra.mrb[0].mxu0 %v3323
      %v4057 = vpop.f32.mrb[0].mxu0
      %v4058 = vadd.f32 0.0, %v4057
      %v4059 = vpop.f32.mrb[0].mxu0
      %v4060 = vpop.f32.mrb[0].mxu0
      %v4061 = vadd.f32 0.0, %v4060
      %v4062 = vpop.f32.mrb[0].mxu0
      %4063 = vdwg.mxu0
      %v4064 = vadd.f32 %v3987, %v4034
      %v4065 = vadd.f32 %v3988, %v4037
      %v4066 = vadd.f32 %v3989, %v4042
      %v4067 = vadd.f32 %v3990, %v4045
      %v4068 = vadd.f32 %v3991, %v4050
      %v4069 = vadd.f32 %v3992, %v4053
      %v4070 = vadd.f32 %v3993, %v4058
      %v4071 = vadd.f32 %v3994, %v4061
      %v4072 = vld [vmem:[%s552 + $0x4] sm:$0xf]
      %v4073 = vld [vmem:[%s552 + $0x24] sm:$0x1]
      %v4074 = vsel %vm1917, %v4072, 0
      %v4075 = vsel %vm1918, %v3712, 0
      %v4076 = vsel %vm1919, %v3713, 0
      %v4077 = vsel %vm1920, %v3714, 0
      %v4078 = vsel %vm1921, %v3715, 0
      %v4079 = vsel %vm1922, %v3716, 0
      %v4080 = vsel %vm1923, %v3717, 0
      %v4081 = vsel %vm1924, %v3718, 0
      %v4082 = vsel %vm1925, %v4073, 0
      %v4083 = vld [vmem:[%s1935] sm:$0x3]
      %v4093 = vunpack.c.l.b16 %v4074
      %v4094 = vunpack.c.l.b16 %v4075
      %v4095 = vunpack.c.l.b16 %v4076
      %v4096 = vunpack.c.l.b16 %v4077
      %v4097 = vunpack.c.l.b16 %v4078
      %v4098 = vunpack.c.l.b16 %v4079
      %v4099 = vunpack.c.l.b16 %v4080
      %v4100 = vunpack.c.l.b16 %v4081
      %v4101 = vunpack.c.l.b16 %v4082
      %v4102 = vpack.c.b16 %v4094, %v4093
      %v4103 = vpack.c.b16 %v4096, %v4095
      %v4104 = vpack.c.b16 %v4098, %v4097
      %v4105 = vpack.c.b16 %v4100, %v4099
      %v4106 = vpack.c.b16 %v4101, %v4101
      %v4108 = vshrl.u32 %v4102, 16
      %v4110 = vshll.u32 %v4102, 16
      %v4112 = vrot.slane %v4110, 1
      %v4113 = vor.u32 %v4108, %v4112
      %v4115 = vshll.u32 %v4103, 16
      %v4117 = vrot.slane %v4115, 1
      %v4118 = vsel %vm1960, %v4113, %v4117
      %v4119 = vshrl.u32 %v4103, 16
      %v4121 = vor.u32 %v4119, %v4117
      %v4123 = vshll.u32 %v4104, 16
      %v4125 = vrot.slane %v4123, 1
      %v4126 = vsel %vm1960, %v4121, %v4125
      %v4127 = vshrl.u32 %v4104, 16
      %v4129 = vor.u32 %v4127, %v4125
      %v4131 = vshll.u32 %v4105, 16
      %v4133 = vrot.slane %v4131, 1
      %v4134 = vsel %vm1960, %v4129, %v4133
      %v4135 = vshrl.u32 %v4105, 16
      %v4137 = vor.u32 %v4135, %v4133
      %v4139 = vshll.u32 %v4106, 16
      %v4141 = vrot.slane %v4139, 1
      %v4142 = vsel %vm1960, %v4137, %v4141
      %v4144 = vsel %vm736, %v4118, 0
      %v4147 = vsel %vm736, %v4126, 0
      %v4150 = vsel %vm736, %v4134, 0
      %v4153 = vsel %vm736, %v4142, 0
      %v4156 = vsel %vm749, %v4083, 0
      %4158 = vmatprep.subr.bf16.mxu0 0
      %4159 = vmatpush1.bf16.msra.mxu0 %v4156
      %4160 = vmatprep.subr.bf16.mxu0 0
      %4161 = vmatpush1.bf16.msra.mxu0 0
      %4162 = vmatprep.subr.bf16.mxu0 0
      %4163 = vmatpush1.bf16.msra.mxu0 0
      %4164 = vmatprep.subr.bf16.mxu0 0
      %4165 = vmatpush1.bf16.msra.mxu0 0
      %4166 = vmatprep.subr.bf16.mxu0 0
      %4167 = vmatpush1.bf16.msra.mxu0 0
      %4168 = vmatprep.subr.bf16.mxu0 0
      %4169 = vmatpush1.bf16.msra.mxu0 0
      %4170 = vmatprep.subr.bf16.mxu0 0
      %4171 = vmatpush1.bf16.msra.mxu0 0
      %4172 = vmatprep.subr.bf16.mxu0 0
      %4173 = vmatpush1.bf16.msra.mxu0 0
      %4174 = vmatprep.subr.bf16.mxu0 0
      %4175 = vmatpush1.bf16.msra.mxu0 0
      %4176 = vmatprep.subr.bf16.mxu0 0
      %4177 = vmatpush1.bf16.msra.mxu0 0
      %4178 = vmatprep.subr.bf16.mxu0 0
      %4179 = vmatpush1.bf16.msra.mxu0 0
      %4180 = vmatprep.subr.bf16.mxu0 0
      %4181 = vmatpush1.bf16.msra.mxu0 0
      %4182 = vmatprep.subr.bf16.mxu0 0
      %4183 = vmatpush1.bf16.msra.mxu0 0
      %4184 = vmatprep.subr.bf16.mxu0 0
      %4185 = vmatpush1.bf16.msra.mxu0 0
      %4186 = vmatprep.subr.bf16.mxu0 0
      %4187 = vmatpush1.bf16.msra.mxu0 0
      %4188 = vmatprep.subr.bf16.mxu0 0
      %4189 = vmatpush1.bf16.msra.mxu0 0
      %4190 = vmatprep.mubr.bf16.mxu0 0
      %4191 = vmatmul.mubr.bf16.gmra.mrb[0].mxu0 %v4144
      %v4192 = vpop.f32.mrb[0].mxu0
      %v4193 = vadd.f32 0.0, %v4192
      %v4194 = vpop.f32.mrb[0].mxu0
      %v4195 = vpop.f32.mrb[0].mxu0
      %v4196 = vadd.f32 0.0, %v4195
      %v4197 = vpop.f32.mrb[0].mxu0
      %4198 = vmatprep.mubr.bf16.mxu0 0
      %4199 = vmatmul.mubr.bf16.gmra.mrb[0].mxu0 %v4147
      %v4200 = vpop.f32.mrb[0].mxu0
      %v4201 = vadd.f32 0.0, %v4200
      %v4202 = vpop.f32.mrb[0].mxu0
      %v4203 = vpop.f32.mrb[0].mxu0
      %v4204 = vadd.f32 0.0, %v4203
      %v4205 = vpop.f32.mrb[0].mxu0
      %4206 = vmatprep.mubr.bf16.mxu0 0
      %4207 = vmatmul.mubr.bf16.gmra.mrb[0].mxu0 %v4150
      %v4208 = vpop.f32.mrb[0].mxu0
      %v4209 = vadd.f32 0.0, %v4208
      %v4210 = vpop.f32.mrb[0].mxu0
      %v4211 = vpop.f32.mrb[0].mxu0
      %v4212 = vadd.f32 0.0, %v4211
      %v4213 = vpop.f32.mrb[0].mxu0
      %4214 = vmatprep.mubr.bf16.mxu0 0
      %4215 = vmatmul.mubr.bf16.gmra.mrb[0].mxu0 %v4153
      %v4216 = vpop.f32.mrb[0].mxu0
      %v4217 = vadd.f32 0.0, %v4216
      %v4218 = vpop.f32.mrb[0].mxu0
      %v4219 = vpop.f32.mrb[0].mxu0
      %v4220 = vadd.f32 0.0, %v4219
      %v4221 = vpop.f32.mrb[0].mxu0
      %4222 = vdwg.mxu0
      %v4223 = vadd.f32 %v4064, %v4193
      %v4224 = vadd.f32 %v4065, %v4196
      %v4225 = vadd.f32 %v4066, %v4201
      %v4226 = vadd.f32 %v4067, %v4204
      %v4227 = vadd.f32 %v4068, %v4209
      %v4228 = vadd.f32 %v4069, %v4212
      %v4229 = vadd.f32 %v4070, %v4217
      %v4230 = vadd.f32 %v4071, %v4220
      %s4231 = scalar_lea.vmem %s590, 128
      %4232 = vst.msk [vmem:[%s4231] sm:$0xff] %vm2085, %v4223
      %4233 = vst.msk [vmem:[%s4231 + $0x8] sm:$0xff] %vm2085, %v4224
      %4234 = vst.msk [vmem:[%s4231 + $0x10] sm:$0xff] %vm2085, %v4225
      %4235 = vst.msk [vmem:[%s4231 + $0x18] sm:$0xff] %vm2085, %v4226
      %4236 = vst.msk [vmem:[%s4231 + $0x20] sm:$0xff] %vm2085, %v4227
      %4237 = vst.msk [vmem:[%s4231 + $0x28] sm:$0xff] %vm2085, %v4228
      %4238 = vst.msk [vmem:[%s4231 + $0x30] sm:$0xff] %vm2085, %v4229
      %4239 = vst.msk [vmem:[%s4231 + $0x38] sm:$0xff] %vm2085, %v4230
      %v4240 = vld [vmem:[%s552 + $0x4] sm:$0xf]
      %v4241 = vld [vmem:[%s552 + $0x8] sm:$0xf]
      %v4242 = vld [vmem:[%s552 + $0xc] sm:$0xf]
      %v4243 = vld [vmem:[%s552 + $0x10] sm:$0xf]
      %v4244 = vld [vmem:[%s552 + $0x14] sm:$0xf]
      %v4245 = vld [vmem:[%s552 + $0x18] sm:$0xf]
      %v4246 = vld [vmem:[%s552 + $0x1c] sm:$0xf]
      %v4247 = vld [vmem:[%s552 + $0x20] sm:$0xf]
      %v4248 = vld [vmem:[%s6] sm:$0x3]
      %v4257 = vunpack.c.l.b16 %v4240
      %v4258 = vunpack.c.l.b16 %v4241
      %v4259 = vunpack.c.l.b16 %v4242
      %v4260 = vunpack.c.l.b16 %v4243
      %v4261 = vunpack.c.l.b16 %v4244
      %v4262 = vunpack.c.l.b16 %v4245
      %v4263 = vunpack.c.l.b16 %v4246
      %v4264 = vunpack.c.l.b16 %v4247
      %v4265 = vpack.c.b16 %v4258, %v4257
      %v4266 = vpack.c.b16 %v4260, %v4259
      %v4267 = vpack.c.b16 %v4262, %v4261
      %v4268 = vpack.c.b16 %v4264, %v4263
      %v4270 = vsel %vm736, %v4265, 0
      %v4273 = vsel %vm736, %v4266, 0
      %v4276 = vsel %vm736, %v4267, 0
      %v4279 = vsel %vm736, %v4268, 0
      %v4282 = vsel %vm749, %v4248, 0
      %4284 = vmatprep.subr.bf16.mxu0 0
      %4285 = vmatpush1.bf16.msra.mxu0 %v4282
      %4286 = vmatprep.subr.bf16.mxu0 0
      %4287 = vmatpush1.bf16.msra.mxu0 0
      %4288 = vmatprep.subr.bf16.mxu0 0
      %4289 = vmatpush1.bf16.msra.mxu0 0
      %4290 = vmatprep.subr.bf16.mxu0 0
      %4291 = vmatpush1.bf16.msra.mxu0 0
      %4292 = vmatprep.subr.bf16.mxu0 0
      %4293 = vmatpush1.bf16.msra.mxu0 0
      %4294 = vmatprep.subr.bf16.mxu0 0
      %4295 = vmatpush1.bf16.msra.mxu0 0
      %4296 = vmatprep.subr.bf16.mxu0 0
      %4297 = vmatpush1.bf16.msra.mxu0 0
      %4298 = vmatprep.subr.bf16.mxu0 0
      %4299 = vmatpush1.bf16.msra.mxu0 0
      %4300 = vmatprep.subr.bf16.mxu0 0
      %4301 = vmatpush1.bf16.msra.mxu0 0
      %4302 = vmatprep.subr.bf16.mxu0 0
      %4303 = vmatpush1.bf16.msra.mxu0 0
      %4304 = vmatprep.subr.bf16.mxu0 0
      %4305 = vmatpush1.bf16.msra.mxu0 0
      %4306 = vmatprep.subr.bf16.mxu0 0
      %4307 = vmatpush1.bf16.msra.mxu0 0
      %4308 = vmatprep.subr.bf16.mxu0 0
      %4309 = vmatpush1.bf16.msra.mxu0 0
      %4310 = vmatprep.subr.bf16.mxu0 0
      %4311 = vmatpush1.bf16.msra.mxu0 0
      %4312 = vmatprep.subr.bf16.mxu0 0
      %4313 = vmatpush1.bf16.msra.mxu0 0
      %4314 = vmatprep.subr.bf16.mxu0 0
      %4315 = vmatpush1.bf16.msra.mxu0 0
      %4316 = vmatprep.mubr.bf16.mxu0 0
      %4317 = vmatmul.mubr.bf16.gmra.mrb[0].mxu0 %v4270
      %v4318 = vpop.f32.mrb[0].mxu0
      %v4319 = vadd.f32 0.0, %v4318
      %v4320 = vpop.f32.mrb[0].mxu0
      %v4321 = vpop.f32.mrb[0].mxu0
      %v4322 = vadd.f32 0.0, %v4321
      %v4323 = vpop.f32.mrb[0].mxu0
      %4324 = vmatprep.mubr.bf16.mxu0 0
      %4325 = vmatmul.mubr.bf16.gmra.mrb[0].mxu0 %v4273
      %v4326 = vpop.f32.mrb[0].mxu0
      %v4327 = vadd.f32 0.0, %v4326
      %v4328 = vpop.f32.mrb[0].mxu0
      %v4329 = vpop.f32.mrb[0].mxu0
      %v4330 = vadd.f32 0.0, %v4329
      %v4331 = vpop.f32.mrb[0].mxu0
      %4332 = vmatprep.mubr.bf16.mxu0 0
      %4333 = vmatmul.mubr.bf16.gmra.mrb[0].mxu0 %v4276
      %v4334 = vpop.f32.mrb[0].mxu0
      %v4335 = vadd.f32 0.0, %v4334
      %v4336 = vpop.f32.mrb[0].mxu0
      %v4337 = vpop.f32.mrb[0].mxu0
      %v4338 = vadd.f32 0.0, %v4337
      %v4339 = vpop.f32.mrb[0].mxu0
      %4340 = vmatprep.mubr.bf16.mxu0 0
      %4341 = vmatmul.mubr.bf16.gmra.mrb[0].mxu0 %v4279
      %v4342 = vpop.f32.mrb[0].mxu0
      %v4343 = vadd.f32 0.0, %v4342
      %v4344 = vpop.f32.mrb[0].mxu0
      %v4345 = vpop.f32.mrb[0].mxu0
      %v4346 = vadd.f32 0.0, %v4345
      %v4347 = vpop.f32.mrb[0].mxu0
      %4348 = vdwg.mxu0
      %v4349 = vadd.f32 %v705, %v4319
      %v4350 = vadd.f32 %v705, %v4322
      %v4351 = vadd.f32 %v705, %v4327
      %v4352 = vadd.f32 %v705, %v4330
      %v4353 = vadd.f32 %v705, %v4335
      %v4354 = vadd.f32 %v705, %v4338
      %v4355 = vadd.f32 %v705, %v4343
      %v4356 = vadd.f32 %v705, %v4346
      %v4357 = vld [vmem:[%s565 + $0x4] sm:$0xf]
      %v4358 = vld [vmem:[%s565 + $0x8] sm:$0xf]
      %v4359 = vld [vmem:[%s565 + $0xc] sm:$0xf]
      %v4360 = vld [vmem:[%s565 + $0x10] sm:$0xf]
      %v4361 = vld [vmem:[%s565 + $0x14] sm:$0xf]
      %v4362 = vld [vmem:[%s565 + $0x18] sm:$0xf]
      %v4363 = vld [vmem:[%s565 + $0x1c] sm:$0xf]
      %v4364 = vld [vmem:[%s565 + $0x20] sm:$0xf]
      %v4365 = vld [vmem:[%s834] sm:$0x3]
      %v4374 = vunpack.c.l.b16 %v4357
      %v4375 = vunpack.c.l.b16 %v4358
      %v4376 = vunpack.c.l.b16 %v4359
      %v4377 = vunpack.c.l.b16 %v4360
      %v4378 = vunpack.c.l.b16 %v4361
      %v4379 = vunpack.c.l.b16 %v4362
      %v4380 = vunpack.c.l.b16 %v4363
      %v4381 = vunpack.c.l.b16 %v4364
      %v4382 = vpack.c.b16 %v4375, %v4374
      %v4383 = vpack.c.b16 %v4377, %v4376
      %v4384 = vpack.c.b16 %v4379, %v4378
      %v4385 = vpack.c.b16 %v4381, %v4380
      %v4387 = vsel %vm736, %v4382, 0
      %v4390 = vsel %vm736, %v4383, 0
      %v4393 = vsel %vm736, %v4384, 0
      %v4396 = vsel %vm736, %v4385, 0
      %v4399 = vsel %vm749, %v4365, 0
      %4401 = vmatprep.subr.bf16.mxu0 0
      %4402 = vmatpush1.bf16.msra.mxu0 %v4399
      %4403 = vmatprep.subr.bf16.mxu0 0
      %4404 = vmatpush1.bf16.msra.mxu0 0
      %4405 = vmatprep.subr.bf16.mxu0 0
      %4406 = vmatpush1.bf16.msra.mxu0 0
      %4407 = vmatprep.subr.bf16.mxu0 0
      %4408 = vmatpush1.bf16.msra.mxu0 0
      %4409 = vmatprep.subr.bf16.mxu0 0
      %4410 = vmatpush1.bf16.msra.mxu0 0
      %4411 = vmatprep.subr.bf16.mxu0 0
      %4412 = vmatpush1.bf16.msra.mxu0 0
      %4413 = vmatprep.subr.bf16.mxu0 0
      %4414 = vmatpush1.bf16.msra.mxu0 0
      %4415 = vmatprep.subr.bf16.mxu0 0
      %4416 = vmatpush1.bf16.msra.mxu0 0
      %4417 = vmatprep.subr.bf16.mxu0 0
      %4418 = vmatpush1.bf16.msra.mxu0 0
      %4419 = vmatprep.subr.bf16.mxu0 0
      %4420 = vmatpush1.bf16.msra.mxu0 0
      %4421 = vmatprep.subr.bf16.mxu0 0
      %4422 = vmatpush1.bf16.msra.mxu0 0
      %4423 = vmatprep.subr.bf16.mxu0 0
      %4424 = vmatpush1.bf16.msra.mxu0 0
      %4425 = vmatprep.subr.bf16.mxu0 0
      %4426 = vmatpush1.bf16.msra.mxu0 0
      %4427 = vmatprep.subr.bf16.mxu0 0
      %4428 = vmatpush1.bf16.msra.mxu0 0
      %4429 = vmatprep.subr.bf16.mxu0 0
      %4430 = vmatpush1.bf16.msra.mxu0 0
      %4431 = vmatprep.subr.bf16.mxu0 0
      %4432 = vmatpush1.bf16.msra.mxu0 0
      %4433 = vmatprep.mubr.bf16.mxu0 0
      %4434 = vmatmul.mubr.bf16.gmra.mrb[0].mxu0 %v4387
      %v4435 = vpop.f32.mrb[0].mxu0
      %v4436 = vadd.f32 0.0, %v4435
      %v4437 = vpop.f32.mrb[0].mxu0
      %v4438 = vpop.f32.mrb[0].mxu0
      %v4439 = vadd.f32 0.0, %v4438
      %v4440 = vpop.f32.mrb[0].mxu0
      %4441 = vmatprep.mubr.bf16.mxu0 0
      %4442 = vmatmul.mubr.bf16.gmra.mrb[0].mxu0 %v4390
      %v4443 = vpop.f32.mrb[0].mxu0
      %v4444 = vadd.f32 0.0, %v4443
      %v4445 = vpop.f32.mrb[0].mxu0
      %v4446 = vpop.f32.mrb[0].mxu0
      %v4447 = vadd.f32 0.0, %v4446
      %v4448 = vpop.f32.mrb[0].mxu0
      %4449 = vmatprep.mubr.bf16.mxu0 0
      %4450 = vmatmul.mubr.bf16.gmra.mrb[0].mxu0 %v4393
      %v4451 = vpop.f32.mrb[0].mxu0
      %v4452 = vadd.f32 0.0, %v4451
      %v4453 = vpop.f32.mrb[0].mxu0
      %v4454 = vpop.f32.mrb[0].mxu0
      %v4455 = vadd.f32 0.0, %v4454
      %v4456 = vpop.f32.mrb[0].mxu0
      %4457 = vmatprep.mubr.bf16.mxu0 0
      %4458 = vmatmul.mubr.bf16.gmra.mrb[0].mxu0 %v4396
      %v4459 = vpop.f32.mrb[0].mxu0
      %v4460 = vadd.f32 0.0, %v4459
      %v4461 = vpop.f32.mrb[0].mxu0
      %v4462 = vpop.f32.mrb[0].mxu0
      %v4463 = vadd.f32 0.0, %v4462
      %v4464 = vpop.f32.mrb[0].mxu0
      %4465 = vdwg.mxu0
      %v4466 = vadd.f32 %v4349, %v4436
      %v4467 = vadd.f32 %v4350, %v4439
      %v4468 = vadd.f32 %v4351, %v4444
      %v4469 = vadd.f32 %v4352, %v4447
      %v4470 = vadd.f32 %v4353, %v4452
      %v4471 = vadd.f32 %v4354, %v4455
      %v4472 = vadd.f32 %v4355, %v4460
      %v4473 = vadd.f32 %v4356, %v4463
      %v4474 = vld [vmem:[%s578 + $0x4] sm:$0xf]
      %v4475 = vld [vmem:[%s578 + $0x8] sm:$0xf]
      %v4476 = vld [vmem:[%s578 + $0xc] sm:$0xf]
      %v4477 = vld [vmem:[%s578 + $0x10] sm:$0xf]
      %v4478 = vld [vmem:[%s578 + $0x14] sm:$0xf]
      %v4479 = vld [vmem:[%s578 + $0x18] sm:$0xf]
      %v4480 = vld [vmem:[%s578 + $0x1c] sm:$0xf]
      %v4481 = vld [vmem:[%s578 + $0x20] sm:$0xf]
      %v4482 = vld [vmem:[%s952] sm:$0x3]
      %v4491 = vunpack.c.l.b16 %v4474
      %v4492 = vunpack.c.l.b16 %v4475
      %v4493 = vunpack.c.l.b16 %v4476
      %v4494 = vunpack.c.l.b16 %v4477
      %v4495 = vunpack.c.l.b16 %v4478
      %v4496 = vunpack.c.l.b16 %v4479
      %v4497 = vunpack.c.l.b16 %v4480
      %v4498 = vunpack.c.l.b16 %v4481
      %v4499 = vpack.c.b16 %v4492, %v4491
      %v4500 = vpack.c.b16 %v4494, %v4493
      %v4501 = vpack.c.b16 %v4496, %v4495
      %v4502 = vpack.c.b16 %v4498, %v4497
      %v4504 = vsel %vm736, %v4499, 0
      %v4507 = vsel %vm736, %v4500, 0
      %v4510 = vsel %vm736, %v4501, 0
      %v4513 = vsel %vm736, %v4502, 0
      %v4516 = vsel %vm749, %v4482, 0
      %4518 = vmatprep.subr.bf16.mxu0 0
      %4519 = vmatpush1.bf16.msra.mxu0 %v4516
      %4520 = vmatprep.subr.bf16.mxu0 0
      %4521 = vmatpush1.bf16.msra.mxu0 0
      %4522 = vmatprep.subr.bf16.mxu0 0
      %4523 = vmatpush1.bf16.msra.mxu0 0
      %4524 = vmatprep.subr.bf16.mxu0 0
      %4525 = vmatpush1.bf16.msra.mxu0 0
      %4526 = vmatprep.subr.bf16.mxu0 0
      %4527 = vmatpush1.bf16.msra.mxu0 0
      %4528 = vmatprep.subr.bf16.mxu0 0
      %4529 = vmatpush1.bf16.msra.mxu0 0
      %4530 = vmatprep.subr.bf16.mxu0 0
      %4531 = vmatpush1.bf16.msra.mxu0 0
      %4532 = vmatprep.subr.bf16.mxu0 0
      %4533 = vmatpush1.bf16.msra.mxu0 0
      %4534 = vmatprep.subr.bf16.mxu0 0
      %4535 = vmatpush1.bf16.msra.mxu0 0
      %4536 = vmatprep.subr.bf16.mxu0 0
      %4537 = vmatpush1.bf16.msra.mxu0 0
      %4538 = vmatprep.subr.bf16.mxu0 0
      %4539 = vmatpush1.bf16.msra.mxu0 0
      %4540 = vmatprep.subr.bf16.mxu0 0
      %4541 = vmatpush1.bf16.msra.mxu0 0
      %4542 = vmatprep.subr.bf16.mxu0 0
      %4543 = vmatpush1.bf16.msra.mxu0 0
      %4544 = vmatprep.subr.bf16.mxu0 0
      %4545 = vmatpush1.bf16.msra.mxu0 0
      %4546 = vmatprep.subr.bf16.mxu0 0
      %4547 = vmatpush1.bf16.msra.mxu0 0
      %4548 = vmatprep.subr.bf16.mxu0 0
      %4549 = vmatpush1.bf16.msra.mxu0 0
      %4550 = vmatprep.mubr.bf16.mxu0 0
      %4551 = vmatmul.mubr.bf16.gmra.mrb[0].mxu0 %v4504
      %v4552 = vpop.f32.mrb[0].mxu0
      %v4553 = vadd.f32 0.0, %v4552
      %v4554 = vpop.f32.mrb[0].mxu0
      %v4555 = vpop.f32.mrb[0].mxu0
      %v4556 = vadd.f32 0.0, %v4555
      %v4557 = vpop.f32.mrb[0].mxu0
      %4558 = vmatprep.mubr.bf16.mxu0 0
      %4559 = vmatmul.mubr.bf16.gmra.mrb[0].mxu0 %v4507
      %v4560 = vpop.f32.mrb[0].mxu0
      %v4561 = vadd.f32 0.0, %v4560
      %v4562 = vpop.f32.mrb[0].mxu0
      %v4563 = vpop.f32.mrb[0].mxu0
      %v4564 = vadd.f32 0.0, %v4563
      %v4565 = vpop.f32.mrb[0].mxu0
      %4566 = vmatprep.mubr.bf16.mxu0 0
      %4567 = vmatmul.mubr.bf16.gmra.mrb[0].mxu0 %v4510
      %v4568 = vpop.f32.mrb[0].mxu0
      %v4569 = vadd.f32 0.0, %v4568
      %v4570 = vpop.f32.mrb[0].mxu0
      %v4571 = vpop.f32.mrb[0].mxu0
      %v4572 = vadd.f32 0.0, %v4571
      %v4573 = vpop.f32.mrb[0].mxu0
      %4574 = vmatprep.mubr.bf16.mxu0 0
      %4575 = vmatmul.mubr.bf16.gmra.mrb[0].mxu0 %v4513
      %v4576 = vpop.f32.mrb[0].mxu0
      %v4577 = vadd.f32 0.0, %v4576
      %v4578 = vpop.f32.mrb[0].mxu0
      %v4579 = vpop.f32.mrb[0].mxu0
      %v4580 = vadd.f32 0.0, %v4579
      %v4581 = vpop.f32.mrb[0].mxu0
      %4582 = vdwg.mxu0
      %v4583 = vadd.f32 %v4466, %v4553
      %v4584 = vadd.f32 %v4467, %v4556
      %v4585 = vadd.f32 %v4468, %v4561
      %v4586 = vadd.f32 %v4469, %v4564
      %v4587 = vadd.f32 %v4470, %v4569
      %v4588 = vadd.f32 %v4471, %v4572
      %v4589 = vadd.f32 %v4472, %v4577
      %v4590 = vadd.f32 %v4473, %v4580
      %v4591 = vld [vmem:[%s565] sm:$0xf]
      %v4592 = vld [vmem:[%s565 + $0x4] sm:$0xf]
      %v4593 = vld [vmem:[%s565 + $0x8] sm:$0xf]
      %v4594 = vld [vmem:[%s565 + $0xc] sm:$0xf]
      %v4595 = vld [vmem:[%s565 + $0x10] sm:$0xf]
      %v4596 = vld [vmem:[%s565 + $0x14] sm:$0xf]
      %v4597 = vld [vmem:[%s565 + $0x18] sm:$0xf]
      %v4598 = vld [vmem:[%s565 + $0x1c] sm:$0xf]
      %v4599 = vld [vmem:[%s1070] sm:$0x3]
      %v4608 = vunpack.c.l.b16 %v4591
      %v4609 = vunpack.c.l.b16 %v4592
      %v4610 = vunpack.c.l.b16 %v4593
      %v4611 = vunpack.c.l.b16 %v4594
      %v4612 = vunpack.c.l.b16 %v4595
      %v4613 = vunpack.c.l.b16 %v4596
      %v4614 = vunpack.c.l.b16 %v4597
      %v4615 = vunpack.c.l.b16 %v4598
      %v4616 = vpack.c.b16 %v4609, %v4608
      %v4617 = vpack.c.b16 %v4611, %v4610
      %v4618 = vpack.c.b16 %v4613, %v4612
      %v4619 = vpack.c.b16 %v4615, %v4614
      %v4621 = vsel %vm736, %v4616, 0
      %v4624 = vsel %vm736, %v4617, 0
      %v4627 = vsel %vm736, %v4618, 0
      %v4630 = vsel %vm736, %v4619, 0
      %v4633 = vsel %vm749, %v4599, 0
      %4635 = vmatprep.subr.bf16.mxu0 0
      %4636 = vmatpush1.bf16.msra.mxu0 %v4633
      %4637 = vmatprep.subr.bf16.mxu0 0
      %4638 = vmatpush1.bf16.msra.mxu0 0
      %4639 = vmatprep.subr.bf16.mxu0 0
      %4640 = vmatpush1.bf16.msra.mxu0 0
      %4641 = vmatprep.subr.bf16.mxu0 0
      %4642 = vmatpush1.bf16.msra.mxu0 0
      %4643 = vmatprep.subr.bf16.mxu0 0
      %4644 = vmatpush1.bf16.msra.mxu0 0
      %4645 = vmatprep.subr.bf16.mxu0 0
      %4646 = vmatpush1.bf16.msra.mxu0 0
      %4647 = vmatprep.subr.bf16.mxu0 0
      %4648 = vmatpush1.bf16.msra.mxu0 0
      %4649 = vmatprep.subr.bf16.mxu0 0
      %4650 = vmatpush1.bf16.msra.mxu0 0
      %4651 = vmatprep.subr.bf16.mxu0 0
      %4652 = vmatpush1.bf16.msra.mxu0 0
      %4653 = vmatprep.subr.bf16.mxu0 0
      %4654 = vmatpush1.bf16.msra.mxu0 0
      %4655 = vmatprep.subr.bf16.mxu0 0
      %4656 = vmatpush1.bf16.msra.mxu0 0
      %4657 = vmatprep.subr.bf16.mxu0 0
      %4658 = vmatpush1.bf16.msra.mxu0 0
      %4659 = vmatprep.subr.bf16.mxu0 0
      %4660 = vmatpush1.bf16.msra.mxu0 0
      %4661 = vmatprep.subr.bf16.mxu0 0
      %4662 = vmatpush1.bf16.msra.mxu0 0
      %4663 = vmatprep.subr.bf16.mxu0 0
      %4664 = vmatpush1.bf16.msra.mxu0 0
      %4665 = vmatprep.subr.bf16.mxu0 0
      %4666 = vmatpush1.bf16.msra.mxu0 0
      %4667 = vmatprep.mubr.bf16.mxu0 0
      %4668 = vmatmul.mubr.bf16.gmra.mrb[0].mxu0 %v4621
      %v4669 = vpop.f32.mrb[0].mxu0
      %v4670 = vadd.f32 0.0, %v4669
      %v4671 = vpop.f32.mrb[0].mxu0
      %v4672 = vpop.f32.mrb[0].mxu0
      %v4673 = vadd.f32 0.0, %v4672
      %v4674 = vpop.f32.mrb[0].mxu0
      %4675 = vmatprep.mubr.bf16.mxu0 0
      %4676 = vmatmul.mubr.bf16.gmra.mrb[0].mxu0 %v4624
      %v4677 = vpop.f32.mrb[0].mxu0
      %v4678 = vadd.f32 0.0, %v4677
      %v4679 = vpop.f32.mrb[0].mxu0
      %v4680 = vpop.f32.mrb[0].mxu0
      %v4681 = vadd.f32 0.0, %v4680
      %v4682 = vpop.f32.mrb[0].mxu0
      %4683 = vmatprep.mubr.bf16.mxu0 0
      %4684 = vmatmul.mubr.bf16.gmra.mrb[0].mxu0 %v4627
      %v4685 = vpop.f32.mrb[0].mxu0
      %v4686 = vadd.f32 0.0, %v4685
      %v4687 = vpop.f32.mrb[0].mxu0
      %v4688 = vpop.f32.mrb[0].mxu0
      %v4689 = vadd.f32 0.0, %v4688
      %v4690 = vpop.f32.mrb[0].mxu0
      %4691 = vmatprep.mubr.bf16.mxu0 0
      %4692 = vmatmul.mubr.bf16.gmra.mrb[0].mxu0 %v4630
      %v4693 = vpop.f32.mrb[0].mxu0
      %v4694 = vadd.f32 0.0, %v4693
      %v4695 = vpop.f32.mrb[0].mxu0
      %v4696 = vpop.f32.mrb[0].mxu0
      %v4697 = vadd.f32 0.0, %v4696
      %v4698 = vpop.f32.mrb[0].mxu0
      %4699 = vdwg.mxu0
      %v4700 = vadd.f32 %v4583, %v4670
      %v4701 = vadd.f32 %v4584, %v4673
      %v4702 = vadd.f32 %v4585, %v4678
      %v4703 = vadd.f32 %v4586, %v4681
      %v4704 = vadd.f32 %v4587, %v4686
      %v4705 = vadd.f32 %v4588, %v4689
      %v4706 = vadd.f32 %v4589, %v4694
      %v4707 = vadd.f32 %v4590, %v4697
      %v4708 = vld [vmem:[%s1180] sm:$0x3]
      %v4710 = vsel %vm749, %v4708, 0
      %4712 = vmatprep.subr.bf16.mxu0 0
      %4713 = vmatpush1.bf16.msra.mxu0 %v4710
      %4714 = vmatprep.subr.bf16.mxu0 0
      %4715 = vmatpush1.bf16.msra.mxu0 0
      %4716 = vmatprep.subr.bf16.mxu0 0
      %4717 = vmatpush1.bf16.msra.mxu0 0
      %4718 = vmatprep.subr.bf16.mxu0 0
      %4719 = vmatpush1.bf16.msra.mxu0 0
      %4720 = vmatprep.subr.bf16.mxu0 0
      %4721 = vmatpush1.bf16.msra.mxu0 0
      %4722 = vmatprep.subr.bf16.mxu0 0
      %4723 = vmatpush1.bf16.msra.mxu0 0
      %4724 = vmatprep.subr.bf16.mxu0 0
      %4725 = vmatpush1.bf16.msra.mxu0 0
      %4726 = vmatprep.subr.bf16.mxu0 0
      %4727 = vmatpush1.bf16.msra.mxu0 0
      %4728 = vmatprep.subr.bf16.mxu0 0
      %4729 = vmatpush1.bf16.msra.mxu0 0
      %4730 = vmatprep.subr.bf16.mxu0 0
      %4731 = vmatpush1.bf16.msra.mxu0 0
      %4732 = vmatprep.subr.bf16.mxu0 0
      %4733 = vmatpush1.bf16.msra.mxu0 0
      %4734 = vmatprep.subr.bf16.mxu0 0
      %4735 = vmatpush1.bf16.msra.mxu0 0
      %4736 = vmatprep.subr.bf16.mxu0 0
      %4737 = vmatpush1.bf16.msra.mxu0 0
      %4738 = vmatprep.subr.bf16.mxu0 0
      %4739 = vmatpush1.bf16.msra.mxu0 0
      %4740 = vmatprep.subr.bf16.mxu0 0
      %4741 = vmatpush1.bf16.msra.mxu0 0
      %4742 = vmatprep.subr.bf16.mxu0 0
      %4743 = vmatpush1.bf16.msra.mxu0 0
      %4744 = vmatprep.mubr.bf16.mxu0 0
      %4745 = vmatmul.mubr.bf16.gmra.mrb[0].mxu0 %v4387
      %v4746 = vpop.f32.mrb[0].mxu0
      %v4747 = vadd.f32 0.0, %v4746
      %v4748 = vpop.f32.mrb[0].mxu0
      %v4749 = vpop.f32.mrb[0].mxu0
      %v4750 = vadd.f32 0.0, %v4749
      %v4751 = vpop.f32.mrb[0].mxu0
      %4752 = vmatprep.mubr.bf16.mxu0 0
      %4753 = vmatmul.mubr.bf16.gmra.mrb[0].mxu0 %v4390
      %v4754 = vpop.f32.mrb[0].mxu0
      %v4755 = vadd.f32 0.0, %v4754
      %v4756 = vpop.f32.mrb[0].mxu0
      %v4757 = vpop.f32.mrb[0].mxu0
      %v4758 = vadd.f32 0.0, %v4757
      %v4759 = vpop.f32.mrb[0].mxu0
      %4760 = vmatprep.mubr.bf16.mxu0 0
      %4761 = vmatmul.mubr.bf16.gmra.mrb[0].mxu0 %v4393
      %v4762 = vpop.f32.mrb[0].mxu0
      %v4763 = vadd.f32 0.0, %v4762
      %v4764 = vpop.f32.mrb[0].mxu0
      %v4765 = vpop.f32.mrb[0].mxu0
      %v4766 = vadd.f32 0.0, %v4765
      %v4767 = vpop.f32.mrb[0].mxu0
      %4768 = vmatprep.mubr.bf16.mxu0 0
      %4769 = vmatmul.mubr.bf16.gmra.mrb[0].mxu0 %v4396
      %v4770 = vpop.f32.mrb[0].mxu0
      %v4771 = vadd.f32 0.0, %v4770
      %v4772 = vpop.f32.mrb[0].mxu0
      %v4773 = vpop.f32.mrb[0].mxu0
      %v4774 = vadd.f32 0.0, %v4773
      %v4775 = vpop.f32.mrb[0].mxu0
      %4776 = vdwg.mxu0
      %v4777 = vadd.f32 %v4700, %v4747
      %v4778 = vadd.f32 %v4701, %v4750
      %v4779 = vadd.f32 %v4702, %v4755
      %v4780 = vadd.f32 %v4703, %v4758
      %v4781 = vadd.f32 %v4704, %v4763
      %v4782 = vadd.f32 %v4705, %v4766
      %v4783 = vadd.f32 %v4706, %v4771
      %v4784 = vadd.f32 %v4707, %v4774
      %v4785 = vld [vmem:[%s565 + $0x8] sm:$0xf]
      %v4786 = vld [vmem:[%s565 + $0xc] sm:$0xf]
      %v4787 = vld [vmem:[%s565 + $0x10] sm:$0xf]
      %v4788 = vld [vmem:[%s565 + $0x14] sm:$0xf]
      %v4789 = vld [vmem:[%s565 + $0x18] sm:$0xf]
      %v4790 = vld [vmem:[%s565 + $0x1c] sm:$0xf]
      %v4791 = vld [vmem:[%s565 + $0x20] sm:$0xf]
      %v4792 = vld [vmem:[%s565 + $0x24] sm:$0xf]
      %v4793 = vld [vmem:[%s1266] sm:$0x3]
      %v4802 = vunpack.c.l.b16 %v4785
      %v4803 = vunpack.c.l.b16 %v4786
      %v4804 = vunpack.c.l.b16 %v4787
      %v4805 = vunpack.c.l.b16 %v4788
      %v4806 = vunpack.c.l.b16 %v4789
      %v4807 = vunpack.c.l.b16 %v4790
      %v4808 = vunpack.c.l.b16 %v4791
      %v4809 = vunpack.c.l.b16 %v4792
      %v4810 = vpack.c.b16 %v4803, %v4802
      %v4811 = vpack.c.b16 %v4805, %v4804
      %v4812 = vpack.c.b16 %v4807, %v4806
      %v4813 = vpack.c.b16 %v4809, %v4808
      %v4815 = vsel %vm736, %v4810, 0
      %v4818 = vsel %vm736, %v4811, 0
      %v4821 = vsel %vm736, %v4812, 0
      %v4824 = vsel %vm736, %v4813, 0
      %v4827 = vsel %vm749, %v4793, 0
      %4829 = vmatprep.subr.bf16.mxu0 0
      %4830 = vmatpush1.bf16.msra.mxu0 %v4827
      %4831 = vmatprep.subr.bf16.mxu0 0
      %4832 = vmatpush1.bf16.msra.mxu0 0
      %4833 = vmatprep.subr.bf16.mxu0 0
      %4834 = vmatpush1.bf16.msra.mxu0 0
      %4835 = vmatprep.subr.bf16.mxu0 0
      %4836 = vmatpush1.bf16.msra.mxu0 0
      %4837 = vmatprep.subr.bf16.mxu0 0
      %4838 = vmatpush1.bf16.msra.mxu0 0
      %4839 = vmatprep.subr.bf16.mxu0 0
      %4840 = vmatpush1.bf16.msra.mxu0 0
      %4841 = vmatprep.subr.bf16.mxu0 0
      %4842 = vmatpush1.bf16.msra.mxu0 0
      %4843 = vmatprep.subr.bf16.mxu0 0
      %4844 = vmatpush1.bf16.msra.mxu0 0
      %4845 = vmatprep.subr.bf16.mxu0 0
      %4846 = vmatpush1.bf16.msra.mxu0 0
      %4847 = vmatprep.subr.bf16.mxu0 0
      %4848 = vmatpush1.bf16.msra.mxu0 0
      %4849 = vmatprep.subr.bf16.mxu0 0
      %4850 = vmatpush1.bf16.msra.mxu0 0
      %4851 = vmatprep.subr.bf16.mxu0 0
      %4852 = vmatpush1.bf16.msra.mxu0 0
      %4853 = vmatprep.subr.bf16.mxu0 0
      %4854 = vmatpush1.bf16.msra.mxu0 0
      %4855 = vmatprep.subr.bf16.mxu0 0
      %4856 = vmatpush1.bf16.msra.mxu0 0
      %4857 = vmatprep.subr.bf16.mxu0 0
      %4858 = vmatpush1.bf16.msra.mxu0 0
      %4859 = vmatprep.subr.bf16.mxu0 0
      %4860 = vmatpush1.bf16.msra.mxu0 0
      %4861 = vmatprep.mubr.bf16.mxu0 0
      %4862 = vmatmul.mubr.bf16.gmra.mrb[0].mxu0 %v4815
      %v4863 = vpop.f32.mrb[0].mxu0
      %v4864 = vadd.f32 0.0, %v4863
      %v4865 = vpop.f32.mrb[0].mxu0
      %v4866 = vpop.f32.mrb[0].mxu0
      %v4867 = vadd.f32 0.0, %v4866
      %v4868 = vpop.f32.mrb[0].mxu0
      %4869 = vmatprep.mubr.bf16.mxu0 0
      %4870 = vmatmul.mubr.bf16.gmra.mrb[0].mxu0 %v4818
      %v4871 = vpop.f32.mrb[0].mxu0
      %v4872 = vadd.f32 0.0, %v4871
      %v4873 = vpop.f32.mrb[0].mxu0
      %v4874 = vpop.f32.mrb[0].mxu0
      %v4875 = vadd.f32 0.0, %v4874
      %v4876 = vpop.f32.mrb[0].mxu0
      %4877 = vmatprep.mubr.bf16.mxu0 0
      %4878 = vmatmul.mubr.bf16.gmra.mrb[0].mxu0 %v4821
      %v4879 = vpop.f32.mrb[0].mxu0
      %v4880 = vadd.f32 0.0, %v4879
      %v4881 = vpop.f32.mrb[0].mxu0
      %v4882 = vpop.f32.mrb[0].mxu0
      %v4883 = vadd.f32 0.0, %v4882
      %v4884 = vpop.f32.mrb[0].mxu0
      %4885 = vmatprep.mubr.bf16.mxu0 0
      %4886 = vmatmul.mubr.bf16.gmra.mrb[0].mxu0 %v4824
      %v4887 = vpop.f32.mrb[0].mxu0
      %v4888 = vadd.f32 0.0, %v4887
      %v4889 = vpop.f32.mrb[0].mxu0
      %v4890 = vpop.f32.mrb[0].mxu0
      %v4891 = vadd.f32 0.0, %v4890
      %v4892 = vpop.f32.mrb[0].mxu0
      %4893 = vdwg.mxu0
      %v4894 = vadd.f32 %v4777, %v4864
      %v4895 = vadd.f32 %v4778, %v4867
      %v4896 = vadd.f32 %v4779, %v4872
      %v4897 = vadd.f32 %v4780, %v4875
      %v4898 = vadd.f32 %v4781, %v4880
      %v4899 = vadd.f32 %v4782, %v4883
      %v4900 = vadd.f32 %v4783, %v4888
      %v4901 = vadd.f32 %v4784, %v4891
      %v4902 = vld [vmem:[%s565] sm:$0x8]
      %v4903 = vsel %vm1523, %v4902, 0
      %v4904 = vsel %vm1524, %v4357, 0
      %v4905 = vsel %vm1525, %v4358, 0
      %v4906 = vsel %vm1526, %v4359, 0
      %v4907 = vsel %vm1527, %v4360, 0
      %v4908 = vsel %vm1528, %v4361, 0
      %v4909 = vsel %vm1529, %v4362, 0
      %v4910 = vsel %vm1530, %v4363, 0
      %v4911 = vsel %vm1531, %v4364, 0
      %v4912 = vld [vmem:[%s1541] sm:$0x3]
      %v4922 = vunpack.c.l.b16 %v4903
      %v4923 = vunpack.c.l.b16 %v4904
      %v4924 = vunpack.c.l.b16 %v4905
      %v4925 = vunpack.c.l.b16 %v4906
      %v4926 = vunpack.c.l.b16 %v4907
      %v4927 = vunpack.c.l.b16 %v4908
      %v4928 = vunpack.c.l.b16 %v4909
      %v4929 = vunpack.c.l.b16 %v4910
      %v4930 = vunpack.c.l.b16 %v4911
      %v4931 = vpack.c.b16 %v4923, %v4922
      %v4932 = vpack.c.b16 %v4925, %v4924
      %v4933 = vpack.c.b16 %v4927, %v4926
      %v4934 = vpack.c.b16 %v4929, %v4928
      %v4935 = vpack.c.b16 %v4930, %v4930
      %v4937 = vshrl.u32 %v4931, 16
      %v4939 = vrot.slane %v4937, 3
      %v4940 = vshll.u32 %v4931, 16
      %v4942 = vrot.slane %v4940, 4
      %v4943 = vor.u32 %v4939, %v4942
      %v4945 = vshrl.u32 %v4932, 16
      %v4947 = vrot.slane %v4945, 3
      %v4948 = vshll.u32 %v4932, 16
      %v4950 = vrot.slane %v4948, 4
      %v4951 = vor.u32 %v4947, %v4950
      %v4952 = vsel %vm1566, %v4943, %v4951
      %v4954 = vshrl.u32 %v4933, 16
      %v4956 = vrot.slane %v4954, 3
      %v4957 = vshll.u32 %v4933, 16
      %v4959 = vrot.slane %v4957, 4
      %v4960 = vor.u32 %v4956, %v4959
      %v4961 = vsel %vm1566, %v4951, %v4960
      %v4963 = vshrl.u32 %v4934, 16
      %v4965 = vrot.slane %v4963, 3
      %v4966 = vshll.u32 %v4934, 16
      %v4968 = vrot.slane %v4966, 4
      %v4969 = vor.u32 %v4965, %v4968
      %v4970 = vsel %vm1566, %v4960, %v4969
      %v4972 = vshrl.u32 %v4935, 16
      %v4974 = vrot.slane %v4972, 3
      %v4975 = vshll.u32 %v4935, 16
      %v4977 = vrot.slane %v4975, 4
      %v4978 = vor.u32 %v4974, %v4977
      %v4979 = vsel %vm1566, %v4969, %v4978
      %v4981 = vsel %vm736, %v4952, 0
      %v4984 = vsel %vm736, %v4961, 0
      %v4987 = vsel %vm736, %v4970, 0
      %v4990 = vsel %vm736, %v4979, 0
      %v4993 = vsel %vm749, %v4912, 0
      %4995 = vmatprep.subr.bf16.mxu0 0
      %4996 = vmatpush1.bf16.msra.mxu0 %v4993
      %4997 = vmatprep.subr.bf16.mxu0 0
      %4998 = vmatpush1.bf16.msra.mxu0 0
      %4999 = vmatprep.subr.bf16.mxu0 0
      %5000 = vmatpush1.bf16.msra.mxu0 0
      %5001 = vmatprep.subr.bf16.mxu0 0
      %5002 = vmatpush1.bf16.msra.mxu0 0
      %5003 = vmatprep.subr.bf16.mxu0 0
      %5004 = vmatpush1.bf16.msra.mxu0 0
      %5005 = vmatprep.subr.bf16.mxu0 0
      %5006 = vmatpush1.bf16.msra.mxu0 0
      %5007 = vmatprep.subr.bf16.mxu0 0
      %5008 = vmatpush1.bf16.msra.mxu0 0
      %5009 = vmatprep.subr.bf16.mxu0 0
      %5010 = vmatpush1.bf16.msra.mxu0 0
      %5011 = vmatprep.subr.bf16.mxu0 0
      %5012 = vmatpush1.bf16.msra.mxu0 0
      %5013 = vmatprep.subr.bf16.mxu0 0
      %5014 = vmatpush1.bf16.msra.mxu0 0
      %5015 = vmatprep.subr.bf16.mxu0 0
      %5016 = vmatpush1.bf16.msra.mxu0 0
      %5017 = vmatprep.subr.bf16.mxu0 0
      %5018 = vmatpush1.bf16.msra.mxu0 0
      %5019 = vmatprep.subr.bf16.mxu0 0
      %5020 = vmatpush1.bf16.msra.mxu0 0
      %5021 = vmatprep.subr.bf16.mxu0 0
      %5022 = vmatpush1.bf16.msra.mxu0 0
      %5023 = vmatprep.subr.bf16.mxu0 0
      %5024 = vmatpush1.bf16.msra.mxu0 0
      %5025 = vmatprep.subr.bf16.mxu0 0
      %5026 = vmatpush1.bf16.msra.mxu0 0
      %5027 = vmatprep.mubr.bf16.mxu0 0
      %5028 = vmatmul.mubr.bf16.gmra.mrb[0].mxu0 %v4981
      %v5029 = vpop.f32.mrb[0].mxu0
      %v5030 = vadd.f32 0.0, %v5029
      %v5031 = vpop.f32.mrb[0].mxu0
      %v5032 = vpop.f32.mrb[0].mxu0
      %v5033 = vadd.f32 0.0, %v5032
      %v5034 = vpop.f32.mrb[0].mxu0
      %5035 = vmatprep.mubr.bf16.mxu0 0
      %5036 = vmatmul.mubr.bf16.gmra.mrb[0].mxu0 %v4984
      %v5037 = vpop.f32.mrb[0].mxu0
      %v5038 = vadd.f32 0.0, %v5037
      %v5039 = vpop.f32.mrb[0].mxu0
      %v5040 = vpop.f32.mrb[0].mxu0
      %v5041 = vadd.f32 0.0, %v5040
      %v5042 = vpop.f32.mrb[0].mxu0
      %5043 = vmatprep.mubr.bf16.mxu0 0
      %5044 = vmatmul.mubr.bf16.gmra.mrb[0].mxu0 %v4987
      %v5045 = vpop.f32.mrb[0].mxu0
      %v5046 = vadd.f32 0.0, %v5045
      %v5047 = vpop.f32.mrb[0].mxu0
      %v5048 = vpop.f32.mrb[0].mxu0
      %v5049 = vadd.f32 0.0, %v5048
      %v5050 = vpop.f32.mrb[0].mxu0
      %5051 = vmatprep.mubr.bf16.mxu0 0
      %5052 = vmatmul.mubr.bf16.gmra.mrb[0].mxu0 %v4990
      %v5053 = vpop.f32.mrb[0].mxu0
      %v5054 = vadd.f32 0.0, %v5053
      %v5055 = vpop.f32.mrb[0].mxu0
      %v5056 = vpop.f32.mrb[0].mxu0
      %v5057 = vadd.f32 0.0, %v5056
      %v5058 = vpop.f32.mrb[0].mxu0
      %5059 = vdwg.mxu0
      %v5060 = vadd.f32 %v4894, %v5030
      %v5061 = vadd.f32 %v4895, %v5033
      %v5062 = vadd.f32 %v4896, %v5038
      %v5063 = vadd.f32 %v4897, %v5041
      %v5064 = vadd.f32 %v4898, %v5046
      %v5065 = vadd.f32 %v4899, %v5049
      %v5066 = vadd.f32 %v4900, %v5054
      %v5067 = vadd.f32 %v4901, %v5057
      %v5068 = vld [vmem:[%s1699] sm:$0x3]
      %v5070 = vsel %vm749, %v5068, 0
      %5072 = vmatprep.subr.bf16.mxu0 0
      %5073 = vmatpush1.bf16.msra.mxu0 %v5070
      %5074 = vmatprep.subr.bf16.mxu0 0
      %5075 = vmatpush1.bf16.msra.mxu0 0
      %5076 = vmatprep.subr.bf16.mxu0 0
      %5077 = vmatpush1.bf16.msra.mxu0 0
      %5078 = vmatprep.subr.bf16.mxu0 0
      %5079 = vmatpush1.bf16.msra.mxu0 0
      %5080 = vmatprep.subr.bf16.mxu0 0
      %5081 = vmatpush1.bf16.msra.mxu0 0
      %5082 = vmatprep.subr.bf16.mxu0 0
      %5083 = vmatpush1.bf16.msra.mxu0 0
      %5084 = vmatprep.subr.bf16.mxu0 0
      %5085 = vmatpush1.bf16.msra.mxu0 0
      %5086 = vmatprep.subr.bf16.mxu0 0
      %5087 = vmatpush1.bf16.msra.mxu0 0
      %5088 = vmatprep.subr.bf16.mxu0 0
      %5089 = vmatpush1.bf16.msra.mxu0 0
      %5090 = vmatprep.subr.bf16.mxu0 0
      %5091 = vmatpush1.bf16.msra.mxu0 0
      %5092 = vmatprep.subr.bf16.mxu0 0
      %5093 = vmatpush1.bf16.msra.mxu0 0
      %5094 = vmatprep.subr.bf16.mxu0 0
      %5095 = vmatpush1.bf16.msra.mxu0 0
      %5096 = vmatprep.subr.bf16.mxu0 0
      %5097 = vmatpush1.bf16.msra.mxu0 0
      %5098 = vmatprep.subr.bf16.mxu0 0
      %5099 = vmatpush1.bf16.msra.mxu0 0
      %5100 = vmatprep.subr.bf16.mxu0 0
      %5101 = vmatpush1.bf16.msra.mxu0 0
      %5102 = vmatprep.subr.bf16.mxu0 0
      %5103 = vmatpush1.bf16.msra.mxu0 0
      %5104 = vmatprep.mubr.bf16.mxu0 0
      %5105 = vmatmul.mubr.bf16.gmra.mrb[0].mxu0 %v4387
      %v5106 = vpop.f32.mrb[0].mxu0
      %v5107 = vadd.f32 0.0, %v5106
      %v5108 = vpop.f32.mrb[0].mxu0
      %v5109 = vpop.f32.mrb[0].mxu0
      %v5110 = vadd.f32 0.0, %v5109
      %v5111 = vpop.f32.mrb[0].mxu0
      %5112 = vmatprep.mubr.bf16.mxu0 0
      %5113 = vmatmul.mubr.bf16.gmra.mrb[0].mxu0 %v4390
      %v5114 = vpop.f32.mrb[0].mxu0
      %v5115 = vadd.f32 0.0, %v5114
      %v5116 = vpop.f32.mrb[0].mxu0
      %v5117 = vpop.f32.mrb[0].mxu0
      %v5118 = vadd.f32 0.0, %v5117
      %v5119 = vpop.f32.mrb[0].mxu0
      %5120 = vmatprep.mubr.bf16.mxu0 0
      %5121 = vmatmul.mubr.bf16.gmra.mrb[0].mxu0 %v4393
      %v5122 = vpop.f32.mrb[0].mxu0
      %v5123 = vadd.f32 0.0, %v5122
      %v5124 = vpop.f32.mrb[0].mxu0
      %v5125 = vpop.f32.mrb[0].mxu0
      %v5126 = vadd.f32 0.0, %v5125
      %v5127 = vpop.f32.mrb[0].mxu0
      %5128 = vmatprep.mubr.bf16.mxu0 0
      %5129 = vmatmul.mubr.bf16.gmra.mrb[0].mxu0 %v4396
      %v5130 = vpop.f32.mrb[0].mxu0
      %v5131 = vadd.f32 0.0, %v5130
      %v5132 = vpop.f32.mrb[0].mxu0
      %v5133 = vpop.f32.mrb[0].mxu0
      %v5134 = vadd.f32 0.0, %v5133
      %v5135 = vpop.f32.mrb[0].mxu0
      %5136 = vdwg.mxu0
      %v5137 = vadd.f32 %v5060, %v5107
      %v5138 = vadd.f32 %v5061, %v5110
      %v5139 = vadd.f32 %v5062, %v5115
      %v5140 = vadd.f32 %v5063, %v5118
      %v5141 = vadd.f32 %v5064, %v5123
      %v5142 = vadd.f32 %v5065, %v5126
      %v5143 = vadd.f32 %v5066, %v5131
      %v5144 = vadd.f32 %v5067, %v5134
      %v5145 = vld [vmem:[%s565 + $0x4] sm:$0xf]
      %v5146 = vld [vmem:[%s565 + $0x24] sm:$0x1]
      %v5147 = vsel %vm1917, %v5145, 0
      %v5148 = vsel %vm1918, %v4785, 0
      %v5149 = vsel %vm1919, %v4786, 0
      %v5150 = vsel %vm1920, %v4787, 0
      %v5151 = vsel %vm1921, %v4788, 0
      %v5152 = vsel %vm1922, %v4789, 0
      %v5153 = vsel %vm1923, %v4790, 0
      %v5154 = vsel %vm1924, %v4791, 0
      %v5155 = vsel %vm1925, %v5146, 0
      %v5156 = vld [vmem:[%s1935] sm:$0x3]
      %v5166 = vunpack.c.l.b16 %v5147
      %v5167 = vunpack.c.l.b16 %v5148
      %v5168 = vunpack.c.l.b16 %v5149
      %v5169 = vunpack.c.l.b16 %v5150
      %v5170 = vunpack.c.l.b16 %v5151
      %v5171 = vunpack.c.l.b16 %v5152
      %v5172 = vunpack.c.l.b16 %v5153
      %v5173 = vunpack.c.l.b16 %v5154
      %v5174 = vunpack.c.l.b16 %v5155
      %v5175 = vpack.c.b16 %v5167, %v5166
      %v5176 = vpack.c.b16 %v5169, %v5168
      %v5177 = vpack.c.b16 %v5171, %v5170
      %v5178 = vpack.c.b16 %v5173, %v5172
      %v5179 = vpack.c.b16 %v5174, %v5174
      %v5181 = vshrl.u32 %v5175, 16
      %v5183 = vshll.u32 %v5175, 16
      %v5185 = vrot.slane %v5183, 1
      %v5186 = vor.u32 %v5181, %v5185
      %v5188 = vshll.u32 %v5176, 16
      %v5190 = vrot.slane %v5188, 1
      %v5191 = vsel %vm1960, %v5186, %v5190
      %v5192 = vshrl.u32 %v5176, 16
      %v5194 = vor.u32 %v5192, %v5190
      %v5196 = vshll.u32 %v5177, 16
      %v5198 = vrot.slane %v5196, 1
      %v5199 = vsel %vm1960, %v5194, %v5198
      %v5200 = vshrl.u32 %v5177, 16
      %v5202 = vor.u32 %v5200, %v5198
      %v5204 = vshll.u32 %v5178, 16
      %v5206 = vrot.slane %v5204, 1
      %v5207 = vsel %vm1960, %v5202, %v5206
      %v5208 = vshrl.u32 %v5178, 16
      %v5210 = vor.u32 %v5208, %v5206
      %v5212 = vshll.u32 %v5179, 16
      %v5214 = vrot.slane %v5212, 1
      %v5215 = vsel %vm1960, %v5210, %v5214
      %v5217 = vsel %vm736, %v5191, 0
      %v5220 = vsel %vm736, %v5199, 0
      %v5223 = vsel %vm736, %v5207, 0
      %v5226 = vsel %vm736, %v5215, 0
      %v5229 = vsel %vm749, %v5156, 0
      %5231 = vmatprep.subr.bf16.mxu0 0
      %5232 = vmatpush1.bf16.msra.mxu0 %v5229
      %5233 = vmatprep.subr.bf16.mxu0 0
      %5234 = vmatpush1.bf16.msra.mxu0 0
      %5235 = vmatprep.subr.bf16.mxu0 0
      %5236 = vmatpush1.bf16.msra.mxu0 0
      %5237 = vmatprep.subr.bf16.mxu0 0
      %5238 = vmatpush1.bf16.msra.mxu0 0
      %5239 = vmatprep.subr.bf16.mxu0 0
      %5240 = vmatpush1.bf16.msra.mxu0 0
      %5241 = vmatprep.subr.bf16.mxu0 0
      %5242 = vmatpush1.bf16.msra.mxu0 0
      %5243 = vmatprep.subr.bf16.mxu0 0
      %5244 = vmatpush1.bf16.msra.mxu0 0
      %5245 = vmatprep.subr.bf16.mxu0 0
      %5246 = vmatpush1.bf16.msra.mxu0 0
      %5247 = vmatprep.subr.bf16.mxu0 0
      %5248 = vmatpush1.bf16.msra.mxu0 0
      %5249 = vmatprep.subr.bf16.mxu0 0
      %5250 = vmatpush1.bf16.msra.mxu0 0
      %5251 = vmatprep.subr.bf16.mxu0 0
      %5252 = vmatpush1.bf16.msra.mxu0 0
      %5253 = vmatprep.subr.bf16.mxu0 0
      %5254 = vmatpush1.bf16.msra.mxu0 0
      %5255 = vmatprep.subr.bf16.mxu0 0
      %5256 = vmatpush1.bf16.msra.mxu0 0
      %5257 = vmatprep.subr.bf16.mxu0 0
      %5258 = vmatpush1.bf16.msra.mxu0 0
      %5259 = vmatprep.subr.bf16.mxu0 0
      %5260 = vmatpush1.bf16.msra.mxu0 0
      %5261 = vmatprep.subr.bf16.mxu0 0
      %5262 = vmatpush1.bf16.msra.mxu0 0
      %5263 = vmatprep.mubr.bf16.mxu0 0
      %5264 = vmatmul.mubr.bf16.gmra.mrb[0].mxu0 %v5217
      %v5265 = vpop.f32.mrb[0].mxu0
      %v5266 = vadd.f32 0.0, %v5265
      %v5267 = vpop.f32.mrb[0].mxu0
      %v5268 = vpop.f32.mrb[0].mxu0
      %v5269 = vadd.f32 0.0, %v5268
      %v5270 = vpop.f32.mrb[0].mxu0
      %5271 = vmatprep.mubr.bf16.mxu0 0
      %5272 = vmatmul.mubr.bf16.gmra.mrb[0].mxu0 %v5220
      %v5273 = vpop.f32.mrb[0].mxu0
      %v5274 = vadd.f32 0.0, %v5273
      %v5275 = vpop.f32.mrb[0].mxu0
      %v5276 = vpop.f32.mrb[0].mxu0
      %v5277 = vadd.f32 0.0, %v5276
      %v5278 = vpop.f32.mrb[0].mxu0
      %5279 = vmatprep.mubr.bf16.mxu0 0
      %5280 = vmatmul.mubr.bf16.gmra.mrb[0].mxu0 %v5223
      %v5281 = vpop.f32.mrb[0].mxu0
      %v5282 = vadd.f32 0.0, %v5281
      %v5283 = vpop.f32.mrb[0].mxu0
      %v5284 = vpop.f32.mrb[0].mxu0
      %v5285 = vadd.f32 0.0, %v5284
      %v5286 = vpop.f32.mrb[0].mxu0
      %5287 = vmatprep.mubr.bf16.mxu0 0
      %5288 = vmatmul.mubr.bf16.gmra.mrb[0].mxu0 %v5226
      %v5289 = vpop.f32.mrb[0].mxu0
      %v5290 = vadd.f32 0.0, %v5289
      %v5291 = vpop.f32.mrb[0].mxu0
      %v5292 = vpop.f32.mrb[0].mxu0
      %v5293 = vadd.f32 0.0, %v5292
      %v5294 = vpop.f32.mrb[0].mxu0
      %5295 = vdwg.mxu0
      %v5296 = vadd.f32 %v5137, %v5266
      %v5297 = vadd.f32 %v5138, %v5269
      %v5298 = vadd.f32 %v5139, %v5274
      %v5299 = vadd.f32 %v5140, %v5277
      %v5300 = vadd.f32 %v5141, %v5282
      %v5301 = vadd.f32 %v5142, %v5285
      %v5302 = vadd.f32 %v5143, %v5290
      %v5303 = vadd.f32 %v5144, %v5293
      %s5304 = scalar_lea.vmem %s590, 192
      %5305 = vst.msk [vmem:[%s5304] sm:$0xff] %vm2085, %v5296
      %5306 = vst.msk [vmem:[%s5304 + $0x8] sm:$0xff] %vm2085, %v5297
      %5307 = vst.msk [vmem:[%s5304 + $0x10] sm:$0xff] %vm2085, %v5298
      %5308 = vst.msk [vmem:[%s5304 + $0x18] sm:$0xff] %vm2085, %v5299
      %5309 = vst.msk [vmem:[%s5304 + $0x20] sm:$0xff] %vm2085, %v5300
      %5310 = vst.msk [vmem:[%s5304 + $0x28] sm:$0xff] %vm2085, %v5301
      %5311 = vst.msk [vmem:[%s5304 + $0x30] sm:$0xff] %vm2085, %v5302
      %5312 = vst.msk [vmem:[%s5304 + $0x38] sm:$0xff] %vm2085, %v5303
      %s5313 = smul.u32 4, %s24
      %p5314 = scmp.lt.s32.totalorder %s23, 1
      %s5315 = scalar_select %p5314, %s23, 1
      %p5316 = scmp.lt.s32.totalorder %s5313, 7
      %s5317 = scalar_select %p5316, %s5313, 7
      %s5318 = smul.addr %s5317, 8
      %s5319 = smul.addr %s5315, 64
      %s5320 = sadd.s32 %s5318, %s5319
      %s5321 = smul.addr %s5320, 8
      %s5322 = scalar_lea.vmem %s8, %s5321
      // Predicated region
      $region53: #{tpu_custom_call.1} parent=51 // pred_check
        %p5323 = pneg %p283
      $region54: #{tpu_custom_call.1} parent=51 // pred_check_branch
        %5325 = sbr.rel (%p5323) target = $region56
      $region55: #{tpu_custom_call.1} parent=51 // pred_region
        %s5326 = smul.u32 4, %s24
      $region56: #{tpu_custom_call.1} parent=51 // pred_fallthru
        _
    $region52: #{tpu_custom_call.1} parent=5 // pred_fallthru
      _
    %p5327 = scmp.le.s32.totalorder 2, %s14
    // Predicated region
    $region57: #{tpu_custom_call.1} parent=5 // pred_check
      %p5328 = pneg %p5327
    $region58: #{tpu_custom_call.1} parent=5 // pred_check_branch
      %5330 = sbr.rel (%p5328) target = $region60
    $region59: #{tpu_custom_call.1} parent=5 // pred_region
      %s5331 = ssub.s32 %s14, 2
      // Predicated region
      $region61: #{tpu_custom_call.1} parent=59 // pred_check
        %p5332 = pneg %p289
      $region62: #{tpu_custom_call.1} parent=59 // pred_check_branch
        %5334 = sbr.rel (%p5332) target = $region64
      $region63: #{tpu_custom_call.1} parent=59 // pred_region
        %s5335 = smul.u32 4, %s26
        %p5336 = scmp.lt.s32.totalorder %s25, 1
        %s5337 = scalar_select %p5336, %s25, 1
        %p5338 = scmp.lt.s32.totalorder %s5335, 7
        %s5339 = scalar_select %p5338, %s5335, 7
        %s5340 = smul.addr %s5339, 8
        %s5341 = smul.addr %s5337, 64
        %s5342 = sadd.s32 %s5340, %s5341
        %s5343 = smul.addr %s5342, 8
        %s5344 = scalar_lea.vmem %s8, %s5343
      $region64: #{tpu_custom_call.1} parent=59 // pred_fallthru
        _
    $region60: #{tpu_custom_call.1} parent=5 // pred_fallthru
      _
  $region6: #{tpu_custom_call.1} parent=0 // loop_footer
    %s18 = sadd.s32 1, %s14
  $region7: #{tpu_custom_call.1} parent=0 // loop_footer_branch
    %13 = sbr.rel target = $region3
  $region8: #{tpu_custom_call.1} parent=0 // loop_exit
    _

</llo_original>
